<compile_context>
chip_gen: v5e
topology: v5e:2x2
jax: 0.10.0
libtpu: 0.0.40
codegen_flags: <defaults>
</compile_context>

<pallas_src>
import functools
import math

import jax
import jax.numpy as jnp
from jax import lax
from jax.experimental import pallas as pl
from jax.experimental.pallas import tpu as pltpu

NEG_INF = -1e30
LANES = 128


def _rep_lanes(x, n):
    """Widen a lane-replicated (rows, 128) tile to (rows, n) without a cross-lane broadcast."""
    if n == LANES:
        return x
    if n < LANES:
        return x[:, :n]
    if n % LANES == 0:
        return jnp.concatenate([x] * (n // LANES), axis=1)
    return jnp.broadcast_to(x[:, :1], (x.shape[0], n))


def _init_state(m_sc, l_sc, acc_sc):
    m_sc[...] = jnp.full_like(m_sc, NEG_INF)
    l_sc[...] = jnp.zeros_like(l_sc)
    acc_sc[...] = jnp.zeros_like(acc_sc)


def _attend(qi, ki, q_ref, k_ref, v_ref, m_sc, l_sc, acc_sc, *,
            scale, apply_mask, tq, tk, exp_dtype):
    # QK^T natively in the input dtype on the MXU, f32 accumulation; contract the
    # last dims of both operands so no explicit K transpose is materialized.
    s = lax.dot_general(q_ref[0], k_ref[0], (((1,), (1,)), ((), ())),
                        preferred_element_type=jnp.float32)          # (tq, tk) f32
    # Fold softmax_scale into the f32 score path (no second bf16 rounding of q).
    s = s * scale

    if apply_mask:
        # (tq,1) vs (1,tk) iotas; the compare broadcasts — no full (tq,tk) int32 iotas.
        q_pos = qi * tq + lax.broadcasted_iota(jnp.int32, (tq, 1), 0)
        k_pos = ki * tk + lax.broadcasted_iota(jnp.int32, (1, tk), 1)
        s = jnp.where(q_pos >= k_pos, s, NEG_INF)

    m_prev = m_sc[...]                                                # (tq,128) lane-replicated
    l_prev = l_sc[...]                                                # (tq,128)
    m_cur = jnp.max(s, axis=-1, keepdims=True)                        # (tq,1)
    m_new = jnp.maximum(m_prev, m_cur)                                # (tq,128)
    alpha = jnp.exp(m_prev - m_new)                                   # (tq,128) f32

    # Dominant EUP work: exp over (tq,tk). bf16 on v6e/v7x (bf16 EUP), f32 elsewhere;
    # m/l/acc and the row-sum accumulation stay f32.
    p = jnp.exp((s - _rep_lanes(m_new, tk)).astype(exp_dtype))        # (tq,tk)
    row_sum = jnp.sum(p, axis=-1, keepdims=True, dtype=jnp.float32)   # (tq,1)

    l_sc[...] = alpha * l_prev + row_sum
    m_sc[...] = m_new

    p_mx = p if p.dtype == v_ref.dtype else p.astype(v_ref.dtype)
    pv = jnp.dot(p_mx, v_ref[0], preferred_element_type=jnp.float32)  # (tq, D) f32
    acc_sc[...] = _rep_lanes(alpha, acc_sc.shape[-1]) * acc_sc[...] + pv


def _finalize(o_ref, m_sc, l_sc, acc_sc):
    inv_l = pl.reciprocal(l_sc[...], approx=True)                     # EUP, nearly free
    o_ref[0] = (acc_sc[...] * _rep_lanes(inv_l, acc_sc.shape[-1])).astype(o_ref.dtype)


def _flash_kernel_full(q_ref, k_ref, v_ref, o_ref, m_sc, l_sc, acc_sc, *,
                       scale, tq, tk, exp_dtype):
    """Non-causal: dense (bh, qi, ki) grid, kv reduction axis last."""
    qi = pl.program_id(1)
    ki = pl.program_id(2)

    @pl.when(ki == 0)
    def _():
        _init_state(m_sc, l_sc, acc_sc)

    _attend(qi, ki, q_ref, k_ref, v_ref, m_sc, l_sc, acc_sc,
            scale=scale, apply_mask=False, tq=tq, tk=tk, exp_dtype=exp_dtype)

    @pl.when(ki == pl.num_programs(2) - 1)
    def _():
        _finalize(o_ref, m_sc, l_sc, acc_sc)


def _flash_kernel_causal(qi_sched_ref, ki_sched_ref, q_ref, k_ref, v_ref, o_ref,
                         m_sc, l_sc, acc_sc, *, scale, tq, tk, nk, exp_dtype):
    """Causal: flattened (bh, pair) grid driven by a scalar-prefetched (qi, ki)
    block schedule containing only blocks at/below the diagonal — no dead steps."""
    pair = pl.program_id(1)
    qi = qi_sched_ref[pair]
    ki = ki_sched_ref[pair]

    @pl.when(ki == 0)
    def _():
        _init_state(m_sc, l_sc, acc_sc)

    # Blocks strictly below the diagonal need no mask.
    straddles = ki * tk + (tk - 1) > qi * tq

    @pl.when(straddles)
    def _():
        _attend(qi, ki, q_ref, k_ref, v_ref, m_sc, l_sc, acc_sc,
                scale=scale, apply_mask=True, tq=tq, tk=tk, exp_dtype=exp_dtype)

    @pl.when(jnp.logical_not(straddles))
    def _():
        _attend(qi, ki, q_ref, k_ref, v_ref, m_sc, l_sc, acc_sc,
                scale=scale, apply_mask=False, tq=tq, tk=tk, exp_dtype=exp_dtype)

    last_ki = jnp.minimum(nk - 1, ((qi + 1) * tq - 1) // tk)

    @pl.when(ki == last_ki)
    def _():
        _finalize(o_ref, m_sc, l_sc, acc_sc)


def _chip_settings():
    kind = ""
    try:
        kind = jax.devices()[0].device_kind.lower()
    except Exception:
        pass
    if "v7" in kind:
        # 64 MiB physical VMEM per core: smaller tile budget + explicit scoped limit.
        return dict(tile_budget=20 << 20, vmem_limit=40 << 20, bf16_exp=True)
    if "v6" in kind:
        return dict(tile_budget=40 << 20, vmem_limit=80 << 20, bf16_exp=True)
    if "v5e" in kind or "v5 lite" in kind or "v5lite" in kind:
        # HBM-bound chip, no bf16 EUP: keep exp in f32, prioritize K/V residency.
        return dict(tile_budget=40 << 20, vmem_limit=80 << 20, bf16_exp=False)
    # Unknown / older generation: stay conservative.
    return dict(tile_budget=12 << 20, vmem_limit=None, bf16_exp=False)


def _vmem_estimate(tq, tk, D, in_itemsize):
    io = 2 * (2 * tq * D + 2 * tk * D) * in_itemsize     # double-buffered q,o + k,v tiles
    state = 2 * tq * LANES * 4 + tq * D * 4              # m, l (lane-replicated), acc
    staging = 4 * tq * tk * 4                             # s/p intermediates (f32, headroom)
    return io + state + staging


def _divisor_candidates(S):
    cands = {S}
    c = 8
    while c < S:
        if S % c == 0:
            cands.add(c)
        c *= 2
    return sorted(cands, reverse=True)


def _select_blocks(S, D, in_itemsize, tile_budget, bh, block_q, block_k):
    cands = _divisor_candidates(S)

    if block_q is not None:
        tq = min(block_q, S)
    else:
        tq = next((c for c in cands if c <= 512), cands[-1])
        # v7x megacore: keep at least 2 parallel blocks (BH * nq) when BH is tiny.
        while bh * (S // tq) < 2:
            smaller = [c for c in cands if c < tq]
            if not smaller:
                break
            tq = smaller[0]
    assert S % tq == 0, "ragged sequence tails unsupported"

    if block_k is not None:
        tk = min(block_k, S)
    else:
        tk = None
        for c in cands:
            if c != S and c < LANES:
                continue  # keep K/V tiles lane-dense
            if _vmem_estimate(tq, c, D, in_itemsize) <= tile_budget:
                tk = c
                break
        if tk is None:
            tk = cands[-1]
    assert S % tk == 0, "ragged sequence tails unsupported"
    return tq, tk


def flash_attention(q, k, v, *, causal=False, softmax_scale=None,
                    block_q=None, block_k=None):
    """q, k, v: (B, S, H, D), dtype bf16/fp16. Returns (B, S, H, D).

    Inference semantics (attention dropout is a no-op, as in eval mode).
    """
    B, S, H, D = q.shape
    assert k.shape == (B, S, H, D) and v.shape == (B, S, H, D)
    scale = softmax_scale if softmax_scale is not None else 1.0 / math.sqrt(D)

    settings = _chip_settings()
    tq, tk = _select_blocks(S, D, q.dtype.itemsize, settings["tile_budget"],
                            B * H, block_q, block_k)
    nq, nk = S // tq, S // tk
    exp_dtype = (jnp.bfloat16
                 if settings["bf16_exp"] and q.dtype == jnp.bfloat16
                 else jnp.float32)

    # (B, S, H, D) -> (B*H, S, D)
    def fold(x):
        return jnp.transpose(x, (0, 2, 1, 3)).reshape(B * H, S, D)

    qf, kf, vf = fold(q), fold(k), fold(v)
    BH = B * H

    scratch_shapes = [
        pltpu.VMEM((tq, LANES), jnp.float32),   # running max m (lane-replicated)
        pltpu.VMEM((tq, LANES), jnp.float32),   # running denom l (lane-replicated)
        pltpu.VMEM((tq, D), jnp.float32),       # output accumulator
    ]

    if causal:
        # Host-side schedule of only the needed (qi, ki) blocks (P2 scalar prefetch).
        qi_list, ki_list = [], []
        for qi in range(nq):
            last_ki = min(nk - 1, ((qi + 1) * tq - 1) // tk)
            for ki in range(last_ki + 1):
                qi_list.append(qi)
                ki_list.append(ki)
        qi_sched = jnp.asarray(qi_list, dtype=jnp.int32)
        ki_sched = jnp.asarray(ki_list, dtype=jnp.int32)
        n_pairs = len(qi_list)

        q_map = lambda bh, p, qs, ks: (bh, qs[p], 0)
        kv_map = lambda bh, p, qs, ks: (bh, ks[p], 0)

        kernel = functools.partial(_flash_kernel_causal, scale=scale, tq=tq, tk=tk,
                                   nk=nk, exp_dtype=exp_dtype)
        out = pl.pallas_call(
            kernel,
            out_shape=jax.ShapeDtypeStruct((BH, S, D), q.dtype),
            grid_spec=pltpu.PrefetchScalarGridSpec(
                num_scalar_prefetch=2,
                grid=(BH, n_pairs),
                in_specs=[
                    pl.BlockSpec((1, tq, D), q_map),
                    pl.BlockSpec((1, tk, D), kv_map),
                    pl.BlockSpec((1, tk, D), kv_map),
                ],
                out_specs=pl.BlockSpec((1, tq, D), q_map),
                scratch_shapes=scratch_shapes,
            ),
            compiler_params=pltpu.CompilerParams(
                dimension_semantics=("parallel", "arbitrary"),
                vmem_limit_bytes=settings["vmem_limit"]),
        )(qi_sched, ki_sched, qf, kf, vf)
    else:
        q_map = lambda bh, qi, ki: (bh, qi, 0)
        kv_map = lambda bh, qi, ki: (bh, ki, 0)

        kernel = functools.partial(_flash_kernel_full, scale=scale, tq=tq, tk=tk,
                                   exp_dtype=exp_dtype)
        out = pl.pallas_call(
            kernel,
            out_shape=jax.ShapeDtypeStruct((BH, S, D), q.dtype),
            grid_spec=pltpu.PrefetchScalarGridSpec(
                num_scalar_prefetch=0,
                grid=(BH, nq, nk),
                in_specs=[
                    pl.BlockSpec((1, tq, D), q_map),
                    pl.BlockSpec((1, tk, D), kv_map),
                    pl.BlockSpec((1, tk, D), kv_map),
                ],
                out_specs=pl.BlockSpec((1, tq, D), q_map),
                scratch_shapes=scratch_shapes,
            ),
            compiler_params=pltpu.CompilerParams(
                dimension_semantics=("parallel", "parallel", "arbitrary"),
                vmem_limit_bytes=settings["vmem_limit"]),
        )(qf, kf, vf)

    # (B*H, S, D) -> (B, S, H, D)
    return jnp.transpose(out.reshape(B, H, S, D), (0, 2, 1, 3))


def _attention_reference(q, k, v, *, causal, softmax_scale=None):
    B, S, H, D = q.shape
    scale = softmax_scale if softmax_scale is not None else 1.0 / math.sqrt(D)
    qf = q.astype(jnp.float32)
    kf = k.astype(jnp.float32)
    vf = v.astype(jnp.float32)
    s = jnp.einsum('bqhd,bkhd->bhqk', qf, kf) * scale
    if causal:
        mask = jnp.tril(jnp.ones((S, S), dtype=bool))
        s = jnp.where(mask[None, None], s, -jnp.inf)
    p = jax.nn.softmax(s, axis=-1)
    o = jnp.einsum('bhqk,bkhd->bqhd', p, vf)
    return o.astype(q.dtype)


if __name__ == "__main__":
    B, S, H, D = 2, 512, 2, 64
    key = jax.random.PRNGKey(0)
    kq, kk, kv = jax.random.split(key, 3)
    q = jax.random.normal(kq, (B, S, H, D), dtype=jnp.bfloat16)
    k = jax.random.normal(kk, (B, S, H, D), dtype=jnp.bfloat16)
    v = jax.random.normal(kv, (B, S, H, D), dtype=jnp.bfloat16)

    configs = [
        dict(),                            # auto tiles: block_q=512, block_k=S (K/V resident per head)
        dict(block_q=128, block_k=128),    # multi-block online softmax + causal block schedule
    ]
    for causal in (False, True):
        ref = _attention_reference(q, k, v, causal=causal)
        for cfg in configs:
            out = flash_attention(q, k, v, causal=causal, **cfg)
            jax.block_until_ready(out)
            err = jnp.max(jnp.abs(out.astype(jnp.float32) - ref.astype(jnp.float32)))
            assert out.shape == (B, S, H, D) and out.dtype == q.dtype
            assert float(err) < 5e-2, (
                f"max abs err {float(err)} (causal={causal}, cfg={cfg})")

    print("KERNEL_OK")
</pallas_src>

<mosaic_0001>
module attributes {stable_mosaic.version = 11 : i64} {
  func.func @_flash_kernel_full(%arg0: i32, %arg1: i32, %arg2: i32, %arg3: memref<1x512x64xbf16, #tpu.memory_space<vmem>>, %arg4: memref<1x512x64xbf16, #tpu.memory_space<vmem>>, %arg5: memref<1x512x64xbf16, #tpu.memory_space<vmem>>, %arg6: memref<1x512x64xbf16, #tpu.memory_space<vmem>>, %arg7: memref<512x128xf32, #tpu.memory_space<vmem>>, %arg8: memref<512x128xf32, #tpu.memory_space<vmem>>, %arg9: memref<512x64xf32, #tpu.memory_space<vmem>>) attributes {dimension_semantics = [#tpu.dimension_semantics<parallel>, #tpu.dimension_semantics<parallel>, #tpu.dimension_semantics<arbitrary>], iteration_bounds = array<i64: 4, 1, 1>, scalar_prefetch = 0 : i64, scratch_operands = 3 : i64, tpu.core_type = #tpu.core_type<tc>, window_params = [{transform_indices = @transform_0, window_bounds = array<i64: 1, 512, 64>}, {transform_indices = @transform_1, window_bounds = array<i64: 1, 512, 64>}, {transform_indices = @transform_2, window_bounds = array<i64: 1, 512, 64>}, {transform_indices = @transform_3, window_bounds = array<i64: 1, 512, 64>}]} {
    %c0_i32 = arith.constant 0 : i32
    %0 = arith.cmpi eq, %arg2, %c0_i32 : i32
    %1 = arith.extui %0 : i1 to i32
    %c0_i32_0 = arith.constant 0 : i32
    %2 = arith.cmpi ne, %1, %c0_i32_0 : i32
    scf.if %2 {
      %cst_27 = arith.constant -1.000000e+30 : f32
      %40 = vector.broadcast %cst_27 : f32 to vector<512x128xf32>
      %c0_28 = arith.constant 0 : index
      %c0_29 = arith.constant 0 : index
      %41 = vector.load %arg7[%c0_28, %c0_29] : memref<512x128xf32, #tpu.memory_space<vmem>>, vector<512x128xf32>
      tpu.vector_store %arg7[%c0_28, %c0_29], %40 {strides = array<i32>} : memref<512x128xf32, #tpu.memory_space<vmem>>, vector<512x128xf32>,
      %cst_30 = arith.constant 0.000000e+00 : f32
      %42 = vector.broadcast %cst_30 : f32 to vector<512x128xf32>
      %c0_31 = arith.constant 0 : index
      %c0_32 = arith.constant 0 : index
      %43 = vector.load %arg8[%c0_31, %c0_32] : memref<512x128xf32, #tpu.memory_space<vmem>>, vector<512x128xf32>
      tpu.vector_store %arg8[%c0_31, %c0_32], %42 {strides = array<i32>} : memref<512x128xf32, #tpu.memory_space<vmem>>, vector<512x128xf32>,
      %cst_33 = arith.constant 0.000000e+00 : f32
      %44 = vector.broadcast %cst_33 : f32 to vector<512x64xf32>
      %c0_34 = arith.constant 0 : index
      %c0_35 = arith.constant 0 : index
      %45 = vector.load %arg9[%c0_34, %c0_35] : memref<512x64xf32, #tpu.memory_space<vmem>>, vector<512x64xf32>
      tpu.vector_store %arg9[%c0_34, %c0_35], %44 {strides = array<i32>} : memref<512x64xf32, #tpu.memory_space<vmem>>, vector<512x64xf32>,
    } else {
    }
    %c0 = arith.constant 0 : index
    %c0_1 = arith.constant 0 : index
    %c0_2 = arith.constant 0 : index
    %3 = vector.load %arg3[%c0, %c0_1, %c0_2] : memref<1x512x64xbf16, #tpu.memory_space<vmem>>, vector<1x512x64xbf16>
    %4 = vector.shape_cast %3 : vector<1x512x64xbf16> to vector<512x64xbf16>
    %c0_3 = arith.constant 0 : index
    %c0_4 = arith.constant 0 : index
    %c0_5 = arith.constant 0 : index
    %5 = vector.load %arg4[%c0_3, %c0_4, %c0_5] : memref<1x512x64xbf16, #tpu.memory_space<vmem>>, vector<1x512x64xbf16>
    %6 = vector.shape_cast %5 : vector<1x512x64xbf16> to vector<512x64xbf16>
    %cst = arith.constant dense<0.000000e+00> : vector<512x512xf32>
    %7 = tpu.matmul %4, %6, %cst {dimension_numbers = #tpu.dot_dimension_numbers<[1], [1], [0], [0], [0, 0, 1, 0], [], []>} : vector<512x64xbf16>, vector<512x64xbf16>, vector<512x512xf32> -> vector<512x512xf32>
    %cst_6 = arith.constant 1.250000e-01 : f32
    %8 = vector.broadcast %cst_6 : f32 to vector<512x512xf32>
    %9 = arith.mulf %7, %8 : vector<512x512xf32>
    %c0_7 = arith.constant 0 : index
    %c0_8 = arith.constant 0 : index
    %10 = vector.load %arg7[%c0_7, %c0_8] : memref<512x128xf32, #tpu.memory_space<vmem>>, vector<512x128xf32>
    %c0_9 = arith.constant 0 : index
    %c0_10 = arith.constant 0 : index
    %11 = vector.load %arg8[%c0_9, %c0_10] : memref<512x128xf32, #tpu.memory_space<vmem>>, vector<512x128xf32>
    %cst_11 = arith.constant dense<0xFF800000> : vector<512xf32>
    %12 = vector.multi_reduction <maximumf>, %9, %cst_11 [1] : vector<512x512xf32> to vector<512xf32>
    %13 = vector.shape_cast %12 : vector<512xf32> to vector<512x1xf32>
    %14 = vector.broadcast %13 : vector<512x1xf32> to vector<512x128xf32>
    %15 = arith.maximumf %10, %14 : vector<512x128xf32>
    %16 = arith.subf %10, %15 : vector<512x128xf32>
    %17 = math.exp %16 : vector<512x128xf32>
    %18 = tpu.concatenate %15, %15, %15, %15 in 1 : vector<512x128xf32>, vector<512x128xf32>, vector<512x128xf32>, vector<512x128xf32> -> vector<512x512xf32>
    %19 = arith.subf %9, %18 : vector<512x512xf32>
    %20 = math.exp %19 : vector<512x512xf32>
    %cst_12 = arith.constant dense<0.000000e+00> : vector<512xf32>
    %21 = vector.multi_reduction <add>, %20, %cst_12 [1] : vector<512x512xf32> to vector<512xf32>
    %22 = vector.shape_cast %21 : vector<512xf32> to vector<512x1xf32>
    %23 = arith.mulf %17, %11 : vector<512x128xf32>
    %24 = vector.broadcast %22 : vector<512x1xf32> to vector<512x128xf32>
    %25 = arith.addf %23, %24 : vector<512x128xf32>
    %c0_13 = arith.constant 0 : index
    %c0_14 = arith.constant 0 : index
    %26 = vector.load %arg8[%c0_13, %c0_14] : memref<512x128xf32, #tpu.memory_space<vmem>>, vector<512x128xf32>
    tpu.vector_store %arg8[%c0_13, %c0_14], %25 {strides = array<i32>} : memref<512x128xf32, #tpu.memory_space<vmem>>, vector<512x128xf32>,
    %c0_15 = arith.constant 0 : index
    %c0_16 = arith.constant 0 : index
    %27 = vector.load %arg7[%c0_15, %c0_16] : memref<512x128xf32, #tpu.memory_space<vmem>>, vector<512x128xf32>
    tpu.vector_store %arg7[%c0_15, %c0_16], %15 {strides = array<i32>} : memref<512x128xf32, #tpu.memory_space<vmem>>, vector<512x128xf32>,
    %28 = arith.truncf %20 : vector<512x512xf32> to vector<512x512xbf16>
    %c0_17 = arith.constant 0 : index
    %c0_18 = arith.constant 0 : index
    %c0_19 = arith.constant 0 : index
    %29 = vector.load %arg5[%c0_17, %c0_18, %c0_19] : memref<1x512x64xbf16, #tpu.memory_space<vmem>>, vector<1x512x64xbf16>
    %30 = vector.shape_cast %29 : vector<1x512x64xbf16> to vector<512x64xbf16>
    %cst_20 = arith.constant dense<0.000000e+00> : vector<512x64xf32>
    %31 = tpu.matmul %28, %30, %cst_20 {dimension_numbers = #tpu.dot_dimension_numbers<[1], [0], [0], [1], [0, 0, 1, 1], [], []>} : vector<512x512xbf16>, vector<512x64xbf16>, vector<512x64xf32> -> vector<512x64xf32>
    %32 = vector.extract_strided_slice %17 {offsets = [0, 0], sizes = [512, 64], strides = [1, 1]} : vector<512x128xf32> to vector<512x64xf32>
    %c0_21 = arith.constant 0 : index
    %c0_22 = arith.constant 0 : index
    %33 = vector.load %arg9[%c0_21, %c0_22] : memref<512x64xf32, #tpu.memory_space<vmem>>, vector<512x64xf32>
    %34 = arith.mulf %32, %33 : vector<512x64xf32>
    %35 = arith.addf %34, %31 : vector<512x64xf32>
    %c0_23 = arith.constant 0 : index
    %c0_24 = arith.constant 0 : index
    %36 = vector.load %arg9[%c0_23, %c0_24] : memref<512x64xf32, #tpu.memory_space<vmem>>, vector<512x64xf32>
    tpu.vector_store %arg9[%c0_23, %c0_24], %35 {strides = array<i32>} : memref<512x64xf32, #tpu.memory_space<vmem>>, vector<512x64xf32>,
    %c0_i32_25 = arith.constant 0 : i32
    %37 = arith.cmpi eq, %arg2, %c0_i32_25 : i32
    %38 = arith.extui %37 : i1 to i32
    %c0_i32_26 = arith.constant 0 : i32
    %39 = arith.cmpi ne, %38, %c0_i32_26 : i32
    scf.if %39 {
      %c0_27 = arith.constant 0 : index
      %c0_28 = arith.constant 0 : index
      %40 = vector.load %arg8[%c0_27, %c0_28] : memref<512x128xf32, #tpu.memory_space<vmem>>, vector<512x128xf32>
      %41 = tpu.reciprocal %40 {approx = true} : vector<512x128xf32> -> vector<512x128xf32>
      %c0_29 = arith.constant 0 : index
      %c0_30 = arith.constant 0 : index
      %42 = vector.load %arg9[%c0_29, %c0_30] : memref<512x64xf32, #tpu.memory_space<vmem>>, vector<512x64xf32>
      %43 = vector.extract_strided_slice %41 {offsets = [0, 0], sizes = [512, 64], strides = [1, 1]} : vector<512x128xf32> to vector<512x64xf32>
      %44 = arith.mulf %42, %43 : vector<512x64xf32>
      %45 = arith.truncf %44 : vector<512x64xf32> to vector<512x64xbf16>
      %c0_31 = arith.constant 0 : index
      %c0_32 = arith.constant 0 : index
      %c0_33 = arith.constant 0 : index
      %46 = vector.load %arg6[%c0_31, %c0_32, %c0_33] : memref<1x512x64xbf16, #tpu.memory_space<vmem>>, vector<1x512x64xbf16>
      %47 = vector.shape_cast %46 : vector<1x512x64xbf16> to vector<512x64xbf16>
      %48 = vector.shape_cast %45 : vector<512x64xbf16> to vector<1x512x64xbf16>
      tpu.vector_store %arg6[%c0_31, %c0_32, %c0_33], %48 {strides = array<i32>} : memref<1x512x64xbf16, #tpu.memory_space<vmem>>, vector<1x512x64xbf16>,
    } else {
    }
    return
  }
  func.func @transform_0(%arg0: i32, %arg1: i32, %arg2: i32) -> (i32, i32, i32) {
    %c0_i32 = arith.constant 0 : i32
    %c0_i32_0 = arith.constant 0 : i32
    return %arg0, %arg1, %c0_i32 : i32, i32, i32
  }
  func.func @transform_1(%arg0: i32, %arg1: i32, %arg2: i32) -> (i32, i32, i32) {
    %c0_i32 = arith.constant 0 : i32
    %c0_i32_0 = arith.constant 0 : i32
    return %arg0, %arg2, %c0_i32 : i32, i32, i32
  }
  func.func @transform_2(%arg0: i32, %arg1: i32, %arg2: i32) -> (i32, i32, i32) {
    %c0_i32 = arith.constant 0 : i32
    %c0_i32_0 = arith.constant 0 : i32
    return %arg0, %arg2, %c0_i32 : i32, i32, i32
  }
  func.func @transform_3(%arg0: i32, %arg1: i32, %arg2: i32) -> (i32, i32, i32) {
    %c0_i32 = arith.constant 0 : i32
    %c0_i32_0 = arith.constant 0 : i32
    return %arg0, %arg1, %c0_i32 : i32, i32, i32
  }
}

</mosaic_0001>

<llo_original>
// kernel: tpu_custom_call.1
$region0: #{tpu_custom_call.1}
  #allocation0 [shape = 'u32[]', space=smem, size = 0x4, offset = 0x4, fixed_abs, tag = 'smem constant byte address 0x4 - core index']
  #allocation1 [shape = 'u32[72,128]{1,0:T(1,128)}', space=vmem, size = 0x9000, scoped, tag = 'internal scratch']
  #allocation2 [shape = 'f32[512,128]{1,0:T(8,128)}', space=vmem, size = 0x40000, scoped, tag = 'scratch operand']
  #allocation3 [shape = 'f32[512,128]{1,0:T(8,128)}', space=vmem, size = 0x40000, scoped, tag = 'scratch operand']
  #allocation4 [shape = 'f32[512,64]{1,0:T(8,128)}', space=vmem, size = 0x40000, scoped, tag = 'scratch operand']
  %s0 = inlined_call_operand.vmem [shape: bf16[4,512,64], index: 0, kind: input, shape index: {}]
  %s1 = inlined_call_operand.vmem [shape: bf16[4,512,64], index: 1, kind: input, shape index: {}]
  %s2 = inlined_call_operand.vmem [shape: bf16[4,512,64], index: 2, kind: input, shape index: {}]
  %s3 = inlined_call_operand.vmem [shape: bf16[4,512,64], index: 3, kind: output, shape index: {}]
  %s4 = sld [smem:[#allocation0]]
  $region53: #{tpu_custom_call.1} parent=0
    _
  %s6 = ssub.s32 1, %s4
  %s7 = scalar_select 0, %s6, %s4
  loop: start=0, step=1, limit=6
  $region2: #{tpu_custom_call.1} parent=0 // loop_pre_header
    _
  $region3: #{tpu_custom_call.1} parent=0 // loop_header
    %s9 = sphi 0, %s13
    %p10 = scmp.ge.s32.totalorder %s9, 6
    %s16 = sphi 0, %s35
    %s17 = sphi 0, %s31
    %s18 = sphi 0, %s27
    %s19 = sphi 0, %s16
    %s20 = sphi 0, %s17
    %s21 = sphi 0, %s18
    %s22 = sphi 0, %s19
    %s23 = sphi 0, %s20
    %s24 = sphi 0, %s21
    %s40 = sphi 0, %s42
    %s43 = sphi 0, %s40
    %s44 = sphi 0, %s43
    %s60 = sphi 0, %s44
    %s68 = sphi 0, %s70
    %s71 = sphi 0, %s68
    %s72 = sphi 0, %s71
    %s88 = sphi 0, %s72
    %s96 = sphi 0, %s98
    %s99 = sphi 0, %s96
    %s100 = sphi 0, %s99
    %s116 = sphi 0, %s100
    %s124 = sphi 0, %s126
    %s127 = sphi 0, %s124
    %s128 = sphi 0, %s127
    %s144 = sphi 0, %s128
  $region4: #{tpu_custom_call.1} parent=0 // loop_header_branch
    %12 = sbr.rel (%p10) target = $region8
  $region5: #{tpu_custom_call.1} parent=0 // loop_body
    %s14 = ssub.s32 %s9, 1
    %s15 = ssub.s32 %s9, 2
    %s25 = sadd.s32 1, %s18
    %p26 = scmp.ge.s32.totalorder %s25, 1
    %s27 = scalar_select %p26, 0, %s25
    %s28 = sadd.s32 1, %s17
    %s29 = scalar_select %p26, %s28, %s17
    %p30 = scmp.ge.s32.totalorder %s29, 1
    %s31 = scalar_select %p30, 0, %s29
    %s32 = sadd.s32 1, %s16
    %s33 = scalar_select %p30, %s32, %s16
    %p34 = scmp.ge.s32.totalorder %s33, 4
    %s35 = scalar_select %p34, 0, %s33
    %s36 = ssub.s32 %s16, %s35
    %s37 = ssub.s32 %s17, %s31
    %s38 = sor.u32 %s36, %s37
    %p39 = scmp.eq.s32.totalorder %s38, 0
    %s41 = sadd.s32 %s40, 1
    %s42 = scalar_select %p39, %s40, %s41
    %p45 = pneg %p39
    %p46 = scmp.eq.s32.totalorder %s9, 3
    %p47 = por %p45, %p46
    %p48 = scmp.ne.s32.totalorder %s40, %s43
    %p49 = scmp.eq.s32.totalorder %s9, 0
    %p50 = por %p48, %p49
    %p51 = scmp.ne.s32.totalorder %s40, %s43
    %p52 = scmp.eq.s32.totalorder %s14, 3
    %p53 = por %p51, %p52
    %p54 = scmp.ne.s32.totalorder %s43, %s44
    %p55 = scmp.eq.s32.totalorder %s14, 0
    %p56 = por %p54, %p55
    %p57 = scmp.ne.s32.totalorder %s43, %s44
    %p58 = scmp.eq.s32.totalorder %s15, 3
    %p59 = por %p57, %p58
    %p61 = scmp.ne.s32.totalorder %s44, %s60
    %p62 = scmp.eq.s32.totalorder %s15, 0
    %p63 = por %p61, %p62
    %s64 = ssub.s32 %s16, %s35
    %s65 = ssub.s32 %s18, %s27
    %s66 = sor.u32 %s64, %s65
    %p67 = scmp.eq.s32.totalorder %s66, 0
    %s69 = sadd.s32 %s68, 1
    %s70 = scalar_select %p67, %s68, %s69
    %p73 = pneg %p67
    %p74 = scmp.eq.s32.totalorder %s9, 3
    %p75 = por %p73, %p74
    %p76 = scmp.ne.s32.totalorder %s68, %s71
    %p77 = scmp.eq.s32.totalorder %s9, 0
    %p78 = por %p76, %p77
    %p79 = scmp.ne.s32.totalorder %s68, %s71
    %p80 = scmp.eq.s32.totalorder %s14, 3
    %p81 = por %p79, %p80
    %p82 = scmp.ne.s32.totalorder %s71, %s72
    %p83 = scmp.eq.s32.totalorder %s14, 0
    %p84 = por %p82, %p83
    %p85 = scmp.ne.s32.totalorder %s71, %s72
    %p86 = scmp.eq.s32.totalorder %s15, 3
    %p87 = por %p85, %p86
    %p89 = scmp.ne.s32.totalorder %s72, %s88
    %p90 = scmp.eq.s32.totalorder %s15, 0
    %p91 = por %p89, %p90
    %s92 = ssub.s32 %s16, %s35
    %s93 = ssub.s32 %s18, %s27
    %s94 = sor.u32 %s92, %s93
    %p95 = scmp.eq.s32.totalorder %s94, 0
    %s97 = sadd.s32 %s96, 1
    %s98 = scalar_select %p95, %s96, %s97
    %p101 = pneg %p95
    %p102 = scmp.eq.s32.totalorder %s9, 3
    %p103 = por %p101, %p102
    %p104 = scmp.ne.s32.totalorder %s96, %s99
    %p105 = scmp.eq.s32.totalorder %s9, 0
    %p106 = por %p104, %p105
    %p107 = scmp.ne.s32.totalorder %s96, %s99
    %p108 = scmp.eq.s32.totalorder %s14, 3
    %p109 = por %p107, %p108
    %p110 = scmp.ne.s32.totalorder %s99, %s100
    %p111 = scmp.eq.s32.totalorder %s14, 0
    %p112 = por %p110, %p111
    %p113 = scmp.ne.s32.totalorder %s99, %s100
    %p114 = scmp.eq.s32.totalorder %s15, 3
    %p115 = por %p113, %p114
    %p117 = scmp.ne.s32.totalorder %s100, %s116
    %p118 = scmp.eq.s32.totalorder %s15, 0
    %p119 = por %p117, %p118
    %s120 = ssub.s32 %s16, %s35
    %s121 = ssub.s32 %s17, %s31
    %s122 = sor.u32 %s120, %s121
    %p123 = scmp.eq.s32.totalorder %s122, 0
    %s125 = sadd.s32 %s124, 1
    %s126 = scalar_select %p123, %s124, %s125
    %p129 = pneg %p123
    %p130 = scmp.eq.s32.totalorder %s9, 3
    %p131 = por %p129, %p130
    %p132 = scmp.ne.s32.totalorder %s124, %s127
    %p133 = scmp.eq.s32.totalorder %s9, 0
    %p134 = por %p132, %p133
    %p135 = scmp.ne.s32.totalorder %s124, %s127
    %p136 = scmp.eq.s32.totalorder %s14, 3
    %p137 = por %p135, %p136
    %p138 = scmp.ne.s32.totalorder %s127, %s128
    %p139 = scmp.eq.s32.totalorder %s14, 0
    %p140 = por %p138, %p139
    %p141 = scmp.ne.s32.totalorder %s127, %s128
    %p142 = scmp.eq.s32.totalorder %s15, 3
    %p143 = por %p141, %p142
    %p145 = scmp.ne.s32.totalorder %s128, %s144
    %p146 = scmp.eq.s32.totalorder %s15, 0
    %p147 = por %p145, %p146
    %p148 = scmp.le.s32.totalorder 1, %s9
    %p149 = scmp.lt.s32.totalorder %s9, 5
    %p150 = pnand %p148, %p149
    %p151 = pneg %p150
    // Predicated region
    $region9: #{tpu_custom_call.1} parent=5 // pred_check
      _
    $region10: #{tpu_custom_call.1} parent=5 // pred_check_branch
      %153 = sbr.rel (%p150) target = $region12
    $region11: #{tpu_custom_call.1} parent=5 // pred_region
      %s154 = ssub.s32 %s9, 1
    $region12: #{tpu_custom_call.1} parent=5 // pred_fallthru
      _
    %p155 = scmp.lt.s32.totalorder %s9, 4
    // Predicated region
    $region13: #{tpu_custom_call.1} parent=5 // pred_check
      %p156 = pneg %p155
    $region14: #{tpu_custom_call.1} parent=5 // pred_check_branch
      %158 = sbr.rel (%p156) target = $region16
    $region15: #{tpu_custom_call.1} parent=5 // pred_region
      // Predicated region
      $region17: #{tpu_custom_call.1} parent=15 // pred_check
        %p159 = pneg %p50
      $region18: #{tpu_custom_call.1} parent=15 // pred_check_branch
        %161 = sbr.rel (%p159) target = $region20
      $region19: #{tpu_custom_call.1} parent=15 // pred_region
        %s162 = smul.u32 64, %s17
        %p163 = scmp.lt.s32.totalorder %s16, 3
        %s164 = scalar_select %p163, %s16, 3
        %p165 = scmp.lt.s32.totalorder %s162, 63
        %s166 = scalar_select %p165, %s162, 63
        %s167 = smul.addr %s164, 64
        %s168 = sadd.s32 %s166, %s167
        %s169 = smul.addr %s168, 4
        %s170 = scalar_lea.vmem %s0, %s169
        %s171 = smul.u32 64, %s17
      $region20: #{tpu_custom_call.1} parent=15 // pred_fallthru
        _
      // Predicated region
      $region21: #{tpu_custom_call.1} parent=15 // pred_check
        %p172 = pneg %p78
      $region22: #{tpu_custom_call.1} parent=15 // pred_check_branch
        %174 = sbr.rel (%p172) target = $region24
      $region23: #{tpu_custom_call.1} parent=15 // pred_region
        %s175 = smul.u32 64, %s18
        %p176 = scmp.lt.s32.totalorder %s16, 3
        %s177 = scalar_select %p176, %s16, 3
        %p178 = scmp.lt.s32.totalorder %s175, 63
        %s179 = scalar_select %p178, %s175, 63
        %s180 = smul.addr %s177, 64
        %s181 = sadd.s32 %s179, %s180
        %s182 = smul.addr %s181, 4
        %s183 = scalar_lea.vmem %s1, %s182
        %s184 = smul.u32 64, %s18
      $region24: #{tpu_custom_call.1} parent=15 // pred_fallthru
        _
      // Predicated region
      $region25: #{tpu_custom_call.1} parent=15 // pred_check
        %p185 = pneg %p106
      $region26: #{tpu_custom_call.1} parent=15 // pred_check_branch
        %187 = sbr.rel (%p185) target = $region28
      $region27: #{tpu_custom_call.1} parent=15 // pred_region
        %s188 = smul.u32 64, %s18
        %p189 = scmp.lt.s32.totalorder %s16, 3
        %s190 = scalar_select %p189, %s16, 3
        %p191 = scmp.lt.s32.totalorder %s188, 63
        %s192 = scalar_select %p191, %s188, 63
        %s193 = smul.addr %s190, 64
        %s194 = sadd.s32 %s192, %s193
        %s195 = smul.addr %s194, 4
        %s196 = scalar_lea.vmem %s2, %s195
        %s197 = smul.u32 64, %s18
      $region28: #{tpu_custom_call.1} parent=15 // pred_fallthru
        _
    $region16: #{tpu_custom_call.1} parent=5 // pred_fallthru
      _
    %p198 = scmp.le.s32.totalorder 1, %s9
    %p199 = scmp.lt.s32.totalorder %s9, 5
    %p200 = pnand %p198, %p199
    %p201 = pneg %p200
    // Predicated region
    $region29: #{tpu_custom_call.1} parent=5 // pred_check
      _
    $region30: #{tpu_custom_call.1} parent=5 // pred_check_branch
      %203 = sbr.rel (%p200) target = $region32
    $region31: #{tpu_custom_call.1} parent=5 // pred_region
      %s204 = ssub.s32 %s9, 1
      %s205 = smul.u32 64, %s20
      %p206 = scmp.lt.s32.totalorder %s19, 3
      %s207 = scalar_select %p206, %s19, 3
      %p208 = scmp.lt.s32.totalorder %s205, 63
      %s209 = scalar_select %p208, %s205, 63
      %s210 = smul.addr %s207, 64
      %s211 = sadd.s32 %s209, %s210
      %s212 = smul.addr %s211, 4
      %s213 = scalar_lea.vmem %s0, %s212
      %p214 = pneg %p56
      %p215 = pneg %p53
      %s216 = smul.u32 64, %s21
      %p217 = scmp.lt.s32.totalorder %s19, 3
      %s218 = scalar_select %p217, %s19, 3
      %p219 = scmp.lt.s32.totalorder %s216, 63
      %s220 = scalar_select %p219, %s216, 63
      %s221 = smul.addr %s218, 64
      %s222 = sadd.s32 %s220, %s221
      %s223 = smul.addr %s222, 4
      %s224 = scalar_lea.vmem %s1, %s223
      %p225 = pneg %p84
      %p226 = pneg %p81
      %s227 = smul.u32 64, %s21
      %p228 = scmp.lt.s32.totalorder %s19, 3
      %s229 = scalar_select %p228, %s19, 3
      %p230 = scmp.lt.s32.totalorder %s227, 63
      %s231 = scalar_select %p230, %s227, 63
      %s232 = smul.addr %s229, 64
      %s233 = sadd.s32 %s231, %s232
      %s234 = smul.addr %s233, 4
      %s235 = scalar_lea.vmem %s2, %s234
      %p236 = pneg %p112
      %p237 = pneg %p109
      %p238 = pneg %p140
      %p239 = pneg %p137
      %s240 = smul.u32 64, %s20
      %p241 = scmp.lt.s32.totalorder %s19, 3
      %s242 = scalar_select %p241, %s19, 3
      %p243 = scmp.lt.s32.totalorder %s240, 63
      %s244 = scalar_select %p243, %s240, 63
      %s245 = smul.addr %s242, 64
      %s246 = sadd.s32 %s244, %s245
      %s247 = smul.addr %s246, 4
      %s248 = scalar_lea.vmem %s3, %s247
      %s249 = smul.u32 64, %s20
      %p250 = scmp.lt.s32.totalorder %s19, 3
      %s251 = scalar_select %p250, %s19, 3
      %p252 = scmp.lt.s32.totalorder %s249, 63
      %s253 = scalar_select %p252, %s249, 63
      %s254 = smul.addr %s251, 64
      %s255 = sadd.s32 %s253, %s254
      %s256 = smul.addr %s255, 4
      %s257 = scalar_lea.vmem %s0, %s256
      %s258 = smul.u32 64, %s20
      %s259 = smul.u32 64, %s21
      %p260 = scmp.lt.s32.totalorder %s19, 3
      %s261 = scalar_select %p260, %s19, 3
      %p262 = scmp.lt.s32.totalorder %s259, 63
      %s263 = scalar_select %p262, %s259, 63
      %s264 = smul.addr %s261, 64
      %s265 = sadd.s32 %s263, %s264
      %s266 = smul.addr %s265, 4
      %s267 = scalar_lea.vmem %s1, %s266
      %s268 = smul.u32 64, %s21
      %s269 = smul.u32 64, %s21
      %p270 = scmp.lt.s32.totalorder %s19, 3
      %s271 = scalar_select %p270, %s19, 3
      %p272 = scmp.lt.s32.totalorder %s269, 63
      %s273 = scalar_select %p272, %s269, 63
      %s274 = smul.addr %s271, 64
      %s275 = sadd.s32 %s273, %s274
      %s276 = smul.addr %s275, 4
      %s277 = scalar_lea.vmem %s2, %s276
      %s278 = smul.u32 64, %s21
      %s279 = smul.u32 64, %s20
      %p280 = scmp.lt.s32.totalorder %s19, 3
      %s281 = scalar_select %p280, %s19, 3
      %p282 = scmp.lt.s32.totalorder %s279, 63
      %s283 = scalar_select %p282, %s279, 63
      %s284 = smul.addr %s281, 64
      %s285 = sadd.s32 %s283, %s284
      %s286 = smul.addr %s285, 4
      %s287 = scalar_lea.vmem %s3, %s286
      %s288 = smul.u32 64, %s20
      %p289 = scmp.eq.s32.totalorder %s21, 0
      // Predicated region
      $region33: #{tpu_custom_call.1} parent=31 // pred_check
        %p290 = pneg %p289
      $region34: #{tpu_custom_call.1} parent=31 // pred_check_branch
        %292 = sbr.rel (%p290) target = $region36
      $region35: #{tpu_custom_call.1} parent=31 // pred_region
        %293 = vst [vmem:[#allocation2] sm:$0xff] -1e+30
        %294 = vst [vmem:[#allocation2 + $0x8] sm:$0xff] -1e+30
        %295 = vst [vmem:[#allocation2 + $0x10] sm:$0xff] -1e+30
        %296 = vst [vmem:[#allocation2 + $0x18] sm:$0xff] -1e+30
        %297 = vst [vmem:[#allocation2 + $0x20] sm:$0xff] -1e+30
        %298 = vst [vmem:[#allocation2 + $0x28] sm:$0xff] -1e+30
        %299 = vst [vmem:[#allocation2 + $0x30] sm:$0xff] -1e+30
        %300 = vst [vmem:[#allocation2 + $0x38] sm:$0xff] -1e+30
        %301 = vst [vmem:[#allocation2 + $0x40] sm:$0xff] -1e+30
        %302 = vst [vmem:[#allocation2 + $0x48] sm:$0xff] -1e+30
        %303 = vst [vmem:[#allocation2 + $0x50] sm:$0xff] -1e+30
        %304 = vst [vmem:[#allocation2 + $0x58] sm:$0xff] -1e+30
        %305 = vst [vmem:[#allocation2 + $0x60] sm:$0xff] -1e+30
        %306 = vst [vmem:[#allocation2 + $0x68] sm:$0xff] -1e+30
        %307 = vst [vmem:[#allocation2 + $0x70] sm:$0xff] -1e+30
        %308 = vst [vmem:[#allocation2 + $0x78] sm:$0xff] -1e+30
        %309 = vst [vmem:[#allocation2 + $0x80] sm:$0xff] -1e+30
        %310 = vst [vmem:[#allocation2 + $0x88] sm:$0xff] -1e+30
        %311 = vst [vmem:[#allocation2 + $0x90] sm:$0xff] -1e+30
        %312 = vst [vmem:[#allocation2 + $0x98] sm:$0xff] -1e+30
        %313 = vst [vmem:[#allocation2 + $0xa0] sm:$0xff] -1e+30
        %314 = vst [vmem:[#allocation2 + $0xa8] sm:$0xff] -1e+30
        %315 = vst [vmem:[#allocation2 + $0xb0] sm:$0xff] -1e+30
        %316 = vst [vmem:[#allocation2 + $0xb8] sm:$0xff] -1e+30
        %317 = vst [vmem:[#allocation2 + $0xc0] sm:$0xff] -1e+30
        %318 = vst [vmem:[#allocation2 + $0xc8] sm:$0xff] -1e+30
        %319 = vst [vmem:[#allocation2 + $0xd0] sm:$0xff] -1e+30
        %320 = vst [vmem:[#allocation2 + $0xd8] sm:$0xff] -1e+30
        %321 = vst [vmem:[#allocation2 + $0xe0] sm:$0xff] -1e+30
        %322 = vst [vmem:[#allocation2 + $0xe8] sm:$0xff] -1e+30
        %323 = vst [vmem:[#allocation2 + $0xf0] sm:$0xff] -1e+30
        %324 = vst [vmem:[#allocation2 + $0xf8] sm:$0xff] -1e+30
        %325 = vst [vmem:[#allocation2 + $0x100] sm:$0xff] -1e+30
        %326 = vst [vmem:[#allocation2 + $0x108] sm:$0xff] -1e+30
        %327 = vst [vmem:[#allocation2 + $0x110] sm:$0xff] -1e+30
        %328 = vst [vmem:[#allocation2 + $0x118] sm:$0xff] -1e+30
        %329 = vst [vmem:[#allocation2 + $0x120] sm:$0xff] -1e+30
        %330 = vst [vmem:[#allocation2 + $0x128] sm:$0xff] -1e+30
        %331 = vst [vmem:[#allocation2 + $0x130] sm:$0xff] -1e+30
        %332 = vst [vmem:[#allocation2 + $0x138] sm:$0xff] -1e+30
        %333 = vst [vmem:[#allocation2 + $0x140] sm:$0xff] -1e+30
        %334 = vst [vmem:[#allocation2 + $0x148] sm:$0xff] -1e+30
        %335 = vst [vmem:[#allocation2 + $0x150] sm:$0xff] -1e+30
        %336 = vst [vmem:[#allocation2 + $0x158] sm:$0xff] -1e+30
        %337 = vst [vmem:[#allocation2 + $0x160] sm:$0xff] -1e+30
        %338 = vst [vmem:[#allocation2 + $0x168] sm:$0xff] -1e+30
        %339 = vst [vmem:[#allocation2 + $0x170] sm:$0xff] -1e+30
        %340 = vst [vmem:[#allocation2 + $0x178] sm:$0xff] -1e+30
        %341 = vst [vmem:[#allocation2 + $0x180] sm:$0xff] -1e+30
        %342 = vst [vmem:[#allocation2 + $0x188] sm:$0xff] -1e+30
        %343 = vst [vmem:[#allocation2 + $0x190] sm:$0xff] -1e+30
        %344 = vst [vmem:[#allocation2 + $0x198] sm:$0xff] -1e+30
        %345 = vst [vmem:[#allocation2 + $0x1a0] sm:$0xff] -1e+30
        %346 = vst [vmem:[#allocation2 + $0x1a8] sm:$0xff] -1e+30
        %347 = vst [vmem:[#allocation2 + $0x1b0] sm:$0xff] -1e+30
        %348 = vst [vmem:[#allocation2 + $0x1b8] sm:$0xff] -1e+30
        %349 = vst [vmem:[#allocation2 + $0x1c0] sm:$0xff] -1e+30
        %350 = vst [vmem:[#allocation2 + $0x1c8] sm:$0xff] -1e+30
        %351 = vst [vmem:[#allocation2 + $0x1d0] sm:$0xff] -1e+30
        %352 = vst [vmem:[#allocation2 + $0x1d8] sm:$0xff] -1e+30
        %353 = vst [vmem:[#allocation2 + $0x1e0] sm:$0xff] -1e+30
        %354 = vst [vmem:[#allocation2 + $0x1e8] sm:$0xff] -1e+30
        %355 = vst [vmem:[#allocation2 + $0x1f0] sm:$0xff] -1e+30
        %356 = vst [vmem:[#allocation2 + $0x1f8] sm:$0xff] -1e+30
        %357 = vst [vmem:[#allocation3] sm:$0xff] 0.0
        %358 = vst [vmem:[#allocation3 + $0x8] sm:$0xff] 0.0
        %359 = vst [vmem:[#allocation3 + $0x10] sm:$0xff] 0.0
        %360 = vst [vmem:[#allocation3 + $0x18] sm:$0xff] 0.0
        %361 = vst [vmem:[#allocation3 + $0x20] sm:$0xff] 0.0
        %362 = vst [vmem:[#allocation3 + $0x28] sm:$0xff] 0.0
        %363 = vst [vmem:[#allocation3 + $0x30] sm:$0xff] 0.0
        %364 = vst [vmem:[#allocation3 + $0x38] sm:$0xff] 0.0
        %365 = vst [vmem:[#allocation3 + $0x40] sm:$0xff] 0.0
        %366 = vst [vmem:[#allocation3 + $0x48] sm:$0xff] 0.0
        %367 = vst [vmem:[#allocation3 + $0x50] sm:$0xff] 0.0
        %368 = vst [vmem:[#allocation3 + $0x58] sm:$0xff] 0.0
        %369 = vst [vmem:[#allocation3 + $0x60] sm:$0xff] 0.0
        %370 = vst [vmem:[#allocation3 + $0x68] sm:$0xff] 0.0
        %371 = vst [vmem:[#allocation3 + $0x70] sm:$0xff] 0.0
        %372 = vst [vmem:[#allocation3 + $0x78] sm:$0xff] 0.0
        %373 = vst [vmem:[#allocation3 + $0x80] sm:$0xff] 0.0
        %374 = vst [vmem:[#allocation3 + $0x88] sm:$0xff] 0.0
        %375 = vst [vmem:[#allocation3 + $0x90] sm:$0xff] 0.0
        %376 = vst [vmem:[#allocation3 + $0x98] sm:$0xff] 0.0
        %377 = vst [vmem:[#allocation3 + $0xa0] sm:$0xff] 0.0
        %378 = vst [vmem:[#allocation3 + $0xa8] sm:$0xff] 0.0
        %379 = vst [vmem:[#allocation3 + $0xb0] sm:$0xff] 0.0
        %380 = vst [vmem:[#allocation3 + $0xb8] sm:$0xff] 0.0
        %381 = vst [vmem:[#allocation3 + $0xc0] sm:$0xff] 0.0
        %382 = vst [vmem:[#allocation3 + $0xc8] sm:$0xff] 0.0
        %383 = vst [vmem:[#allocation3 + $0xd0] sm:$0xff] 0.0
        %384 = vst [vmem:[#allocation3 + $0xd8] sm:$0xff] 0.0
        %385 = vst [vmem:[#allocation3 + $0xe0] sm:$0xff] 0.0
        %386 = vst [vmem:[#allocation3 + $0xe8] sm:$0xff] 0.0
        %387 = vst [vmem:[#allocation3 + $0xf0] sm:$0xff] 0.0
        %388 = vst [vmem:[#allocation3 + $0xf8] sm:$0xff] 0.0
        %389 = vst [vmem:[#allocation3 + $0x100] sm:$0xff] 0.0
        %390 = vst [vmem:[#allocation3 + $0x108] sm:$0xff] 0.0
        %391 = vst [vmem:[#allocation3 + $0x110] sm:$0xff] 0.0
        %392 = vst [vmem:[#allocation3 + $0x118] sm:$0xff] 0.0
        %393 = vst [vmem:[#allocation3 + $0x120] sm:$0xff] 0.0
        %394 = vst [vmem:[#allocation3 + $0x128] sm:$0xff] 0.0
        %395 = vst [vmem:[#allocation3 + $0x130] sm:$0xff] 0.0
        %396 = vst [vmem:[#allocation3 + $0x138] sm:$0xff] 0.0
        %397 = vst [vmem:[#allocation3 + $0x140] sm:$0xff] 0.0
        %398 = vst [vmem:[#allocation3 + $0x148] sm:$0xff] 0.0
        %399 = vst [vmem:[#allocation3 + $0x150] sm:$0xff] 0.0
        %400 = vst [vmem:[#allocation3 + $0x158] sm:$0xff] 0.0
        %401 = vst [vmem:[#allocation3 + $0x160] sm:$0xff] 0.0
        %402 = vst [vmem:[#allocation3 + $0x168] sm:$0xff] 0.0
        %403 = vst [vmem:[#allocation3 + $0x170] sm:$0xff] 0.0
        %404 = vst [vmem:[#allocation3 + $0x178] sm:$0xff] 0.0
        %405 = vst [vmem:[#allocation3 + $0x180] sm:$0xff] 0.0
        %406 = vst [vmem:[#allocation3 + $0x188] sm:$0xff] 0.0
        %407 = vst [vmem:[#allocation3 + $0x190] sm:$0xff] 0.0
        %408 = vst [vmem:[#allocation3 + $0x198] sm:$0xff] 0.0
        %409 = vst [vmem:[#allocation3 + $0x1a0] sm:$0xff] 0.0
        %410 = vst [vmem:[#allocation3 + $0x1a8] sm:$0xff] 0.0
        %411 = vst [vmem:[#allocation3 + $0x1b0] sm:$0xff] 0.0
        %412 = vst [vmem:[#allocation3 + $0x1b8] sm:$0xff] 0.0
        %413 = vst [vmem:[#allocation3 + $0x1c0] sm:$0xff] 0.0
        %414 = vst [vmem:[#allocation3 + $0x1c8] sm:$0xff] 0.0
        %415 = vst [vmem:[#allocation3 + $0x1d0] sm:$0xff] 0.0
        %416 = vst [vmem:[#allocation3 + $0x1d8] sm:$0xff] 0.0
        %417 = vst [vmem:[#allocation3 + $0x1e0] sm:$0xff] 0.0
        %418 = vst [vmem:[#allocation3 + $0x1e8] sm:$0xff] 0.0
        %419 = vst [vmem:[#allocation3 + $0x1f0] sm:$0xff] 0.0
        %420 = vst [vmem:[#allocation3 + $0x1f8] sm:$0xff] 0.0
        %vm421 = vcmask 523264
        %422 = vst.msk [vmem:[#allocation4] sm:$0xff] %vm421, 0.0
        %423 = vst.msk [vmem:[#allocation4 + $0x8] sm:$0xff] %vm421, 0.0
        %424 = vst.msk [vmem:[#allocation4 + $0x10] sm:$0xff] %vm421, 0.0
        %425 = vst.msk [vmem:[#allocation4 + $0x18] sm:$0xff] %vm421, 0.0
        %426 = vst.msk [vmem:[#allocation4 + $0x20] sm:$0xff] %vm421, 0.0
        %427 = vst.msk [vmem:[#allocation4 + $0x28] sm:$0xff] %vm421, 0.0
        %428 = vst.msk [vmem:[#allocation4 + $0x30] sm:$0xff] %vm421, 0.0
        %429 = vst.msk [vmem:[#allocation4 + $0x38] sm:$0xff] %vm421, 0.0
        %430 = vst.msk [vmem:[#allocation4 + $0x40] sm:$0xff] %vm421, 0.0
        %431 = vst.msk [vmem:[#allocation4 + $0x48] sm:$0xff] %vm421, 0.0
        %432 = vst.msk [vmem:[#allocation4 + $0x50] sm:$0xff] %vm421, 0.0
        %433 = vst.msk [vmem:[#allocation4 + $0x58] sm:$0xff] %vm421, 0.0
        %434 = vst.msk [vmem:[#allocation4 + $0x60] sm:$0xff] %vm421, 0.0
        %435 = vst.msk [vmem:[#allocation4 + $0x68] sm:$0xff] %vm421, 0.0
        %436 = vst.msk [vmem:[#allocation4 + $0x70] sm:$0xff] %vm421, 0.0
        %437 = vst.msk [vmem:[#allocation4 + $0x78] sm:$0xff] %vm421, 0.0
        %438 = vst.msk [vmem:[#allocation4 + $0x80] sm:$0xff] %vm421, 0.0
        %439 = vst.msk [vmem:[#allocation4 + $0x88] sm:$0xff] %vm421, 0.0
        %440 = vst.msk [vmem:[#allocation4 + $0x90] sm:$0xff] %vm421, 0.0
        %441 = vst.msk [vmem:[#allocation4 + $0x98] sm:$0xff] %vm421, 0.0
        %442 = vst.msk [vmem:[#allocation4 + $0xa0] sm:$0xff] %vm421, 0.0
        %443 = vst.msk [vmem:[#allocation4 + $0xa8] sm:$0xff] %vm421, 0.0
        %444 = vst.msk [vmem:[#allocation4 + $0xb0] sm:$0xff] %vm421, 0.0
        %445 = vst.msk [vmem:[#allocation4 + $0xb8] sm:$0xff] %vm421, 0.0
        %446 = vst.msk [vmem:[#allocation4 + $0xc0] sm:$0xff] %vm421, 0.0
        %447 = vst.msk [vmem:[#allocation4 + $0xc8] sm:$0xff] %vm421, 0.0
        %448 = vst.msk [vmem:[#allocation4 + $0xd0] sm:$0xff] %vm421, 0.0
        %449 = vst.msk [vmem:[#allocation4 + $0xd8] sm:$0xff] %vm421, 0.0
        %450 = vst.msk [vmem:[#allocation4 + $0xe0] sm:$0xff] %vm421, 0.0
        %451 = vst.msk [vmem:[#allocation4 + $0xe8] sm:$0xff] %vm421, 0.0
        %452 = vst.msk [vmem:[#allocation4 + $0xf0] sm:$0xff] %vm421, 0.0
        %453 = vst.msk [vmem:[#allocation4 + $0xf8] sm:$0xff] %vm421, 0.0
        %454 = vst.msk [vmem:[#allocation4 + $0x100] sm:$0xff] %vm421, 0.0
        %455 = vst.msk [vmem:[#allocation4 + $0x108] sm:$0xff] %vm421, 0.0
        %456 = vst.msk [vmem:[#allocation4 + $0x110] sm:$0xff] %vm421, 0.0
        %457 = vst.msk [vmem:[#allocation4 + $0x118] sm:$0xff] %vm421, 0.0
        %458 = vst.msk [vmem:[#allocation4 + $0x120] sm:$0xff] %vm421, 0.0
        %459 = vst.msk [vmem:[#allocation4 + $0x128] sm:$0xff] %vm421, 0.0
        %460 = vst.msk [vmem:[#allocation4 + $0x130] sm:$0xff] %vm421, 0.0
        %461 = vst.msk [vmem:[#allocation4 + $0x138] sm:$0xff] %vm421, 0.0
        %462 = vst.msk [vmem:[#allocation4 + $0x140] sm:$0xff] %vm421, 0.0
        %463 = vst.msk [vmem:[#allocation4 + $0x148] sm:$0xff] %vm421, 0.0
        %464 = vst.msk [vmem:[#allocation4 + $0x150] sm:$0xff] %vm421, 0.0
        %465 = vst.msk [vmem:[#allocation4 + $0x158] sm:$0xff] %vm421, 0.0
        %466 = vst.msk [vmem:[#allocation4 + $0x160] sm:$0xff] %vm421, 0.0
        %467 = vst.msk [vmem:[#allocation4 + $0x168] sm:$0xff] %vm421, 0.0
        %468 = vst.msk [vmem:[#allocation4 + $0x170] sm:$0xff] %vm421, 0.0
        %469 = vst.msk [vmem:[#allocation4 + $0x178] sm:$0xff] %vm421, 0.0
        %470 = vst.msk [vmem:[#allocation4 + $0x180] sm:$0xff] %vm421, 0.0
        %471 = vst.msk [vmem:[#allocation4 + $0x188] sm:$0xff] %vm421, 0.0
        %472 = vst.msk [vmem:[#allocation4 + $0x190] sm:$0xff] %vm421, 0.0
        %473 = vst.msk [vmem:[#allocation4 + $0x198] sm:$0xff] %vm421, 0.0
        %474 = vst.msk [vmem:[#allocation4 + $0x1a0] sm:$0xff] %vm421, 0.0
        %475 = vst.msk [vmem:[#allocation4 + $0x1a8] sm:$0xff] %vm421, 0.0
        %476 = vst.msk [vmem:[#allocation4 + $0x1b0] sm:$0xff] %vm421, 0.0
        %477 = vst.msk [vmem:[#allocation4 + $0x1b8] sm:$0xff] %vm421, 0.0
        %478 = vst.msk [vmem:[#allocation4 + $0x1c0] sm:$0xff] %vm421, 0.0
        %479 = vst.msk [vmem:[#allocation4 + $0x1c8] sm:$0xff] %vm421, 0.0
        %480 = vst.msk [vmem:[#allocation4 + $0x1d0] sm:$0xff] %vm421, 0.0
        %481 = vst.msk [vmem:[#allocation4 + $0x1d8] sm:$0xff] %vm421, 0.0
        %482 = vst.msk [vmem:[#allocation4 + $0x1e0] sm:$0xff] %vm421, 0.0
        %483 = vst.msk [vmem:[#allocation4 + $0x1e8] sm:$0xff] %vm421, 0.0
        %484 = vst.msk [vmem:[#allocation4 + $0x1f0] sm:$0xff] %vm421, 0.0
        %485 = vst.msk [vmem:[#allocation4 + $0x1f8] sm:$0xff] %vm421, 0.0
      $region36: #{tpu_custom_call.1} parent=31 // pred_fallthru
        _
      %v486 = vld [vmem:[%s257] sm:$0xf]
      %v487 = vld [vmem:[%s257 + $0x4] sm:$0xf]
      %v488 = vld [vmem:[%s257 + $0x8] sm:$0xf]
      %v489 = vld [vmem:[%s257 + $0xc] sm:$0xf]
      %v490 = vld [vmem:[%s257 + $0x10] sm:$0xf]
      %v491 = vld [vmem:[%s257 + $0x14] sm:$0xf]
      %v492 = vld [vmem:[%s257 + $0x18] sm:$0xf]
      %v493 = vld [vmem:[%s257 + $0x1c] sm:$0xf]
      %v494 = vld [vmem:[%s257 + $0x20] sm:$0xf]
      %v495 = vld [vmem:[%s257 + $0x24] sm:$0xf]
      %v496 = vld [vmem:[%s257 + $0x28] sm:$0xf]
      %v497 = vld [vmem:[%s257 + $0x2c] sm:$0xf]
      %v498 = vld [vmem:[%s257 + $0x30] sm:$0xf]
      %v499 = vld [vmem:[%s257 + $0x34] sm:$0xf]
      %v500 = vld [vmem:[%s257 + $0x38] sm:$0xf]
      %v501 = vld [vmem:[%s257 + $0x3c] sm:$0xf]
      %v502 = vld [vmem:[%s257 + $0x40] sm:$0xf]
      %v503 = vld [vmem:[%s257 + $0x44] sm:$0xf]
      %v504 = vld [vmem:[%s257 + $0x48] sm:$0xf]
      %v505 = vld [vmem:[%s257 + $0x4c] sm:$0xf]
      %v506 = vld [vmem:[%s257 + $0x50] sm:$0xf]
      %v507 = vld [vmem:[%s257 + $0x54] sm:$0xf]
      %v508 = vld [vmem:[%s257 + $0x58] sm:$0xf]
      %v509 = vld [vmem:[%s257 + $0x5c] sm:$0xf]
      %v510 = vld [vmem:[%s257 + $0x60] sm:$0xf]
      %v511 = vld [vmem:[%s257 + $0x64] sm:$0xf]
      %v512 = vld [vmem:[%s257 + $0x68] sm:$0xf]
      %v513 = vld [vmem:[%s257 + $0x6c] sm:$0xf]
      %v514 = vld [vmem:[%s257 + $0x70] sm:$0xf]
      %v515 = vld [vmem:[%s257 + $0x74] sm:$0xf]
      %v516 = vld [vmem:[%s257 + $0x78] sm:$0xf]
      %v517 = vld [vmem:[%s257 + $0x7c] sm:$0xf]
      %v518 = vld [vmem:[%s257 + $0x80] sm:$0xf]
      %v519 = vld [vmem:[%s257 + $0x84] sm:$0xf]
      %v520 = vld [vmem:[%s257 + $0x88] sm:$0xf]
      %v521 = vld [vmem:[%s257 + $0x8c] sm:$0xf]
      %v522 = vld [vmem:[%s257 + $0x90] sm:$0xf]
      %v523 = vld [vmem:[%s257 + $0x94] sm:$0xf]
      %v524 = vld [vmem:[%s257 + $0x98] sm:$0xf]
      %v525 = vld [vmem:[%s257 + $0x9c] sm:$0xf]
      %v526 = vld [vmem:[%s257 + $0xa0] sm:$0xf]
      %v527 = vld [vmem:[%s257 + $0xa4] sm:$0xf]
      %v528 = vld [vmem:[%s257 + $0xa8] sm:$0xf]
      %v529 = vld [vmem:[%s257 + $0xac] sm:$0xf]
      %v530 = vld [vmem:[%s257 + $0xb0] sm:$0xf]
      %v531 = vld [vmem:[%s257 + $0xb4] sm:$0xf]
      %v532 = vld [vmem:[%s257 + $0xb8] sm:$0xf]
      %v533 = vld [vmem:[%s257 + $0xbc] sm:$0xf]
      %v534 = vld [vmem:[%s257 + $0xc0] sm:$0xf]
      %v535 = vld [vmem:[%s257 + $0xc4] sm:$0xf]
      %v536 = vld [vmem:[%s257 + $0xc8] sm:$0xf]
      %v537 = vld [vmem:[%s257 + $0xcc] sm:$0xf]
      %v538 = vld [vmem:[%s257 + $0xd0] sm:$0xf]
      %v539 = vld [vmem:[%s257 + $0xd4] sm:$0xf]
      %v540 = vld [vmem:[%s257 + $0xd8] sm:$0xf]
      %v541 = vld [vmem:[%s257 + $0xdc] sm:$0xf]
      %v542 = vld [vmem:[%s257 + $0xe0] sm:$0xf]
      %v543 = vld [vmem:[%s257 + $0xe4] sm:$0xf]
      %v544 = vld [vmem:[%s257 + $0xe8] sm:$0xf]
      %v545 = vld [vmem:[%s257 + $0xec] sm:$0xf]
      %v546 = vld [vmem:[%s257 + $0xf0] sm:$0xf]
      %v547 = vld [vmem:[%s257 + $0xf4] sm:$0xf]
      %v548 = vld [vmem:[%s257 + $0xf8] sm:$0xf]
      %v549 = vld [vmem:[%s257 + $0xfc] sm:$0xf]
      %v550 = vld [vmem:[%s267] sm:$0xf]
      %v551 = vld [vmem:[%s267 + $0x4] sm:$0xf]
      %v552 = vld [vmem:[%s267 + $0x8] sm:$0xf]
      %v553 = vld [vmem:[%s267 + $0xc] sm:$0xf]
      %v554 = vld [vmem:[%s267 + $0x10] sm:$0xf]
      %v555 = vld [vmem:[%s267 + $0x14] sm:$0xf]
      %v556 = vld [vmem:[%s267 + $0x18] sm:$0xf]
      %v557 = vld [vmem:[%s267 + $0x1c] sm:$0xf]
      %v558 = vld [vmem:[%s267 + $0x20] sm:$0xf]
      %v559 = vld [vmem:[%s267 + $0x24] sm:$0xf]
      %v560 = vld [vmem:[%s267 + $0x28] sm:$0xf]
      %v561 = vld [vmem:[%s267 + $0x2c] sm:$0xf]
      %v562 = vld [vmem:[%s267 + $0x30] sm:$0xf]
      %v563 = vld [vmem:[%s267 + $0x34] sm:$0xf]
      %v564 = vld [vmem:[%s267 + $0x38] sm:$0xf]
      %v565 = vld [vmem:[%s267 + $0x3c] sm:$0xf]
      %v566 = vld [vmem:[%s267 + $0x40] sm:$0xf]
      %v567 = vld [vmem:[%s267 + $0x44] sm:$0xf]
      %v568 = vld [vmem:[%s267 + $0x48] sm:$0xf]
      %v569 = vld [vmem:[%s267 + $0x4c] sm:$0xf]
      %v570 = vld [vmem:[%s267 + $0x50] sm:$0xf]
      %v571 = vld [vmem:[%s267 + $0x54] sm:$0xf]
      %v572 = vld [vmem:[%s267 + $0x58] sm:$0xf]
      %v573 = vld [vmem:[%s267 + $0x5c] sm:$0xf]
      %v574 = vld [vmem:[%s267 + $0x60] sm:$0xf]
      %v575 = vld [vmem:[%s267 + $0x64] sm:$0xf]
      %v576 = vld [vmem:[%s267 + $0x68] sm:$0xf]
      %v577 = vld [vmem:[%s267 + $0x6c] sm:$0xf]
      %v578 = vld [vmem:[%s267 + $0x70] sm:$0xf]
      %v579 = vld [vmem:[%s267 + $0x74] sm:$0xf]
      %v580 = vld [vmem:[%s267 + $0x78] sm:$0xf]
      %v581 = vld [vmem:[%s267 + $0x7c] sm:$0xf]
      %v582 = vld [vmem:[%s267 + $0x80] sm:$0xf]
      %v583 = vld [vmem:[%s267 + $0x84] sm:$0xf]
      %v584 = vld [vmem:[%s267 + $0x88] sm:$0xf]
      %v585 = vld [vmem:[%s267 + $0x8c] sm:$0xf]
      %v586 = vld [vmem:[%s267 + $0x90] sm:$0xf]
      %v587 = vld [vmem:[%s267 + $0x94] sm:$0xf]
      %v588 = vld [vmem:[%s267 + $0x98] sm:$0xf]
      %v589 = vld [vmem:[%s267 + $0x9c] sm:$0xf]
      %v590 = vld [vmem:[%s267 + $0xa0] sm:$0xf]
      %v591 = vld [vmem:[%s267 + $0xa4] sm:$0xf]
      %v592 = vld [vmem:[%s267 + $0xa8] sm:$0xf]
      %v593 = vld [vmem:[%s267 + $0xac] sm:$0xf]
      %v594 = vld [vmem:[%s267 + $0xb0] sm:$0xf]
      %v595 = vld [vmem:[%s267 + $0xb4] sm:$0xf]
      %v596 = vld [vmem:[%s267 + $0xb8] sm:$0xf]
      %v597 = vld [vmem:[%s267 + $0xbc] sm:$0xf]
      %v598 = vld [vmem:[%s267 + $0xc0] sm:$0xf]
      %v599 = vld [vmem:[%s267 + $0xc4] sm:$0xf]
      %v600 = vld [vmem:[%s267 + $0xc8] sm:$0xf]
      %v601 = vld [vmem:[%s267 + $0xcc] sm:$0xf]
      %v602 = vld [vmem:[%s267 + $0xd0] sm:$0xf]
      %v603 = vld [vmem:[%s267 + $0xd4] sm:$0xf]
      %v604 = vld [vmem:[%s267 + $0xd8] sm:$0xf]
      %v605 = vld [vmem:[%s267 + $0xdc] sm:$0xf]
      %v606 = vld [vmem:[%s267 + $0xe0] sm:$0xf]
      %v607 = vld [vmem:[%s267 + $0xe4] sm:$0xf]
      %v608 = vld [vmem:[%s267 + $0xe8] sm:$0xf]
      %v609 = vld [vmem:[%s267 + $0xec] sm:$0xf]
      %v610 = vld [vmem:[%s267 + $0xf0] sm:$0xf]
      %v611 = vld [vmem:[%s267 + $0xf4] sm:$0xf]
      %v612 = vld [vmem:[%s267 + $0xf8] sm:$0xf]
      %v613 = vld [vmem:[%s267 + $0xfc] sm:$0xf]
      %v678 = vunpack.c.l.b16 %v486
      %v679 = vunpack.c.l.b16 %v487
      %v680 = vunpack.c.l.b16 %v488
      %v681 = vunpack.c.l.b16 %v489
      %v682 = vunpack.c.l.b16 %v490
      %v683 = vunpack.c.l.b16 %v491
      %v684 = vunpack.c.l.b16 %v492
      %v685 = vunpack.c.l.b16 %v493
      %v686 = vunpack.c.l.b16 %v494
      %v687 = vunpack.c.l.b16 %v495
      %v688 = vunpack.c.l.b16 %v496
      %v689 = vunpack.c.l.b16 %v497
      %v690 = vunpack.c.l.b16 %v498
      %v691 = vunpack.c.l.b16 %v499
      %v692 = vunpack.c.l.b16 %v500
      %v693 = vunpack.c.l.b16 %v501
      %v694 = vunpack.c.l.b16 %v502
      %v695 = vunpack.c.l.b16 %v503
      %v696 = vunpack.c.l.b16 %v504
      %v697 = vunpack.c.l.b16 %v505
      %v698 = vunpack.c.l.b16 %v506
      %v699 = vunpack.c.l.b16 %v507
      %v700 = vunpack.c.l.b16 %v508
      %v701 = vunpack.c.l.b16 %v509
      %v702 = vunpack.c.l.b16 %v510
      %v703 = vunpack.c.l.b16 %v511
      %v704 = vunpack.c.l.b16 %v512
      %v705 = vunpack.c.l.b16 %v513
      %v706 = vunpack.c.l.b16 %v514
      %v707 = vunpack.c.l.b16 %v515
      %v708 = vunpack.c.l.b16 %v516
      %v709 = vunpack.c.l.b16 %v517
      %v710 = vunpack.c.l.b16 %v518
      %v711 = vunpack.c.l.b16 %v519
      %v712 = vunpack.c.l.b16 %v520
      %v713 = vunpack.c.l.b16 %v521
      %v714 = vunpack.c.l.b16 %v522
      %v715 = vunpack.c.l.b16 %v523
      %v716 = vunpack.c.l.b16 %v524
      %v717 = vunpack.c.l.b16 %v525
      %v718 = vunpack.c.l.b16 %v526
      %v719 = vunpack.c.l.b16 %v527
      %v720 = vunpack.c.l.b16 %v528
      %v721 = vunpack.c.l.b16 %v529
      %v722 = vunpack.c.l.b16 %v530
      %v723 = vunpack.c.l.b16 %v531
      %v724 = vunpack.c.l.b16 %v532
      %v725 = vunpack.c.l.b16 %v533
      %v726 = vunpack.c.l.b16 %v534
      %v727 = vunpack.c.l.b16 %v535
      %v728 = vunpack.c.l.b16 %v536
      %v729 = vunpack.c.l.b16 %v537
      %v730 = vunpack.c.l.b16 %v538
      %v731 = vunpack.c.l.b16 %v539
      %v732 = vunpack.c.l.b16 %v540
      %v733 = vunpack.c.l.b16 %v541
      %v734 = vunpack.c.l.b16 %v542
      %v735 = vunpack.c.l.b16 %v543
      %v736 = vunpack.c.l.b16 %v544
      %v737 = vunpack.c.l.b16 %v545
      %v738 = vunpack.c.l.b16 %v546
      %v739 = vunpack.c.l.b16 %v547
      %v740 = vunpack.c.l.b16 %v548
      %v741 = vunpack.c.l.b16 %v549
      %v742 = vpack.c.b16 %v679, %v678
      %v743 = vpack.c.b16 %v681, %v680
      %v744 = vpack.c.b16 %v683, %v682
      %v745 = vpack.c.b16 %v685, %v684
      %v746 = vpack.c.b16 %v687, %v686
      %v747 = vpack.c.b16 %v689, %v688
      %v748 = vpack.c.b16 %v691, %v690
      %v749 = vpack.c.b16 %v693, %v692
      %v750 = vpack.c.b16 %v695, %v694
      %v751 = vpack.c.b16 %v697, %v696
      %v752 = vpack.c.b16 %v699, %v698
      %v753 = vpack.c.b16 %v701, %v700
      %v754 = vpack.c.b16 %v703, %v702
      %v755 = vpack.c.b16 %v705, %v704
      %v756 = vpack.c.b16 %v707, %v706
      %v757 = vpack.c.b16 %v709, %v708
      %v758 = vpack.c.b16 %v711, %v710
      %v759 = vpack.c.b16 %v713, %v712
      %v760 = vpack.c.b16 %v715, %v714
      %v761 = vpack.c.b16 %v717, %v716
      %v762 = vpack.c.b16 %v719, %v718
      %v763 = vpack.c.b16 %v721, %v720
      %v764 = vpack.c.b16 %v723, %v722
      %v765 = vpack.c.b16 %v725, %v724
      %v766 = vpack.c.b16 %v727, %v726
      %v767 = vpack.c.b16 %v729, %v728
      %v768 = vpack.c.b16 %v731, %v730
      %v769 = vpack.c.b16 %v733, %v732
      %v770 = vpack.c.b16 %v735, %v734
      %v771 = vpack.c.b16 %v737, %v736
      %v772 = vpack.c.b16 %v739, %v738
      %v773 = vpack.c.b16 %v741, %v740
      %v838 = vunpack.c.l.b16 %v550
      %v839 = vunpack.c.l.b16 %v551
      %v840 = vunpack.c.l.b16 %v552
      %v841 = vunpack.c.l.b16 %v553
      %v842 = vunpack.c.l.b16 %v554
      %v843 = vunpack.c.l.b16 %v555
      %v844 = vunpack.c.l.b16 %v556
      %v845 = vunpack.c.l.b16 %v557
      %v846 = vunpack.c.l.b16 %v558
      %v847 = vunpack.c.l.b16 %v559
      %v848 = vunpack.c.l.b16 %v560
      %v849 = vunpack.c.l.b16 %v561
      %v850 = vunpack.c.l.b16 %v562
      %v851 = vunpack.c.l.b16 %v563
      %v852 = vunpack.c.l.b16 %v564
      %v853 = vunpack.c.l.b16 %v565
      %v854 = vunpack.c.l.b16 %v566
      %v855 = vunpack.c.l.b16 %v567
      %v856 = vunpack.c.l.b16 %v568
      %v857 = vunpack.c.l.b16 %v569
      %v858 = vunpack.c.l.b16 %v570
      %v859 = vunpack.c.l.b16 %v571
      %v860 = vunpack.c.l.b16 %v572
      %v861 = vunpack.c.l.b16 %v573
      %v862 = vunpack.c.l.b16 %v574
      %v863 = vunpack.c.l.b16 %v575
      %v864 = vunpack.c.l.b16 %v576
      %v865 = vunpack.c.l.b16 %v577
      %v866 = vunpack.c.l.b16 %v578
      %v867 = vunpack.c.l.b16 %v579
      %v868 = vunpack.c.l.b16 %v580
      %v869 = vunpack.c.l.b16 %v581
      %v870 = vunpack.c.l.b16 %v582
      %v871 = vunpack.c.l.b16 %v583
      %v872 = vunpack.c.l.b16 %v584
      %v873 = vunpack.c.l.b16 %v585
      %v874 = vunpack.c.l.b16 %v586
      %v875 = vunpack.c.l.b16 %v587
      %v876 = vunpack.c.l.b16 %v588
      %v877 = vunpack.c.l.b16 %v589
      %v878 = vunpack.c.l.b16 %v590
      %v879 = vunpack.c.l.b16 %v591
      %v880 = vunpack.c.l.b16 %v592
      %v881 = vunpack.c.l.b16 %v593
      %v882 = vunpack.c.l.b16 %v594
      %v883 = vunpack.c.l.b16 %v595
      %v884 = vunpack.c.l.b16 %v596
      %v885 = vunpack.c.l.b16 %v597
      %v886 = vunpack.c.l.b16 %v598
      %v887 = vunpack.c.l.b16 %v599
      %v888 = vunpack.c.l.b16 %v600
      %v889 = vunpack.c.l.b16 %v601
      %v890 = vunpack.c.l.b16 %v602
      %v891 = vunpack.c.l.b16 %v603
      %v892 = vunpack.c.l.b16 %v604
      %v893 = vunpack.c.l.b16 %v605
      %v894 = vunpack.c.l.b16 %v606
      %v895 = vunpack.c.l.b16 %v607
      %v896 = vunpack.c.l.b16 %v608
      %v897 = vunpack.c.l.b16 %v609
      %v898 = vunpack.c.l.b16 %v610
      %v899 = vunpack.c.l.b16 %v611
      %v900 = vunpack.c.l.b16 %v612
      %v901 = vunpack.c.l.b16 %v613
      %v902 = vpack.c.b16 %v839, %v838
      %v903 = vpack.c.b16 %v841, %v840
      %v904 = vpack.c.b16 %v843, %v842
      %v905 = vpack.c.b16 %v845, %v844
      %v906 = vpack.c.b16 %v847, %v846
      %v907 = vpack.c.b16 %v849, %v848
      %v908 = vpack.c.b16 %v851, %v850
      %v909 = vpack.c.b16 %v853, %v852
      %v910 = vpack.c.b16 %v855, %v854
      %v911 = vpack.c.b16 %v857, %v856
      %v912 = vpack.c.b16 %v859, %v858
      %v913 = vpack.c.b16 %v861, %v860
      %v914 = vpack.c.b16 %v863, %v862
      %v915 = vpack.c.b16 %v865, %v864
      %v916 = vpack.c.b16 %v867, %v866
      %v917 = vpack.c.b16 %v869, %v868
      %v918 = vpack.c.b16 %v871, %v870
      %v919 = vpack.c.b16 %v873, %v872
      %v920 = vpack.c.b16 %v875, %v874
      %v921 = vpack.c.b16 %v877, %v876
      %v922 = vpack.c.b16 %v879, %v878
      %v923 = vpack.c.b16 %v881, %v880
      %v924 = vpack.c.b16 %v883, %v882
      %v925 = vpack.c.b16 %v885, %v884
      %v926 = vpack.c.b16 %v887, %v886
      %v927 = vpack.c.b16 %v889, %v888
      %v928 = vpack.c.b16 %v891, %v890
      %v929 = vpack.c.b16 %v893, %v892
      %v930 = vpack.c.b16 %v895, %v894
      %v931 = vpack.c.b16 %v897, %v896
      %v932 = vpack.c.b16 %v899, %v898
      %v933 = vpack.c.b16 %v901, %v900
      %vm934 = vcmask 523264
      %v936 = vsel %vm934, %v742, 0
      %v939 = vsel %vm934, %v743, 0
      %v942 = vsel %vm934, %v744, 0
      %v945 = vsel %vm934, %v745, 0
      %v948 = vsel %vm934, %v746, 0
      %v951 = vsel %vm934, %v747, 0
      %v954 = vsel %vm934, %v748, 0
      %v957 = vsel %vm934, %v749, 0
      %v960 = vsel %vm934, %v750, 0
      %v963 = vsel %vm934, %v751, 0
      %v966 = vsel %vm934, %v752, 0
      %v969 = vsel %vm934, %v753, 0
      %v972 = vsel %vm934, %v754, 0
      %v975 = vsel %vm934, %v755, 0
      %v978 = vsel %vm934, %v756, 0
      %v981 = vsel %vm934, %v757, 0
      %v984 = vsel %vm934, %v758, 0
      %v987 = vsel %vm934, %v759, 0
      %v990 = vsel %vm934, %v760, 0
      %v993 = vsel %vm934, %v761, 0
      %v996 = vsel %vm934, %v762, 0
      %v999 = vsel %vm934, %v763, 0
      %v1002 = vsel %vm934, %v764, 0
      %v1005 = vsel %vm934, %v765, 0
      %v1008 = vsel %vm934, %v766, 0
      %v1011 = vsel %vm934, %v767, 0
      %v1014 = vsel %vm934, %v768, 0
      %v1017 = vsel %vm934, %v769, 0
      %v1020 = vsel %vm934, %v770, 0
      %v1023 = vsel %vm934, %v771, 0
      %v1026 = vsel %vm934, %v772, 0
      %v1029 = vsel %vm934, %v773, 0
      %v1032 = vsel %vm934, %v902, 0
      %v1035 = vsel %vm934, %v903, 0
      %v1038 = vsel %vm934, %v904, 0
      %v1041 = vsel %vm934, %v905, 0
      %v1044 = vsel %vm934, %v906, 0
      %v1047 = vsel %vm934, %v907, 0
      %v1050 = vsel %vm934, %v908, 0
      %v1053 = vsel %vm934, %v909, 0
      %v1056 = vsel %vm934, %v910, 0
      %v1059 = vsel %vm934, %v911, 0
      %v1062 = vsel %vm934, %v912, 0
      %v1065 = vsel %vm934, %v913, 0
      %v1068 = vsel %vm934, %v914, 0
      %v1071 = vsel %vm934, %v915, 0
      %v1074 = vsel %vm934, %v916, 0
      %v1077 = vsel %vm934, %v917, 0
      %v1080 = vsel %vm934, %v918, 0
      %v1083 = vsel %vm934, %v919, 0
      %v1086 = vsel %vm934, %v920, 0
      %v1089 = vsel %vm934, %v921, 0
      %v1092 = vsel %vm934, %v922, 0
      %v1095 = vsel %vm934, %v923, 0
      %v1098 = vsel %vm934, %v924, 0
      %v1101 = vsel %vm934, %v925, 0
      %v1104 = vsel %vm934, %v926, 0
      %v1107 = vsel %vm934, %v927, 0
      %v1110 = vsel %vm934, %v928, 0
      %v1113 = vsel %vm934, %v929, 0
      %v1116 = vsel %vm934, %v930, 0
      %v1119 = vsel %vm934, %v931, 0
      %v1122 = vsel %vm934, %v932, 0
      %v1125 = vsel %vm934, %v933, 0
      %1127 = vmatpush.bf16.xpose.msra.mxu0 %v1053
      %1128 = vmatpush.bf16.xpose.msra.mxu0 %v1050
      %1129 = vmatpush.bf16.xpose.msra.mxu0 %v1047
      %1130 = vmatpush.bf16.xpose.msra.mxu0 %v1044
      %1131 = vmatpush.bf16.xpose.msra.mxu0 %v1041
      %1132 = vmatpush.bf16.xpose.msra.mxu0 %v1038
      %1133 = vmatpush.bf16.xpose.msra.mxu0 %v1035
      %1134 = vmatpush.bf16.xpose.msra.mxu0 %v1032
      %1135 = vmatmul.bf16.gmra.mxu0 %v936
      %v1136 = vpop.f32.mrf.mxu0
      %v1137 = vadd.f32 0.0, %v1136
      %v1138 = vpop.f32.mrf.mxu0
      %v1139 = vadd.f32 0.0, %v1138
      %1140 = vmatmul.bf16.gmra.mxu0 %v939
      %v1141 = vpop.f32.mrf.mxu0
      %v1142 = vadd.f32 0.0, %v1141
      %v1143 = vpop.f32.mrf.mxu0
      %v1144 = vadd.f32 0.0, %v1143
      %1145 = vmatmul.bf16.gmra.mxu0 %v942
      %v1146 = vpop.f32.mrf.mxu0
      %v1147 = vadd.f32 0.0, %v1146
      %v1148 = vpop.f32.mrf.mxu0
      %v1149 = vadd.f32 0.0, %v1148
      %1150 = vmatmul.bf16.gmra.mxu0 %v945
      %v1151 = vpop.f32.mrf.mxu0
      %v1152 = vadd.f32 0.0, %v1151
      %v1153 = vpop.f32.mrf.mxu0
      %v1154 = vadd.f32 0.0, %v1153
      %1155 = vmatmul.bf16.gmra.mxu0 %v948
      %v1156 = vpop.f32.mrf.mxu0
      %v1157 = vadd.f32 0.0, %v1156
      %v1158 = vpop.f32.mrf.mxu0
      %v1159 = vadd.f32 0.0, %v1158
      %1160 = vmatmul.bf16.gmra.mxu0 %v951
      %v1161 = vpop.f32.mrf.mxu0
      %v1162 = vadd.f32 0.0, %v1161
      %v1163 = vpop.f32.mrf.mxu0
      %v1164 = vadd.f32 0.0, %v1163
      %1165 = vmatmul.bf16.gmra.mxu0 %v954
      %v1166 = vpop.f32.mrf.mxu0
      %v1167 = vadd.f32 0.0, %v1166
      %v1168 = vpop.f32.mrf.mxu0
      %v1169 = vadd.f32 0.0, %v1168
      %1170 = vmatmul.bf16.gmra.mxu0 %v957
      %v1171 = vpop.f32.mrf.mxu0
      %v1172 = vadd.f32 0.0, %v1171
      %v1173 = vpop.f32.mrf.mxu0
      %v1174 = vadd.f32 0.0, %v1173
      %1175 = vmatmul.bf16.gmra.mxu0 %v960
      %v1176 = vpop.f32.mrf.mxu0
      %v1177 = vadd.f32 0.0, %v1176
      %v1178 = vpop.f32.mrf.mxu0
      %v1179 = vadd.f32 0.0, %v1178
      %1180 = vmatmul.bf16.gmra.mxu0 %v963
      %v1181 = vpop.f32.mrf.mxu0
      %v1182 = vadd.f32 0.0, %v1181
      %v1183 = vpop.f32.mrf.mxu0
      %v1184 = vadd.f32 0.0, %v1183
      %1185 = vmatmul.bf16.gmra.mxu0 %v966
      %v1186 = vpop.f32.mrf.mxu0
      %v1187 = vadd.f32 0.0, %v1186
      %v1188 = vpop.f32.mrf.mxu0
      %v1189 = vadd.f32 0.0, %v1188
      %1190 = vmatmul.bf16.gmra.mxu0 %v969
      %v1191 = vpop.f32.mrf.mxu0
      %v1192 = vadd.f32 0.0, %v1191
      %v1193 = vpop.f32.mrf.mxu0
      %v1194 = vadd.f32 0.0, %v1193
      %1195 = vmatmul.bf16.gmra.mxu0 %v972
      %v1196 = vpop.f32.mrf.mxu0
      %v1197 = vadd.f32 0.0, %v1196
      %v1198 = vpop.f32.mrf.mxu0
      %v1199 = vadd.f32 0.0, %v1198
      %1200 = vmatmul.bf16.gmra.mxu0 %v975
      %v1201 = vpop.f32.mrf.mxu0
      %v1202 = vadd.f32 0.0, %v1201
      %v1203 = vpop.f32.mrf.mxu0
      %v1204 = vadd.f32 0.0, %v1203
      %1205 = vmatmul.bf16.gmra.mxu0 %v978
      %v1206 = vpop.f32.mrf.mxu0
      %v1207 = vadd.f32 0.0, %v1206
      %v1208 = vpop.f32.mrf.mxu0
      %v1209 = vadd.f32 0.0, %v1208
      %1210 = vmatmul.bf16.gmra.mxu0 %v981
      %v1211 = vpop.f32.mrf.mxu0
      %v1212 = vadd.f32 0.0, %v1211
      %v1213 = vpop.f32.mrf.mxu0
      %v1214 = vadd.f32 0.0, %v1213
      %1215 = vmatmul.bf16.gmra.mxu0 %v984
      %v1216 = vpop.f32.mrf.mxu0
      %v1217 = vadd.f32 0.0, %v1216
      %v1218 = vpop.f32.mrf.mxu0
      %v1219 = vadd.f32 0.0, %v1218
      %1220 = vmatmul.bf16.gmra.mxu0 %v987
      %v1221 = vpop.f32.mrf.mxu0
      %v1222 = vadd.f32 0.0, %v1221
      %v1223 = vpop.f32.mrf.mxu0
      %v1224 = vadd.f32 0.0, %v1223
      %1225 = vmatmul.bf16.gmra.mxu0 %v990
      %v1226 = vpop.f32.mrf.mxu0
      %v1227 = vadd.f32 0.0, %v1226
      %v1228 = vpop.f32.mrf.mxu0
      %v1229 = vadd.f32 0.0, %v1228
      %1230 = vmatmul.bf16.gmra.mxu0 %v993
      %v1231 = vpop.f32.mrf.mxu0
      %v1232 = vadd.f32 0.0, %v1231
      %v1233 = vpop.f32.mrf.mxu0
      %v1234 = vadd.f32 0.0, %v1233
      %1235 = vmatmul.bf16.gmra.mxu0 %v996
      %v1236 = vpop.f32.mrf.mxu0
      %v1237 = vadd.f32 0.0, %v1236
      %v1238 = vpop.f32.mrf.mxu0
      %v1239 = vadd.f32 0.0, %v1238
      %1240 = vmatmul.bf16.gmra.mxu0 %v999
      %v1241 = vpop.f32.mrf.mxu0
      %v1242 = vadd.f32 0.0, %v1241
      %v1243 = vpop.f32.mrf.mxu0
      %v1244 = vadd.f32 0.0, %v1243
      %1245 = vmatmul.bf16.gmra.mxu0 %v1002
      %v1246 = vpop.f32.mrf.mxu0
      %v1247 = vadd.f32 0.0, %v1246
      %v1248 = vpop.f32.mrf.mxu0
      %v1249 = vadd.f32 0.0, %v1248
      %1250 = vmatmul.bf16.gmra.mxu0 %v1005
      %v1251 = vpop.f32.mrf.mxu0
      %v1252 = vadd.f32 0.0, %v1251
      %v1253 = vpop.f32.mrf.mxu0
      %v1254 = vadd.f32 0.0, %v1253
      %1255 = vmatmul.bf16.gmra.mxu0 %v1008
      %v1256 = vpop.f32.mrf.mxu0
      %v1257 = vadd.f32 0.0, %v1256
      %v1258 = vpop.f32.mrf.mxu0
      %v1259 = vadd.f32 0.0, %v1258
      %1260 = vmatmul.bf16.gmra.mxu0 %v1011
      %v1261 = vpop.f32.mrf.mxu0
      %v1262 = vadd.f32 0.0, %v1261
      %v1263 = vpop.f32.mrf.mxu0
      %v1264 = vadd.f32 0.0, %v1263
      %1265 = vmatmul.bf16.gmra.mxu0 %v1014
      %v1266 = vpop.f32.mrf.mxu0
      %v1267 = vadd.f32 0.0, %v1266
      %v1268 = vpop.f32.mrf.mxu0
      %v1269 = vadd.f32 0.0, %v1268
      %1270 = vmatmul.bf16.gmra.mxu0 %v1017
      %v1271 = vpop.f32.mrf.mxu0
      %v1272 = vadd.f32 0.0, %v1271
      %v1273 = vpop.f32.mrf.mxu0
      %v1274 = vadd.f32 0.0, %v1273
      %1275 = vmatmul.bf16.gmra.mxu0 %v1020
      %v1276 = vpop.f32.mrf.mxu0
      %v1277 = vadd.f32 0.0, %v1276
      %v1278 = vpop.f32.mrf.mxu0
      %v1279 = vadd.f32 0.0, %v1278
      %1280 = vmatmul.bf16.gmra.mxu0 %v1023
      %v1281 = vpop.f32.mrf.mxu0
      %v1282 = vadd.f32 0.0, %v1281
      %v1283 = vpop.f32.mrf.mxu0
      %v1284 = vadd.f32 0.0, %v1283
      %1285 = vmatmul.bf16.gmra.mxu0 %v1026
      %v1286 = vpop.f32.mrf.mxu0
      %v1287 = vadd.f32 0.0, %v1286
      %v1288 = vpop.f32.mrf.mxu0
      %v1289 = vadd.f32 0.0, %v1288
      %1290 = vmatmul.bf16.gmra.mxu0 %v1029
      %v1291 = vpop.f32.mrf.mxu0
      %v1292 = vadd.f32 0.0, %v1291
      %v1293 = vpop.f32.mrf.mxu0
      %v1294 = vadd.f32 0.0, %v1293
      %1295 = vdwg.mxu0
      %1296 = vmatpush.bf16.xpose.msra.mxu0 %v1077
      %1297 = vmatpush.bf16.xpose.msra.mxu0 %v1074
      %1298 = vmatpush.bf16.xpose.msra.mxu0 %v1071
      %1299 = vmatpush.bf16.xpose.msra.mxu0 %v1068
      %1300 = vmatpush.bf16.xpose.msra.mxu0 %v1065
      %1301 = vmatpush.bf16.xpose.msra.mxu0 %v1062
      %1302 = vmatpush.bf16.xpose.msra.mxu0 %v1059
      %1303 = vmatpush.bf16.xpose.msra.mxu0 %v1056
      %1304 = vmatmul.bf16.gmra.mxu0 %v936
      %v1305 = vpop.f32.mrf.mxu0
      %v1306 = vadd.f32 0.0, %v1305
      %v1307 = vpop.f32.mrf.mxu0
      %v1308 = vadd.f32 0.0, %v1307
      %1309 = vmatmul.bf16.gmra.mxu0 %v939
      %v1310 = vpop.f32.mrf.mxu0
      %v1311 = vadd.f32 0.0, %v1310
      %v1312 = vpop.f32.mrf.mxu0
      %v1313 = vadd.f32 0.0, %v1312
      %1314 = vmatmul.bf16.gmra.mxu0 %v942
      %v1315 = vpop.f32.mrf.mxu0
      %v1316 = vadd.f32 0.0, %v1315
      %v1317 = vpop.f32.mrf.mxu0
      %v1318 = vadd.f32 0.0, %v1317
      %1319 = vmatmul.bf16.gmra.mxu0 %v945
      %v1320 = vpop.f32.mrf.mxu0
      %v1321 = vadd.f32 0.0, %v1320
      %v1322 = vpop.f32.mrf.mxu0
      %v1323 = vadd.f32 0.0, %v1322
      %1324 = vmatmul.bf16.gmra.mxu0 %v948
      %v1325 = vpop.f32.mrf.mxu0
      %v1326 = vadd.f32 0.0, %v1325
      %v1327 = vpop.f32.mrf.mxu0
      %v1328 = vadd.f32 0.0, %v1327
      %1329 = vmatmul.bf16.gmra.mxu0 %v951
      %v1330 = vpop.f32.mrf.mxu0
      %v1331 = vadd.f32 0.0, %v1330
      %v1332 = vpop.f32.mrf.mxu0
      %v1333 = vadd.f32 0.0, %v1332
      %1334 = vmatmul.bf16.gmra.mxu0 %v954
      %v1335 = vpop.f32.mrf.mxu0
      %v1336 = vadd.f32 0.0, %v1335
      %v1337 = vpop.f32.mrf.mxu0
      %v1338 = vadd.f32 0.0, %v1337
      %1339 = vmatmul.bf16.gmra.mxu0 %v957
      %v1340 = vpop.f32.mrf.mxu0
      %v1341 = vadd.f32 0.0, %v1340
      %v1342 = vpop.f32.mrf.mxu0
      %v1343 = vadd.f32 0.0, %v1342
      %1344 = vmatmul.bf16.gmra.mxu0 %v960
      %v1345 = vpop.f32.mrf.mxu0
      %v1346 = vadd.f32 0.0, %v1345
      %v1347 = vpop.f32.mrf.mxu0
      %v1348 = vadd.f32 0.0, %v1347
      %1349 = vmatmul.bf16.gmra.mxu0 %v963
      %v1350 = vpop.f32.mrf.mxu0
      %v1351 = vadd.f32 0.0, %v1350
      %v1352 = vpop.f32.mrf.mxu0
      %v1353 = vadd.f32 0.0, %v1352
      %1354 = vmatmul.bf16.gmra.mxu0 %v966
      %v1355 = vpop.f32.mrf.mxu0
      %v1356 = vadd.f32 0.0, %v1355
      %v1357 = vpop.f32.mrf.mxu0
      %v1358 = vadd.f32 0.0, %v1357
      %1359 = vmatmul.bf16.gmra.mxu0 %v969
      %v1360 = vpop.f32.mrf.mxu0
      %v1361 = vadd.f32 0.0, %v1360
      %v1362 = vpop.f32.mrf.mxu0
      %v1363 = vadd.f32 0.0, %v1362
      %1364 = vmatmul.bf16.gmra.mxu0 %v972
      %v1365 = vpop.f32.mrf.mxu0
      %v1366 = vadd.f32 0.0, %v1365
      %v1367 = vpop.f32.mrf.mxu0
      %v1368 = vadd.f32 0.0, %v1367
      %1369 = vmatmul.bf16.gmra.mxu0 %v975
      %v1370 = vpop.f32.mrf.mxu0
      %v1371 = vadd.f32 0.0, %v1370
      %v1372 = vpop.f32.mrf.mxu0
      %v1373 = vadd.f32 0.0, %v1372
      %1374 = vmatmul.bf16.gmra.mxu0 %v978
      %v1375 = vpop.f32.mrf.mxu0
      %v1376 = vadd.f32 0.0, %v1375
      %v1377 = vpop.f32.mrf.mxu0
      %v1378 = vadd.f32 0.0, %v1377
      %1379 = vmatmul.bf16.gmra.mxu0 %v981
      %v1380 = vpop.f32.mrf.mxu0
      %v1381 = vadd.f32 0.0, %v1380
      %v1382 = vpop.f32.mrf.mxu0
      %v1383 = vadd.f32 0.0, %v1382
      %1384 = vmatmul.bf16.gmra.mxu0 %v984
      %v1385 = vpop.f32.mrf.mxu0
      %v1386 = vadd.f32 0.0, %v1385
      %v1387 = vpop.f32.mrf.mxu0
      %v1388 = vadd.f32 0.0, %v1387
      %1389 = vmatmul.bf16.gmra.mxu0 %v987
      %v1390 = vpop.f32.mrf.mxu0
      %v1391 = vadd.f32 0.0, %v1390
      %v1392 = vpop.f32.mrf.mxu0
      %v1393 = vadd.f32 0.0, %v1392
      %1394 = vmatmul.bf16.gmra.mxu0 %v990
      %v1395 = vpop.f32.mrf.mxu0
      %v1396 = vadd.f32 0.0, %v1395
      %v1397 = vpop.f32.mrf.mxu0
      %v1398 = vadd.f32 0.0, %v1397
      %1399 = vmatmul.bf16.gmra.mxu0 %v993
      %v1400 = vpop.f32.mrf.mxu0
      %v1401 = vadd.f32 0.0, %v1400
      %v1402 = vpop.f32.mrf.mxu0
      %v1403 = vadd.f32 0.0, %v1402
      %1404 = vmatmul.bf16.gmra.mxu0 %v996
      %v1405 = vpop.f32.mrf.mxu0
      %v1406 = vadd.f32 0.0, %v1405
      %v1407 = vpop.f32.mrf.mxu0
      %v1408 = vadd.f32 0.0, %v1407
      %1409 = vmatmul.bf16.gmra.mxu0 %v999
      %v1410 = vpop.f32.mrf.mxu0
      %v1411 = vadd.f32 0.0, %v1410
      %v1412 = vpop.f32.mrf.mxu0
      %v1413 = vadd.f32 0.0, %v1412
      %1414 = vmatmul.bf16.gmra.mxu0 %v1002
      %v1415 = vpop.f32.mrf.mxu0
      %v1416 = vadd.f32 0.0, %v1415
      %v1417 = vpop.f32.mrf.mxu0
      %v1418 = vadd.f32 0.0, %v1417
      %1419 = vmatmul.bf16.gmra.mxu0 %v1005
      %v1420 = vpop.f32.mrf.mxu0
      %v1421 = vadd.f32 0.0, %v1420
      %v1422 = vpop.f32.mrf.mxu0
      %v1423 = vadd.f32 0.0, %v1422
      %1424 = vmatmul.bf16.gmra.mxu0 %v1008
      %v1425 = vpop.f32.mrf.mxu0
      %v1426 = vadd.f32 0.0, %v1425
      %v1427 = vpop.f32.mrf.mxu0
      %v1428 = vadd.f32 0.0, %v1427
      %1429 = vmatmul.bf16.gmra.mxu0 %v1011
      %v1430 = vpop.f32.mrf.mxu0
      %v1431 = vadd.f32 0.0, %v1430
      %v1432 = vpop.f32.mrf.mxu0
      %v1433 = vadd.f32 0.0, %v1432
      %1434 = vmatmul.bf16.gmra.mxu0 %v1014
      %v1435 = vpop.f32.mrf.mxu0
      %v1436 = vadd.f32 0.0, %v1435
      %v1437 = vpop.f32.mrf.mxu0
      %v1438 = vadd.f32 0.0, %v1437
      %1439 = vmatmul.bf16.gmra.mxu0 %v1017
      %v1440 = vpop.f32.mrf.mxu0
      %v1441 = vadd.f32 0.0, %v1440
      %v1442 = vpop.f32.mrf.mxu0
      %v1443 = vadd.f32 0.0, %v1442
      %1444 = vmatmul.bf16.gmra.mxu0 %v1020
      %v1445 = vpop.f32.mrf.mxu0
      %v1446 = vadd.f32 0.0, %v1445
      %v1447 = vpop.f32.mrf.mxu0
      %v1448 = vadd.f32 0.0, %v1447
      %1449 = vmatmul.bf16.gmra.mxu0 %v1023
      %v1450 = vpop.f32.mrf.mxu0
      %v1451 = vadd.f32 0.0, %v1450
      %v1452 = vpop.f32.mrf.mxu0
      %v1453 = vadd.f32 0.0, %v1452
      %1454 = vmatmul.bf16.gmra.mxu0 %v1026
      %v1455 = vpop.f32.mrf.mxu0
      %v1456 = vadd.f32 0.0, %v1455
      %v1457 = vpop.f32.mrf.mxu0
      %v1458 = vadd.f32 0.0, %v1457
      %1459 = vmatmul.bf16.gmra.mxu0 %v1029
      %v1460 = vpop.f32.mrf.mxu0
      %v1461 = vadd.f32 0.0, %v1460
      %v1462 = vpop.f32.mrf.mxu0
      %v1463 = vadd.f32 0.0, %v1462
      %1464 = vdwg.mxu0
      %1465 = vmatpush.bf16.xpose.msra.mxu0 %v1101
      %1466 = vmatpush.bf16.xpose.msra.mxu0 %v1098
      %1467 = vmatpush.bf16.xpose.msra.mxu0 %v1095
      %1468 = vmatpush.bf16.xpose.msra.mxu0 %v1092
      %1469 = vmatpush.bf16.xpose.msra.mxu0 %v1089
      %1470 = vmatpush.bf16.xpose.msra.mxu0 %v1086
      %1471 = vmatpush.bf16.xpose.msra.mxu0 %v1083
      %1472 = vmatpush.bf16.xpose.msra.mxu0 %v1080
      %1473 = vmatmul.bf16.gmra.mxu0 %v936
      %v1474 = vpop.f32.mrf.mxu0
      %v1475 = vadd.f32 0.0, %v1474
      %v1476 = vpop.f32.mrf.mxu0
      %v1477 = vadd.f32 0.0, %v1476
      %1478 = vmatmul.bf16.gmra.mxu0 %v939
      %v1479 = vpop.f32.mrf.mxu0
      %v1480 = vadd.f32 0.0, %v1479
      %v1481 = vpop.f32.mrf.mxu0
      %v1482 = vadd.f32 0.0, %v1481
      %1483 = vmatmul.bf16.gmra.mxu0 %v942
      %v1484 = vpop.f32.mrf.mxu0
      %v1485 = vadd.f32 0.0, %v1484
      %v1486 = vpop.f32.mrf.mxu0
      %v1487 = vadd.f32 0.0, %v1486
      %1488 = vmatmul.bf16.gmra.mxu0 %v945
      %v1489 = vpop.f32.mrf.mxu0
      %v1490 = vadd.f32 0.0, %v1489
      %v1491 = vpop.f32.mrf.mxu0
      %v1492 = vadd.f32 0.0, %v1491
      %1493 = vmatmul.bf16.gmra.mxu0 %v948
      %v1494 = vpop.f32.mrf.mxu0
      %v1495 = vadd.f32 0.0, %v1494
      %v1496 = vpop.f32.mrf.mxu0
      %v1497 = vadd.f32 0.0, %v1496
      %1498 = vmatmul.bf16.gmra.mxu0 %v951
      %v1499 = vpop.f32.mrf.mxu0
      %v1500 = vadd.f32 0.0, %v1499
      %v1501 = vpop.f32.mrf.mxu0
      %v1502 = vadd.f32 0.0, %v1501
      %1503 = vmatmul.bf16.gmra.mxu0 %v954
      %v1504 = vpop.f32.mrf.mxu0
      %v1505 = vadd.f32 0.0, %v1504
      %v1506 = vpop.f32.mrf.mxu0
      %v1507 = vadd.f32 0.0, %v1506
      %1508 = vmatmul.bf16.gmra.mxu0 %v957
      %v1509 = vpop.f32.mrf.mxu0
      %v1510 = vadd.f32 0.0, %v1509
      %v1511 = vpop.f32.mrf.mxu0
      %v1512 = vadd.f32 0.0, %v1511
      %1513 = vmatmul.bf16.gmra.mxu0 %v960
      %v1514 = vpop.f32.mrf.mxu0
      %v1515 = vadd.f32 0.0, %v1514
      %v1516 = vpop.f32.mrf.mxu0
      %v1517 = vadd.f32 0.0, %v1516
      %1518 = vmatmul.bf16.gmra.mxu0 %v963
      %v1519 = vpop.f32.mrf.mxu0
      %v1520 = vadd.f32 0.0, %v1519
      %v1521 = vpop.f32.mrf.mxu0
      %v1522 = vadd.f32 0.0, %v1521
      %1523 = vmatmul.bf16.gmra.mxu0 %v966
      %v1524 = vpop.f32.mrf.mxu0
      %v1525 = vadd.f32 0.0, %v1524
      %v1526 = vpop.f32.mrf.mxu0
      %v1527 = vadd.f32 0.0, %v1526
      %1528 = vmatmul.bf16.gmra.mxu0 %v969
      %v1529 = vpop.f32.mrf.mxu0
      %v1530 = vadd.f32 0.0, %v1529
      %v1531 = vpop.f32.mrf.mxu0
      %v1532 = vadd.f32 0.0, %v1531
      %1533 = vmatmul.bf16.gmra.mxu0 %v972
      %v1534 = vpop.f32.mrf.mxu0
      %v1535 = vadd.f32 0.0, %v1534
      %v1536 = vpop.f32.mrf.mxu0
      %v1537 = vadd.f32 0.0, %v1536
      %1538 = vmatmul.bf16.gmra.mxu0 %v975
      %v1539 = vpop.f32.mrf.mxu0
      %v1540 = vadd.f32 0.0, %v1539
      %v1541 = vpop.f32.mrf.mxu0
      %v1542 = vadd.f32 0.0, %v1541
      %1543 = vmatmul.bf16.gmra.mxu0 %v978
      %v1544 = vpop.f32.mrf.mxu0
      %v1545 = vadd.f32 0.0, %v1544
      %v1546 = vpop.f32.mrf.mxu0
      %v1547 = vadd.f32 0.0, %v1546
      %1548 = vmatmul.bf16.gmra.mxu0 %v981
      %v1549 = vpop.f32.mrf.mxu0
      %v1550 = vadd.f32 0.0, %v1549
      %v1551 = vpop.f32.mrf.mxu0
      %v1552 = vadd.f32 0.0, %v1551
      %1553 = vmatmul.bf16.gmra.mxu0 %v984
      %v1554 = vpop.f32.mrf.mxu0
      %v1555 = vadd.f32 0.0, %v1554
      %v1556 = vpop.f32.mrf.mxu0
      %v1557 = vadd.f32 0.0, %v1556
      %1558 = vmatmul.bf16.gmra.mxu0 %v987
      %v1559 = vpop.f32.mrf.mxu0
      %v1560 = vadd.f32 0.0, %v1559
      %v1561 = vpop.f32.mrf.mxu0
      %v1562 = vadd.f32 0.0, %v1561
      %1563 = vmatmul.bf16.gmra.mxu0 %v990
      %v1564 = vpop.f32.mrf.mxu0
      %v1565 = vadd.f32 0.0, %v1564
      %v1566 = vpop.f32.mrf.mxu0
      %v1567 = vadd.f32 0.0, %v1566
      %1568 = vmatmul.bf16.gmra.mxu0 %v993
      %v1569 = vpop.f32.mrf.mxu0
      %v1570 = vadd.f32 0.0, %v1569
      %v1571 = vpop.f32.mrf.mxu0
      %v1572 = vadd.f32 0.0, %v1571
      %1573 = vmatmul.bf16.gmra.mxu0 %v996
      %v1574 = vpop.f32.mrf.mxu0
      %v1575 = vadd.f32 0.0, %v1574
      %v1576 = vpop.f32.mrf.mxu0
      %v1577 = vadd.f32 0.0, %v1576
      %1578 = vmatmul.bf16.gmra.mxu0 %v999
      %v1579 = vpop.f32.mrf.mxu0
      %v1580 = vadd.f32 0.0, %v1579
      %v1581 = vpop.f32.mrf.mxu0
      %v1582 = vadd.f32 0.0, %v1581
      %1583 = vmatmul.bf16.gmra.mxu0 %v1002
      %v1584 = vpop.f32.mrf.mxu0
      %v1585 = vadd.f32 0.0, %v1584
      %v1586 = vpop.f32.mrf.mxu0
      %v1587 = vadd.f32 0.0, %v1586
      %1588 = vmatmul.bf16.gmra.mxu0 %v1005
      %v1589 = vpop.f32.mrf.mxu0
      %v1590 = vadd.f32 0.0, %v1589
      %v1591 = vpop.f32.mrf.mxu0
      %v1592 = vadd.f32 0.0, %v1591
      %1593 = vmatmul.bf16.gmra.mxu0 %v1008
      %v1594 = vpop.f32.mrf.mxu0
      %v1595 = vadd.f32 0.0, %v1594
      %v1596 = vpop.f32.mrf.mxu0
      %v1597 = vadd.f32 0.0, %v1596
      %1598 = vmatmul.bf16.gmra.mxu0 %v1011
      %v1599 = vpop.f32.mrf.mxu0
      %v1600 = vadd.f32 0.0, %v1599
      %v1601 = vpop.f32.mrf.mxu0
      %v1602 = vadd.f32 0.0, %v1601
      %1603 = vmatmul.bf16.gmra.mxu0 %v1014
      %v1604 = vpop.f32.mrf.mxu0
      %v1605 = vadd.f32 0.0, %v1604
      %v1606 = vpop.f32.mrf.mxu0
      %v1607 = vadd.f32 0.0, %v1606
      %1608 = vmatmul.bf16.gmra.mxu0 %v1017
      %v1609 = vpop.f32.mrf.mxu0
      %v1610 = vadd.f32 0.0, %v1609
      %v1611 = vpop.f32.mrf.mxu0
      %v1612 = vadd.f32 0.0, %v1611
      %1613 = vmatmul.bf16.gmra.mxu0 %v1020
      %v1614 = vpop.f32.mrf.mxu0
      %v1615 = vadd.f32 0.0, %v1614
      %v1616 = vpop.f32.mrf.mxu0
      %v1617 = vadd.f32 0.0, %v1616
      %1618 = vmatmul.bf16.gmra.mxu0 %v1023
      %v1619 = vpop.f32.mrf.mxu0
      %v1620 = vadd.f32 0.0, %v1619
      %v1621 = vpop.f32.mrf.mxu0
      %v1622 = vadd.f32 0.0, %v1621
      %1623 = vmatmul.bf16.gmra.mxu0 %v1026
      %v1624 = vpop.f32.mrf.mxu0
      %v1625 = vadd.f32 0.0, %v1624
      %v1626 = vpop.f32.mrf.mxu0
      %v1627 = vadd.f32 0.0, %v1626
      %1628 = vmatmul.bf16.gmra.mxu0 %v1029
      %v1629 = vpop.f32.mrf.mxu0
      %v1630 = vadd.f32 0.0, %v1629
      %v1631 = vpop.f32.mrf.mxu0
      %v1632 = vadd.f32 0.0, %v1631
      %1633 = vdwg.mxu0
      %1634 = vmatpush.bf16.xpose.msra.mxu0 %v1125
      %1635 = vmatpush.bf16.xpose.msra.mxu0 %v1122
      %1636 = vmatpush.bf16.xpose.msra.mxu0 %v1119
      %1637 = vmatpush.bf16.xpose.msra.mxu0 %v1116
      %1638 = vmatpush.bf16.xpose.msra.mxu0 %v1113
      %1639 = vmatpush.bf16.xpose.msra.mxu0 %v1110
      %1640 = vmatpush.bf16.xpose.msra.mxu0 %v1107
      %1641 = vmatpush.bf16.xpose.msra.mxu0 %v1104
      %1642 = vmatmul.bf16.gmra.mxu0 %v936
      %v1643 = vpop.f32.mrf.mxu0
      %v1644 = vadd.f32 0.0, %v1643
      %v1645 = vpop.f32.mrf.mxu0
      %v1646 = vadd.f32 0.0, %v1645
      %1647 = vmatmul.bf16.gmra.mxu0 %v939
      %v1648 = vpop.f32.mrf.mxu0
      %v1649 = vadd.f32 0.0, %v1648
      %v1650 = vpop.f32.mrf.mxu0
      %v1651 = vadd.f32 0.0, %v1650
      %1652 = vmatmul.bf16.gmra.mxu0 %v942
      %v1653 = vpop.f32.mrf.mxu0
      %v1654 = vadd.f32 0.0, %v1653
      %v1655 = vpop.f32.mrf.mxu0
      %v1656 = vadd.f32 0.0, %v1655
      %1657 = vmatmul.bf16.gmra.mxu0 %v945
      %v1658 = vpop.f32.mrf.mxu0
      %v1659 = vadd.f32 0.0, %v1658
      %v1660 = vpop.f32.mrf.mxu0
      %v1661 = vadd.f32 0.0, %v1660
      %1662 = vmatmul.bf16.gmra.mxu0 %v948
      %v1663 = vpop.f32.mrf.mxu0
      %v1664 = vadd.f32 0.0, %v1663
      %v1665 = vpop.f32.mrf.mxu0
      %v1666 = vadd.f32 0.0, %v1665
      %1667 = vmatmul.bf16.gmra.mxu0 %v951
      %v1668 = vpop.f32.mrf.mxu0
      %v1669 = vadd.f32 0.0, %v1668
      %v1670 = vpop.f32.mrf.mxu0
      %v1671 = vadd.f32 0.0, %v1670
      %1672 = vmatmul.bf16.gmra.mxu0 %v954
      %v1673 = vpop.f32.mrf.mxu0
      %v1674 = vadd.f32 0.0, %v1673
      %v1675 = vpop.f32.mrf.mxu0
      %v1676 = vadd.f32 0.0, %v1675
      %1677 = vmatmul.bf16.gmra.mxu0 %v957
      %v1678 = vpop.f32.mrf.mxu0
      %v1679 = vadd.f32 0.0, %v1678
      %v1680 = vpop.f32.mrf.mxu0
      %v1681 = vadd.f32 0.0, %v1680
      %1682 = vmatmul.bf16.gmra.mxu0 %v960
      %v1683 = vpop.f32.mrf.mxu0
      %v1684 = vadd.f32 0.0, %v1683
      %v1685 = vpop.f32.mrf.mxu0
      %v1686 = vadd.f32 0.0, %v1685
      %1687 = vmatmul.bf16.gmra.mxu0 %v963
      %v1688 = vpop.f32.mrf.mxu0
      %v1689 = vadd.f32 0.0, %v1688
      %v1690 = vpop.f32.mrf.mxu0
      %v1691 = vadd.f32 0.0, %v1690
      %1692 = vmatmul.bf16.gmra.mxu0 %v966
      %v1693 = vpop.f32.mrf.mxu0
      %v1694 = vadd.f32 0.0, %v1693
      %v1695 = vpop.f32.mrf.mxu0
      %v1696 = vadd.f32 0.0, %v1695
      %1697 = vmatmul.bf16.gmra.mxu0 %v969
      %v1698 = vpop.f32.mrf.mxu0
      %v1699 = vadd.f32 0.0, %v1698
      %v1700 = vpop.f32.mrf.mxu0
      %v1701 = vadd.f32 0.0, %v1700
      %1702 = vmatmul.bf16.gmra.mxu0 %v972
      %v1703 = vpop.f32.mrf.mxu0
      %v1704 = vadd.f32 0.0, %v1703
      %v1705 = vpop.f32.mrf.mxu0
      %v1706 = vadd.f32 0.0, %v1705
      %1707 = vmatmul.bf16.gmra.mxu0 %v975
      %v1708 = vpop.f32.mrf.mxu0
      %v1709 = vadd.f32 0.0, %v1708
      %v1710 = vpop.f32.mrf.mxu0
      %v1711 = vadd.f32 0.0, %v1710
      %1712 = vmatmul.bf16.gmra.mxu0 %v978
      %v1713 = vpop.f32.mrf.mxu0
      %v1714 = vadd.f32 0.0, %v1713
      %v1715 = vpop.f32.mrf.mxu0
      %v1716 = vadd.f32 0.0, %v1715
      %1717 = vmatmul.bf16.gmra.mxu0 %v981
      %v1718 = vpop.f32.mrf.mxu0
      %v1719 = vadd.f32 0.0, %v1718
      %v1720 = vpop.f32.mrf.mxu0
      %v1721 = vadd.f32 0.0, %v1720
      %1722 = vmatmul.bf16.gmra.mxu0 %v984
      %v1723 = vpop.f32.mrf.mxu0
      %v1724 = vadd.f32 0.0, %v1723
      %v1725 = vpop.f32.mrf.mxu0
      %v1726 = vadd.f32 0.0, %v1725
      %1727 = vmatmul.bf16.gmra.mxu0 %v987
      %v1728 = vpop.f32.mrf.mxu0
      %v1729 = vadd.f32 0.0, %v1728
      %v1730 = vpop.f32.mrf.mxu0
      %v1731 = vadd.f32 0.0, %v1730
      %1732 = vmatmul.bf16.gmra.mxu0 %v990
      %v1733 = vpop.f32.mrf.mxu0
      %v1734 = vadd.f32 0.0, %v1733
      %v1735 = vpop.f32.mrf.mxu0
      %v1736 = vadd.f32 0.0, %v1735
      %1737 = vmatmul.bf16.gmra.mxu0 %v993
      %v1738 = vpop.f32.mrf.mxu0
      %v1739 = vadd.f32 0.0, %v1738
      %v1740 = vpop.f32.mrf.mxu0
      %v1741 = vadd.f32 0.0, %v1740
      %1742 = vmatmul.bf16.gmra.mxu0 %v996
      %v1743 = vpop.f32.mrf.mxu0
      %v1744 = vadd.f32 0.0, %v1743
      %v1745 = vpop.f32.mrf.mxu0
      %v1746 = vadd.f32 0.0, %v1745
      %1747 = vmatmul.bf16.gmra.mxu0 %v999
      %v1748 = vpop.f32.mrf.mxu0
      %v1749 = vadd.f32 0.0, %v1748
      %v1750 = vpop.f32.mrf.mxu0
      %v1751 = vadd.f32 0.0, %v1750
      %1752 = vmatmul.bf16.gmra.mxu0 %v1002
      %v1753 = vpop.f32.mrf.mxu0
      %v1754 = vadd.f32 0.0, %v1753
      %v1755 = vpop.f32.mrf.mxu0
      %v1756 = vadd.f32 0.0, %v1755
      %1757 = vmatmul.bf16.gmra.mxu0 %v1005
      %v1758 = vpop.f32.mrf.mxu0
      %v1759 = vadd.f32 0.0, %v1758
      %v1760 = vpop.f32.mrf.mxu0
      %v1761 = vadd.f32 0.0, %v1760
      %1762 = vmatmul.bf16.gmra.mxu0 %v1008
      %v1763 = vpop.f32.mrf.mxu0
      %v1764 = vadd.f32 0.0, %v1763
      %v1765 = vpop.f32.mrf.mxu0
      %v1766 = vadd.f32 0.0, %v1765
      %1767 = vmatmul.bf16.gmra.mxu0 %v1011
      %v1768 = vpop.f32.mrf.mxu0
      %v1769 = vadd.f32 0.0, %v1768
      %v1770 = vpop.f32.mrf.mxu0
      %v1771 = vadd.f32 0.0, %v1770
      %1772 = vmatmul.bf16.gmra.mxu0 %v1014
      %v1773 = vpop.f32.mrf.mxu0
      %v1774 = vadd.f32 0.0, %v1773
      %v1775 = vpop.f32.mrf.mxu0
      %v1776 = vadd.f32 0.0, %v1775
      %1777 = vmatmul.bf16.gmra.mxu0 %v1017
      %v1778 = vpop.f32.mrf.mxu0
      %v1779 = vadd.f32 0.0, %v1778
      %v1780 = vpop.f32.mrf.mxu0
      %v1781 = vadd.f32 0.0, %v1780
      %1782 = vmatmul.bf16.gmra.mxu0 %v1020
      %v1783 = vpop.f32.mrf.mxu0
      %v1784 = vadd.f32 0.0, %v1783
      %v1785 = vpop.f32.mrf.mxu0
      %v1786 = vadd.f32 0.0, %v1785
      %1787 = vmatmul.bf16.gmra.mxu0 %v1023
      %v1788 = vpop.f32.mrf.mxu0
      %v1789 = vadd.f32 0.0, %v1788
      %v1790 = vpop.f32.mrf.mxu0
      %v1791 = vadd.f32 0.0, %v1790
      %1792 = vmatmul.bf16.gmra.mxu0 %v1026
      %v1793 = vpop.f32.mrf.mxu0
      %v1794 = vadd.f32 0.0, %v1793
      %v1795 = vpop.f32.mrf.mxu0
      %v1796 = vadd.f32 0.0, %v1795
      %1797 = vmatmul.bf16.gmra.mxu0 %v1029
      %v1798 = vpop.f32.mrf.mxu0
      %v1799 = vadd.f32 0.0, %v1798
      %v1800 = vpop.f32.mrf.mxu0
      %v1801 = vadd.f32 0.0, %v1800
      %1802 = vdwg.mxu0
      %v1803 = vmul.f32 %v1137, 0.125
      %v1804 = vmul.f32 %v1306, 0.125
      %v1805 = vmul.f32 %v1475, 0.125
      %v1806 = vmul.f32 %v1644, 0.125
      %v1807 = vmul.f32 %v1139, 0.125
      %v1808 = vmul.f32 %v1308, 0.125
      %v1809 = vmul.f32 %v1477, 0.125
      %v1810 = vmul.f32 %v1646, 0.125
      %v1811 = vmul.f32 %v1142, 0.125
      %v1812 = vmul.f32 %v1311, 0.125
      %v1813 = vmul.f32 %v1480, 0.125
      %v1814 = vmul.f32 %v1649, 0.125
      %v1815 = vmul.f32 %v1144, 0.125
      %v1816 = vmul.f32 %v1313, 0.125
      %v1817 = vmul.f32 %v1482, 0.125
      %v1818 = vmul.f32 %v1651, 0.125
      %v1819 = vmul.f32 %v1147, 0.125
      %v1820 = vmul.f32 %v1316, 0.125
      %v1821 = vmul.f32 %v1485, 0.125
      %v1822 = vmul.f32 %v1654, 0.125
      %v1823 = vmul.f32 %v1149, 0.125
      %v1824 = vmul.f32 %v1318, 0.125
      %v1825 = vmul.f32 %v1487, 0.125
      %v1826 = vmul.f32 %v1656, 0.125
      %v1827 = vmul.f32 %v1152, 0.125
      %v1828 = vmul.f32 %v1321, 0.125
      %v1829 = vmul.f32 %v1490, 0.125
      %v1830 = vmul.f32 %v1659, 0.125
      %v1831 = vmul.f32 %v1154, 0.125
      %v1832 = vmul.f32 %v1323, 0.125
      %v1833 = vmul.f32 %v1492, 0.125
      %v1834 = vmul.f32 %v1661, 0.125
      %v1835 = vmul.f32 %v1157, 0.125
      %v1836 = vmul.f32 %v1326, 0.125
      %v1837 = vmul.f32 %v1495, 0.125
      %v1838 = vmul.f32 %v1664, 0.125
      %v1839 = vmul.f32 %v1159, 0.125
      %v1840 = vmul.f32 %v1328, 0.125
      %v1841 = vmul.f32 %v1497, 0.125
      %v1842 = vmul.f32 %v1666, 0.125
      %v1843 = vmul.f32 %v1162, 0.125
      %v1844 = vmul.f32 %v1331, 0.125
      %v1845 = vmul.f32 %v1500, 0.125
      %v1846 = vmul.f32 %v1669, 0.125
      %v1847 = vmul.f32 %v1164, 0.125
      %v1848 = vmul.f32 %v1333, 0.125
      %v1849 = vmul.f32 %v1502, 0.125
      %v1850 = vmul.f32 %v1671, 0.125
      %v1851 = vmul.f32 %v1167, 0.125
      %v1852 = vmul.f32 %v1336, 0.125
      %v1853 = vmul.f32 %v1505, 0.125
      %v1854 = vmul.f32 %v1674, 0.125
      %v1855 = vmul.f32 %v1169, 0.125
      %v1856 = vmul.f32 %v1338, 0.125
      %v1857 = vmul.f32 %v1507, 0.125
      %v1858 = vmul.f32 %v1676, 0.125
      %v1859 = vmul.f32 %v1172, 0.125
      %v1860 = vmul.f32 %v1341, 0.125
      %v1861 = vmul.f32 %v1510, 0.125
      %v1862 = vmul.f32 %v1679, 0.125
      %v1863 = vmul.f32 %v1174, 0.125
      %v1864 = vmul.f32 %v1343, 0.125
      %v1865 = vmul.f32 %v1512, 0.125
      %v1866 = vmul.f32 %v1681, 0.125
      %v1867 = vmul.f32 %v1177, 0.125
      %v1868 = vmul.f32 %v1346, 0.125
      %v1869 = vmul.f32 %v1515, 0.125
      %v1870 = vmul.f32 %v1684, 0.125
      %v1871 = vmul.f32 %v1179, 0.125
      %v1872 = vmul.f32 %v1348, 0.125
      %v1873 = vmul.f32 %v1517, 0.125
      %v1874 = vmul.f32 %v1686, 0.125
      %v1875 = vmul.f32 %v1182, 0.125
      %v1876 = vmul.f32 %v1351, 0.125
      %v1877 = vmul.f32 %v1520, 0.125
      %v1878 = vmul.f32 %v1689, 0.125
      %v1879 = vmul.f32 %v1184, 0.125
      %v1880 = vmul.f32 %v1353, 0.125
      %v1881 = vmul.f32 %v1522, 0.125
      %v1882 = vmul.f32 %v1691, 0.125
      %v1883 = vmul.f32 %v1187, 0.125
      %v1884 = vmul.f32 %v1356, 0.125
      %v1885 = vmul.f32 %v1525, 0.125
      %v1886 = vmul.f32 %v1694, 0.125
      %v1887 = vmul.f32 %v1189, 0.125
      %v1888 = vmul.f32 %v1358, 0.125
      %v1889 = vmul.f32 %v1527, 0.125
      %v1890 = vmul.f32 %v1696, 0.125
      %v1891 = vmul.f32 %v1192, 0.125
      %v1892 = vmul.f32 %v1361, 0.125
      %v1893 = vmul.f32 %v1530, 0.125
      %v1894 = vmul.f32 %v1699, 0.125
      %v1895 = vmul.f32 %v1194, 0.125
      %v1896 = vmul.f32 %v1363, 0.125
      %v1897 = vmul.f32 %v1532, 0.125
      %v1898 = vmul.f32 %v1701, 0.125
      %v1899 = vmul.f32 %v1197, 0.125
      %v1900 = vmul.f32 %v1366, 0.125
      %v1901 = vmul.f32 %v1535, 0.125
      %v1902 = vmul.f32 %v1704, 0.125
      %v1903 = vmul.f32 %v1199, 0.125
      %v1904 = vmul.f32 %v1368, 0.125
      %v1905 = vmul.f32 %v1537, 0.125
      %v1906 = vmul.f32 %v1706, 0.125
      %v1907 = vmul.f32 %v1202, 0.125
      %v1908 = vmul.f32 %v1371, 0.125
      %v1909 = vmul.f32 %v1540, 0.125
      %v1910 = vmul.f32 %v1709, 0.125
      %v1911 = vmul.f32 %v1204, 0.125
      %v1912 = vmul.f32 %v1373, 0.125
      %v1913 = vmul.f32 %v1542, 0.125
      %v1914 = vmul.f32 %v1711, 0.125
      %v1915 = vmul.f32 %v1207, 0.125
      %v1916 = vmul.f32 %v1376, 0.125
      %v1917 = vmul.f32 %v1545, 0.125
      %v1918 = vmul.f32 %v1714, 0.125
      %v1919 = vmul.f32 %v1209, 0.125
      %v1920 = vmul.f32 %v1378, 0.125
      %v1921 = vmul.f32 %v1547, 0.125
      %v1922 = vmul.f32 %v1716, 0.125
      %v1923 = vmul.f32 %v1212, 0.125
      %v1924 = vmul.f32 %v1381, 0.125
      %v1925 = vmul.f32 %v1550, 0.125
      %v1926 = vmul.f32 %v1719, 0.125
      %v1927 = vmul.f32 %v1214, 0.125
      %v1928 = vmul.f32 %v1383, 0.125
      %v1929 = vmul.f32 %v1552, 0.125
      %v1930 = vmul.f32 %v1721, 0.125
      %v1931 = vmul.f32 %v1217, 0.125
      %v1932 = vmul.f32 %v1386, 0.125
      %v1933 = vmul.f32 %v1555, 0.125
      %v1934 = vmul.f32 %v1724, 0.125
      %v1935 = vmul.f32 %v1219, 0.125
      %v1936 = vmul.f32 %v1388, 0.125
      %v1937 = vmul.f32 %v1557, 0.125
      %v1938 = vmul.f32 %v1726, 0.125
      %v1939 = vmul.f32 %v1222, 0.125
      %v1940 = vmul.f32 %v1391, 0.125
      %v1941 = vmul.f32 %v1560, 0.125
      %v1942 = vmul.f32 %v1729, 0.125
      %v1943 = vmul.f32 %v1224, 0.125
      %v1944 = vmul.f32 %v1393, 0.125
      %v1945 = vmul.f32 %v1562, 0.125
      %v1946 = vmul.f32 %v1731, 0.125
      %v1947 = vmul.f32 %v1227, 0.125
      %v1948 = vmul.f32 %v1396, 0.125
      %v1949 = vmul.f32 %v1565, 0.125
      %v1950 = vmul.f32 %v1734, 0.125
      %v1951 = vmul.f32 %v1229, 0.125
      %v1952 = vmul.f32 %v1398, 0.125
      %v1953 = vmul.f32 %v1567, 0.125
      %v1954 = vmul.f32 %v1736, 0.125
      %v1955 = vmul.f32 %v1232, 0.125
      %v1956 = vmul.f32 %v1401, 0.125
      %v1957 = vmul.f32 %v1570, 0.125
      %v1958 = vmul.f32 %v1739, 0.125
      %v1959 = vmul.f32 %v1234, 0.125
      %v1960 = vmul.f32 %v1403, 0.125
      %v1961 = vmul.f32 %v1572, 0.125
      %v1962 = vmul.f32 %v1741, 0.125
      %v1963 = vmul.f32 %v1237, 0.125
      %v1964 = vmul.f32 %v1406, 0.125
      %v1965 = vmul.f32 %v1575, 0.125
      %v1966 = vmul.f32 %v1744, 0.125
      %v1967 = vmul.f32 %v1239, 0.125
      %v1968 = vmul.f32 %v1408, 0.125
      %v1969 = vmul.f32 %v1577, 0.125
      %v1970 = vmul.f32 %v1746, 0.125
      %v1971 = vmul.f32 %v1242, 0.125
      %v1972 = vmul.f32 %v1411, 0.125
      %v1973 = vmul.f32 %v1580, 0.125
      %v1974 = vmul.f32 %v1749, 0.125
      %v1975 = vmul.f32 %v1244, 0.125
      %v1976 = vmul.f32 %v1413, 0.125
      %v1977 = vmul.f32 %v1582, 0.125
      %v1978 = vmul.f32 %v1751, 0.125
      %v1979 = vmul.f32 %v1247, 0.125
      %v1980 = vmul.f32 %v1416, 0.125
      %v1981 = vmul.f32 %v1585, 0.125
      %v1982 = vmul.f32 %v1754, 0.125
      %v1983 = vmul.f32 %v1249, 0.125
      %v1984 = vmul.f32 %v1418, 0.125
      %v1985 = vmul.f32 %v1587, 0.125
      %v1986 = vmul.f32 %v1756, 0.125
      %v1987 = vmul.f32 %v1252, 0.125
      %v1988 = vmul.f32 %v1421, 0.125
      %v1989 = vmul.f32 %v1590, 0.125
      %v1990 = vmul.f32 %v1759, 0.125
      %v1991 = vmul.f32 %v1254, 0.125
      %v1992 = vmul.f32 %v1423, 0.125
      %v1993 = vmul.f32 %v1592, 0.125
      %v1994 = vmul.f32 %v1761, 0.125
      %v1995 = vmul.f32 %v1257, 0.125
      %v1996 = vmul.f32 %v1426, 0.125
      %v1997 = vmul.f32 %v1595, 0.125
      %v1998 = vmul.f32 %v1764, 0.125
      %v1999 = vmul.f32 %v1259, 0.125
      %v2000 = vmul.f32 %v1428, 0.125
      %v2001 = vmul.f32 %v1597, 0.125
      %v2002 = vmul.f32 %v1766, 0.125
      %v2003 = vmul.f32 %v1262, 0.125
      %v2004 = vmul.f32 %v1431, 0.125
      %v2005 = vmul.f32 %v1600, 0.125
      %v2006 = vmul.f32 %v1769, 0.125
      %v2007 = vmul.f32 %v1264, 0.125
      %v2008 = vmul.f32 %v1433, 0.125
      %v2009 = vmul.f32 %v1602, 0.125
      %v2010 = vmul.f32 %v1771, 0.125
      %v2011 = vmul.f32 %v1267, 0.125
      %v2012 = vmul.f32 %v1436, 0.125
      %v2013 = vmul.f32 %v1605, 0.125
      %v2014 = vmul.f32 %v1774, 0.125
      %v2015 = vmul.f32 %v1269, 0.125
      %v2016 = vmul.f32 %v1438, 0.125
      %v2017 = vmul.f32 %v1607, 0.125
      %v2018 = vmul.f32 %v1776, 0.125
      %v2019 = vmul.f32 %v1272, 0.125
      %v2020 = vmul.f32 %v1441, 0.125
      %v2021 = vmul.f32 %v1610, 0.125
      %v2022 = vmul.f32 %v1779, 0.125
      %v2023 = vmul.f32 %v1274, 0.125
      %v2024 = vmul.f32 %v1443, 0.125
      %v2025 = vmul.f32 %v1612, 0.125
      %v2026 = vmul.f32 %v1781, 0.125
      %v2027 = vmul.f32 %v1277, 0.125
      %v2028 = vmul.f32 %v1446, 0.125
      %v2029 = vmul.f32 %v1615, 0.125
      %v2030 = vmul.f32 %v1784, 0.125
      %v2031 = vmul.f32 %v1279, 0.125
      %v2032 = vmul.f32 %v1448, 0.125
      %v2033 = vmul.f32 %v1617, 0.125
      %v2034 = vmul.f32 %v1786, 0.125
      %v2035 = vmul.f32 %v1282, 0.125
      %v2036 = vmul.f32 %v1451, 0.125
      %v2037 = vmul.f32 %v1620, 0.125
      %v2038 = vmul.f32 %v1789, 0.125
      %v2039 = vmul.f32 %v1284, 0.125
      %v2040 = vmul.f32 %v1453, 0.125
      %v2041 = vmul.f32 %v1622, 0.125
      %v2042 = vmul.f32 %v1791, 0.125
      %v2043 = vmul.f32 %v1287, 0.125
      %v2044 = vmul.f32 %v1456, 0.125
      %v2045 = vmul.f32 %v1625, 0.125
      %v2046 = vmul.f32 %v1794, 0.125
      %v2047 = vmul.f32 %v1289, 0.125
      %v2048 = vmul.f32 %v1458, 0.125
      %v2049 = vmul.f32 %v1627, 0.125
      %v2050 = vmul.f32 %v1796, 0.125
      %v2051 = vmul.f32 %v1292, 0.125
      %v2052 = vmul.f32 %v1461, 0.125
      %v2053 = vmul.f32 %v1630, 0.125
      %v2054 = vmul.f32 %v1799, 0.125
      %v2055 = vmul.f32 %v1294, 0.125
      %v2056 = vmul.f32 %v1463, 0.125
      %v2057 = vmul.f32 %v1632, 0.125
      %v2058 = vmul.f32 %v1801, 0.125
      %v2059 = vld [vmem:[#allocation2] sm:$0xff]
      %v2060 = vld [vmem:[#allocation2 + $0x8] sm:$0xff]
      %v2061 = vld [vmem:[#allocation2 + $0x10] sm:$0xff]
      %v2062 = vld [vmem:[#allocation2 + $0x18] sm:$0xff]
      %v2063 = vld [vmem:[#allocation2 + $0x20] sm:$0xff]
      %v2064 = vld [vmem:[#allocation2 + $0x28] sm:$0xff]
      %v2065 = vld [vmem:[#allocation2 + $0x30] sm:$0xff]
      %v2066 = vld [vmem:[#allocation2 + $0x38] sm:$0xff]
      %v2067 = vld [vmem:[#allocation2 + $0x40] sm:$0xff]
      %v2068 = vld [vmem:[#allocation2 + $0x48] sm:$0xff]
      %v2069 = vld [vmem:[#allocation2 + $0x50] sm:$0xff]
      %v2070 = vld [vmem:[#allocation2 + $0x58] sm:$0xff]
      %v2071 = vld [vmem:[#allocation2 + $0x60] sm:$0xff]
      %v2072 = vld [vmem:[#allocation2 + $0x68] sm:$0xff]
      %v2073 = vld [vmem:[#allocation2 + $0x70] sm:$0xff]
      %v2074 = vld [vmem:[#allocation2 + $0x78] sm:$0xff]
      %v2075 = vld [vmem:[#allocation2 + $0x80] sm:$0xff]
      %v2076 = vld [vmem:[#allocation2 + $0x88] sm:$0xff]
      %v2077 = vld [vmem:[#allocation2 + $0x90] sm:$0xff]
      %v2078 = vld [vmem:[#allocation2 + $0x98] sm:$0xff]
      %v2079 = vld [vmem:[#allocation2 + $0xa0] sm:$0xff]
      %v2080 = vld [vmem:[#allocation2 + $0xa8] sm:$0xff]
      %v2081 = vld [vmem:[#allocation2 + $0xb0] sm:$0xff]
      %v2082 = vld [vmem:[#allocation2 + $0xb8] sm:$0xff]
      %v2083 = vld [vmem:[#allocation2 + $0xc0] sm:$0xff]
      %v2084 = vld [vmem:[#allocation2 + $0xc8] sm:$0xff]
      %v2085 = vld [vmem:[#allocation2 + $0xd0] sm:$0xff]
      %v2086 = vld [vmem:[#allocation2 + $0xd8] sm:$0xff]
      %v2087 = vld [vmem:[#allocation2 + $0xe0] sm:$0xff]
      %v2088 = vld [vmem:[#allocation2 + $0xe8] sm:$0xff]
      %v2089 = vld [vmem:[#allocation2 + $0xf0] sm:$0xff]
      %v2090 = vld [vmem:[#allocation2 + $0xf8] sm:$0xff]
      %v2091 = vld [vmem:[#allocation2 + $0x100] sm:$0xff]
      %v2092 = vld [vmem:[#allocation2 + $0x108] sm:$0xff]
      %v2093 = vld [vmem:[#allocation2 + $0x110] sm:$0xff]
      %v2094 = vld [vmem:[#allocation2 + $0x118] sm:$0xff]
      %v2095 = vld [vmem:[#allocation2 + $0x120] sm:$0xff]
      %v2096 = vld [vmem:[#allocation2 + $0x128] sm:$0xff]
      %v2097 = vld [vmem:[#allocation2 + $0x130] sm:$0xff]
      %v2098 = vld [vmem:[#allocation2 + $0x138] sm:$0xff]
      %v2099 = vld [vmem:[#allocation2 + $0x140] sm:$0xff]
      %v2100 = vld [vmem:[#allocation2 + $0x148] sm:$0xff]
      %v2101 = vld [vmem:[#allocation2 + $0x150] sm:$0xff]
      %v2102 = vld [vmem:[#allocation2 + $0x158] sm:$0xff]
      %v2103 = vld [vmem:[#allocation2 + $0x160] sm:$0xff]
      %v2104 = vld [vmem:[#allocation2 + $0x168] sm:$0xff]
      %v2105 = vld [vmem:[#allocation2 + $0x170] sm:$0xff]
      %v2106 = vld [vmem:[#allocation2 + $0x178] sm:$0xff]
      %v2107 = vld [vmem:[#allocation2 + $0x180] sm:$0xff]
      %v2108 = vld [vmem:[#allocation2 + $0x188] sm:$0xff]
      %v2109 = vld [vmem:[#allocation2 + $0x190] sm:$0xff]
      %v2110 = vld [vmem:[#allocation2 + $0x198] sm:$0xff]
      %v2111 = vld [vmem:[#allocation2 + $0x1a0] sm:$0xff]
      %v2112 = vld [vmem:[#allocation2 + $0x1a8] sm:$0xff]
      %v2113 = vld [vmem:[#allocation2 + $0x1b0] sm:$0xff]
      %v2114 = vld [vmem:[#allocation2 + $0x1b8] sm:$0xff]
      %v2115 = vld [vmem:[#allocation2 + $0x1c0] sm:$0xff]
      %v2116 = vld [vmem:[#allocation2 + $0x1c8] sm:$0xff]
      %v2117 = vld [vmem:[#allocation2 + $0x1d0] sm:$0xff]
      %v2118 = vld [vmem:[#allocation2 + $0x1d8] sm:$0xff]
      %v2119 = vld [vmem:[#allocation2 + $0x1e0] sm:$0xff]
      %v2120 = vld [vmem:[#allocation2 + $0x1e8] sm:$0xff]
      %v2121 = vld [vmem:[#allocation2 + $0x1f0] sm:$0xff]
      %v2122 = vld [vmem:[#allocation2 + $0x1f8] sm:$0xff]
      %v2123 = vld [vmem:[#allocation3] sm:$0xff]
      %v2124 = vld [vmem:[#allocation3 + $0x8] sm:$0xff]
      %v2125 = vld [vmem:[#allocation3 + $0x10] sm:$0xff]
      %v2126 = vld [vmem:[#allocation3 + $0x18] sm:$0xff]
      %v2127 = vld [vmem:[#allocation3 + $0x20] sm:$0xff]
      %v2128 = vld [vmem:[#allocation3 + $0x28] sm:$0xff]
      %v2129 = vld [vmem:[#allocation3 + $0x30] sm:$0xff]
      %v2130 = vld [vmem:[#allocation3 + $0x38] sm:$0xff]
      %v2131 = vld [vmem:[#allocation3 + $0x40] sm:$0xff]
      %v2132 = vld [vmem:[#allocation3 + $0x48] sm:$0xff]
      %v2133 = vld [vmem:[#allocation3 + $0x50] sm:$0xff]
      %v2134 = vld [vmem:[#allocation3 + $0x58] sm:$0xff]
      %v2135 = vld [vmem:[#allocation3 + $0x60] sm:$0xff]
      %v2136 = vld [vmem:[#allocation3 + $0x68] sm:$0xff]
      %v2137 = vld [vmem:[#allocation3 + $0x70] sm:$0xff]
      %v2138 = vld [vmem:[#allocation3 + $0x78] sm:$0xff]
      %v2139 = vld [vmem:[#allocation3 + $0x80] sm:$0xff]
      %v2140 = vld [vmem:[#allocation3 + $0x88] sm:$0xff]
      %v2141 = vld [vmem:[#allocation3 + $0x90] sm:$0xff]
      %v2142 = vld [vmem:[#allocation3 + $0x98] sm:$0xff]
      %v2143 = vld [vmem:[#allocation3 + $0xa0] sm:$0xff]
      %v2144 = vld [vmem:[#allocation3 + $0xa8] sm:$0xff]
      %v2145 = vld [vmem:[#allocation3 + $0xb0] sm:$0xff]
      %v2146 = vld [vmem:[#allocation3 + $0xb8] sm:$0xff]
      %v2147 = vld [vmem:[#allocation3 + $0xc0] sm:$0xff]
      %v2148 = vld [vmem:[#allocation3 + $0xc8] sm:$0xff]
      %v2149 = vld [vmem:[#allocation3 + $0xd0] sm:$0xff]
      %v2150 = vld [vmem:[#allocation3 + $0xd8] sm:$0xff]
      %v2151 = vld [vmem:[#allocation3 + $0xe0] sm:$0xff]
      %v2152 = vld [vmem:[#allocation3 + $0xe8] sm:$0xff]
      %v2153 = vld [vmem:[#allocation3 + $0xf0] sm:$0xff]
      %v2154 = vld [vmem:[#allocation3 + $0xf8] sm:$0xff]
      %v2155 = vld [vmem:[#allocation3 + $0x100] sm:$0xff]
      %v2156 = vld [vmem:[#allocation3 + $0x108] sm:$0xff]
      %v2157 = vld [vmem:[#allocation3 + $0x110] sm:$0xff]
      %v2158 = vld [vmem:[#allocation3 + $0x118] sm:$0xff]
      %v2159 = vld [vmem:[#allocation3 + $0x120] sm:$0xff]
      %v2160 = vld [vmem:[#allocation3 + $0x128] sm:$0xff]
      %v2161 = vld [vmem:[#allocation3 + $0x130] sm:$0xff]
      %v2162 = vld [vmem:[#allocation3 + $0x138] sm:$0xff]
      %v2163 = vld [vmem:[#allocation3 + $0x140] sm:$0xff]
      %v2164 = vld [vmem:[#allocation3 + $0x148] sm:$0xff]
      %v2165 = vld [vmem:[#allocation3 + $0x150] sm:$0xff]
      %v2166 = vld [vmem:[#allocation3 + $0x158] sm:$0xff]
      %v2167 = vld [vmem:[#allocation3 + $0x160] sm:$0xff]
      %v2168 = vld [vmem:[#allocation3 + $0x168] sm:$0xff]
      %v2169 = vld [vmem:[#allocation3 + $0x170] sm:$0xff]
      %v2170 = vld [vmem:[#allocation3 + $0x178] sm:$0xff]
      %v2171 = vld [vmem:[#allocation3 + $0x180] sm:$0xff]
      %v2172 = vld [vmem:[#allocation3 + $0x188] sm:$0xff]
      %v2173 = vld [vmem:[#allocation3 + $0x190] sm:$0xff]
      %v2174 = vld [vmem:[#allocation3 + $0x198] sm:$0xff]
      %v2175 = vld [vmem:[#allocation3 + $0x1a0] sm:$0xff]
      %v2176 = vld [vmem:[#allocation3 + $0x1a8] sm:$0xff]
      %v2177 = vld [vmem:[#allocation3 + $0x1b0] sm:$0xff]
      %v2178 = vld [vmem:[#allocation3 + $0x1b8] sm:$0xff]
      %v2179 = vld [vmem:[#allocation3 + $0x1c0] sm:$0xff]
      %v2180 = vld [vmem:[#allocation3 + $0x1c8] sm:$0xff]
      %v2181 = vld [vmem:[#allocation3 + $0x1d0] sm:$0xff]
      %v2182 = vld [vmem:[#allocation3 + $0x1d8] sm:$0xff]
      %v2183 = vld [vmem:[#allocation3 + $0x1e0] sm:$0xff]
      %v2184 = vld [vmem:[#allocation3 + $0x1e8] sm:$0xff]
      %v2185 = vld [vmem:[#allocation3 + $0x1f0] sm:$0xff]
      %v2186 = vld [vmem:[#allocation3 + $0x1f8] sm:$0xff]
      %v2187 = vmax.f32 %v1803, %v1804
      %v2188 = vmax.f32 %v2187, %v1805
      %v2189 = vmax.f32 %v2188, %v1806
      %2190 = vmax.xlane.f32.xlu0 %v2189
      %v2191 = vpop.xlane.xlu0 %2190
      %v2192 = vmax.f32 %v1807, %v1808
      %v2193 = vmax.f32 %v2192, %v1809
      %v2194 = vmax.f32 %v2193, %v1810
      %2195 = vmax.xlane.f32.xlu0 %v2194
      %v2196 = vpop.xlane.xlu0 %2195
      %v2197 = vmax.f32 %v1811, %v1812
      %v2198 = vmax.f32 %v2197, %v1813
      %v2199 = vmax.f32 %v2198, %v1814
      %2200 = vmax.xlane.f32.xlu0 %v2199
      %v2201 = vpop.xlane.xlu0 %2200
      %v2202 = vmax.f32 %v1815, %v1816
      %v2203 = vmax.f32 %v2202, %v1817
      %v2204 = vmax.f32 %v2203, %v1818
      %2205 = vmax.xlane.f32.xlu0 %v2204
      %v2206 = vpop.xlane.xlu0 %2205
      %v2207 = vmax.f32 %v1819, %v1820
      %v2208 = vmax.f32 %v2207, %v1821
      %v2209 = vmax.f32 %v2208, %v1822
      %2210 = vmax.xlane.f32.xlu0 %v2209
      %v2211 = vpop.xlane.xlu0 %2210
      %v2212 = vmax.f32 %v1823, %v1824
      %v2213 = vmax.f32 %v2212, %v1825
      %v2214 = vmax.f32 %v2213, %v1826
      %2215 = vmax.xlane.f32.xlu0 %v2214
      %v2216 = vpop.xlane.xlu0 %2215
      %v2217 = vmax.f32 %v1827, %v1828
      %v2218 = vmax.f32 %v2217, %v1829
      %v2219 = vmax.f32 %v2218, %v1830
      %2220 = vmax.xlane.f32.xlu0 %v2219
      %v2221 = vpop.xlane.xlu0 %2220
      %v2222 = vmax.f32 %v1831, %v1832
      %v2223 = vmax.f32 %v2222, %v1833
      %v2224 = vmax.f32 %v2223, %v1834
      %2225 = vmax.xlane.f32.xlu0 %v2224
      %v2226 = vpop.xlane.xlu0 %2225
      %v2227 = vmax.f32 %v1835, %v1836
      %v2228 = vmax.f32 %v2227, %v1837
      %v2229 = vmax.f32 %v2228, %v1838
      %2230 = vmax.xlane.f32.xlu0 %v2229
      %v2231 = vpop.xlane.xlu0 %2230
      %v2232 = vmax.f32 %v1839, %v1840
      %v2233 = vmax.f32 %v2232, %v1841
      %v2234 = vmax.f32 %v2233, %v1842
      %2235 = vmax.xlane.f32.xlu0 %v2234
      %v2236 = vpop.xlane.xlu0 %2235
      %v2237 = vmax.f32 %v1843, %v1844
      %v2238 = vmax.f32 %v2237, %v1845
      %v2239 = vmax.f32 %v2238, %v1846
      %2240 = vmax.xlane.f32.xlu0 %v2239
      %v2241 = vpop.xlane.xlu0 %2240
      %v2242 = vmax.f32 %v1847, %v1848
      %v2243 = vmax.f32 %v2242, %v1849
      %v2244 = vmax.f32 %v2243, %v1850
      %2245 = vmax.xlane.f32.xlu0 %v2244
      %v2246 = vpop.xlane.xlu0 %2245
      %v2247 = vmax.f32 %v1851, %v1852
      %v2248 = vmax.f32 %v2247, %v1853
      %v2249 = vmax.f32 %v2248, %v1854
      %2250 = vmax.xlane.f32.xlu0 %v2249
      %v2251 = vpop.xlane.xlu0 %2250
      %v2252 = vmax.f32 %v1855, %v1856
      %v2253 = vmax.f32 %v2252, %v1857
      %v2254 = vmax.f32 %v2253, %v1858
      %2255 = vmax.xlane.f32.xlu0 %v2254
      %v2256 = vpop.xlane.xlu0 %2255
      %v2257 = vmax.f32 %v1859, %v1860
      %v2258 = vmax.f32 %v2257, %v1861
      %v2259 = vmax.f32 %v2258, %v1862
      %2260 = vmax.xlane.f32.xlu0 %v2259
      %v2261 = vpop.xlane.xlu0 %2260
      %v2262 = vmax.f32 %v1863, %v1864
      %v2263 = vmax.f32 %v2262, %v1865
      %v2264 = vmax.f32 %v2263, %v1866
      %2265 = vmax.xlane.f32.xlu0 %v2264
      %v2266 = vpop.xlane.xlu0 %2265
      %v2267 = vmax.f32 %v1867, %v1868
      %v2268 = vmax.f32 %v2267, %v1869
      %v2269 = vmax.f32 %v2268, %v1870
      %2270 = vmax.xlane.f32.xlu0 %v2269
      %v2271 = vpop.xlane.xlu0 %2270
      %v2272 = vmax.f32 %v1871, %v1872
      %v2273 = vmax.f32 %v2272, %v1873
      %v2274 = vmax.f32 %v2273, %v1874
      %2275 = vmax.xlane.f32.xlu0 %v2274
      %v2276 = vpop.xlane.xlu0 %2275
      %v2277 = vmax.f32 %v1875, %v1876
      %v2278 = vmax.f32 %v2277, %v1877
      %v2279 = vmax.f32 %v2278, %v1878
      %2280 = vmax.xlane.f32.xlu0 %v2279
      %v2281 = vpop.xlane.xlu0 %2280
      %v2282 = vmax.f32 %v1879, %v1880
      %v2283 = vmax.f32 %v2282, %v1881
      %v2284 = vmax.f32 %v2283, %v1882
      %2285 = vmax.xlane.f32.xlu0 %v2284
      %v2286 = vpop.xlane.xlu0 %2285
      %v2287 = vmax.f32 %v1883, %v1884
      %v2288 = vmax.f32 %v2287, %v1885
      %v2289 = vmax.f32 %v2288, %v1886
      %2290 = vmax.xlane.f32.xlu0 %v2289
      %v2291 = vpop.xlane.xlu0 %2290
      %v2292 = vmax.f32 %v1887, %v1888
      %v2293 = vmax.f32 %v2292, %v1889
      %v2294 = vmax.f32 %v2293, %v1890
      %2295 = vmax.xlane.f32.xlu0 %v2294
      %v2296 = vpop.xlane.xlu0 %2295
      %v2297 = vmax.f32 %v1891, %v1892
      %v2298 = vmax.f32 %v2297, %v1893
      %v2299 = vmax.f32 %v2298, %v1894
      %2300 = vmax.xlane.f32.xlu0 %v2299
      %v2301 = vpop.xlane.xlu0 %2300
      %v2302 = vmax.f32 %v1895, %v1896
      %v2303 = vmax.f32 %v2302, %v1897
      %v2304 = vmax.f32 %v2303, %v1898
      %2305 = vmax.xlane.f32.xlu0 %v2304
      %v2306 = vpop.xlane.xlu0 %2305
      %v2307 = vmax.f32 %v1899, %v1900
      %v2308 = vmax.f32 %v2307, %v1901
      %v2309 = vmax.f32 %v2308, %v1902
      %2310 = vmax.xlane.f32.xlu0 %v2309
      %v2311 = vpop.xlane.xlu0 %2310
      %v2312 = vmax.f32 %v1903, %v1904
      %v2313 = vmax.f32 %v2312, %v1905
      %v2314 = vmax.f32 %v2313, %v1906
      %2315 = vmax.xlane.f32.xlu0 %v2314
      %v2316 = vpop.xlane.xlu0 %2315
      %v2317 = vmax.f32 %v1907, %v1908
      %v2318 = vmax.f32 %v2317, %v1909
      %v2319 = vmax.f32 %v2318, %v1910
      %2320 = vmax.xlane.f32.xlu0 %v2319
      %v2321 = vpop.xlane.xlu0 %2320
      %v2322 = vmax.f32 %v1911, %v1912
      %v2323 = vmax.f32 %v2322, %v1913
      %v2324 = vmax.f32 %v2323, %v1914
      %2325 = vmax.xlane.f32.xlu0 %v2324
      %v2326 = vpop.xlane.xlu0 %2325
      %v2327 = vmax.f32 %v1915, %v1916
      %v2328 = vmax.f32 %v2327, %v1917
      %v2329 = vmax.f32 %v2328, %v1918
      %2330 = vmax.xlane.f32.xlu0 %v2329
      %v2331 = vpop.xlane.xlu0 %2330
      %v2332 = vmax.f32 %v1919, %v1920
      %v2333 = vmax.f32 %v2332, %v1921
      %v2334 = vmax.f32 %v2333, %v1922
      %2335 = vmax.xlane.f32.xlu0 %v2334
      %v2336 = vpop.xlane.xlu0 %2335
      %v2337 = vmax.f32 %v1923, %v1924
      %v2338 = vmax.f32 %v2337, %v1925
      %v2339 = vmax.f32 %v2338, %v1926
      %2340 = vmax.xlane.f32.xlu0 %v2339
      %v2341 = vpop.xlane.xlu0 %2340
      %v2342 = vmax.f32 %v1927, %v1928
      %v2343 = vmax.f32 %v2342, %v1929
      %v2344 = vmax.f32 %v2343, %v1930
      %2345 = vmax.xlane.f32.xlu0 %v2344
      %v2346 = vpop.xlane.xlu0 %2345
      %v2347 = vmax.f32 %v1931, %v1932
      %v2348 = vmax.f32 %v2347, %v1933
      %v2349 = vmax.f32 %v2348, %v1934
      %2350 = vmax.xlane.f32.xlu0 %v2349
      %v2351 = vpop.xlane.xlu0 %2350
      %v2352 = vmax.f32 %v1935, %v1936
      %v2353 = vmax.f32 %v2352, %v1937
      %v2354 = vmax.f32 %v2353, %v1938
      %2355 = vmax.xlane.f32.xlu0 %v2354
      %v2356 = vpop.xlane.xlu0 %2355
      %v2357 = vmax.f32 %v1939, %v1940
      %v2358 = vmax.f32 %v2357, %v1941
      %v2359 = vmax.f32 %v2358, %v1942
      %2360 = vmax.xlane.f32.xlu0 %v2359
      %v2361 = vpop.xlane.xlu0 %2360
      %v2362 = vmax.f32 %v1943, %v1944
      %v2363 = vmax.f32 %v2362, %v1945
      %v2364 = vmax.f32 %v2363, %v1946
      %2365 = vmax.xlane.f32.xlu0 %v2364
      %v2366 = vpop.xlane.xlu0 %2365
      %v2367 = vmax.f32 %v1947, %v1948
      %v2368 = vmax.f32 %v2367, %v1949
      %v2369 = vmax.f32 %v2368, %v1950
      %2370 = vmax.xlane.f32.xlu0 %v2369
      %v2371 = vpop.xlane.xlu0 %2370
      %v2372 = vmax.f32 %v1951, %v1952
      %v2373 = vmax.f32 %v2372, %v1953
      %v2374 = vmax.f32 %v2373, %v1954
      %2375 = vmax.xlane.f32.xlu0 %v2374
      %v2376 = vpop.xlane.xlu0 %2375
      %v2377 = vmax.f32 %v1955, %v1956
      %v2378 = vmax.f32 %v2377, %v1957
      %v2379 = vmax.f32 %v2378, %v1958
      %2380 = vmax.xlane.f32.xlu0 %v2379
      %v2381 = vpop.xlane.xlu0 %2380
      %v2382 = vmax.f32 %v1959, %v1960
      %v2383 = vmax.f32 %v2382, %v1961
      %v2384 = vmax.f32 %v2383, %v1962
      %2385 = vmax.xlane.f32.xlu0 %v2384
      %v2386 = vpop.xlane.xlu0 %2385
      %v2387 = vmax.f32 %v1963, %v1964
      %v2388 = vmax.f32 %v2387, %v1965
      %v2389 = vmax.f32 %v2388, %v1966
      %2390 = vmax.xlane.f32.xlu0 %v2389
      %v2391 = vpop.xlane.xlu0 %2390
      %v2392 = vmax.f32 %v1967, %v1968
      %v2393 = vmax.f32 %v2392, %v1969
      %v2394 = vmax.f32 %v2393, %v1970
      %2395 = vmax.xlane.f32.xlu0 %v2394
      %v2396 = vpop.xlane.xlu0 %2395
      %v2397 = vmax.f32 %v1971, %v1972
      %v2398 = vmax.f32 %v2397, %v1973
      %v2399 = vmax.f32 %v2398, %v1974
      %2400 = vmax.xlane.f32.xlu0 %v2399
      %v2401 = vpop.xlane.xlu0 %2400
      %v2402 = vmax.f32 %v1975, %v1976
      %v2403 = vmax.f32 %v2402, %v1977
      %v2404 = vmax.f32 %v2403, %v1978
      %2405 = vmax.xlane.f32.xlu0 %v2404
      %v2406 = vpop.xlane.xlu0 %2405
      %v2407 = vmax.f32 %v1979, %v1980
      %v2408 = vmax.f32 %v2407, %v1981
      %v2409 = vmax.f32 %v2408, %v1982
      %2410 = vmax.xlane.f32.xlu0 %v2409
      %v2411 = vpop.xlane.xlu0 %2410
      %v2412 = vmax.f32 %v1983, %v1984
      %v2413 = vmax.f32 %v2412, %v1985
      %v2414 = vmax.f32 %v2413, %v1986
      %2415 = vmax.xlane.f32.xlu0 %v2414
      %v2416 = vpop.xlane.xlu0 %2415
      %v2417 = vmax.f32 %v1987, %v1988
      %v2418 = vmax.f32 %v2417, %v1989
      %v2419 = vmax.f32 %v2418, %v1990
      %2420 = vmax.xlane.f32.xlu0 %v2419
      %v2421 = vpop.xlane.xlu0 %2420
      %v2422 = vmax.f32 %v1991, %v1992
      %v2423 = vmax.f32 %v2422, %v1993
      %v2424 = vmax.f32 %v2423, %v1994
      %2425 = vmax.xlane.f32.xlu0 %v2424
      %v2426 = vpop.xlane.xlu0 %2425
      %v2427 = vmax.f32 %v1995, %v1996
      %v2428 = vmax.f32 %v2427, %v1997
      %v2429 = vmax.f32 %v2428, %v1998
      %2430 = vmax.xlane.f32.xlu0 %v2429
      %v2431 = vpop.xlane.xlu0 %2430
      %v2432 = vmax.f32 %v1999, %v2000
      %v2433 = vmax.f32 %v2432, %v2001
      %v2434 = vmax.f32 %v2433, %v2002
      %2435 = vmax.xlane.f32.xlu0 %v2434
      %v2436 = vpop.xlane.xlu0 %2435
      %v2437 = vmax.f32 %v2003, %v2004
      %v2438 = vmax.f32 %v2437, %v2005
      %v2439 = vmax.f32 %v2438, %v2006
      %2440 = vmax.xlane.f32.xlu0 %v2439
      %v2441 = vpop.xlane.xlu0 %2440
      %v2442 = vmax.f32 %v2007, %v2008
      %v2443 = vmax.f32 %v2442, %v2009
      %v2444 = vmax.f32 %v2443, %v2010
      %2445 = vmax.xlane.f32.xlu0 %v2444
      %v2446 = vpop.xlane.xlu0 %2445
      %v2447 = vmax.f32 %v2011, %v2012
      %v2448 = vmax.f32 %v2447, %v2013
      %v2449 = vmax.f32 %v2448, %v2014
      %2450 = vmax.xlane.f32.xlu0 %v2449
      %v2451 = vpop.xlane.xlu0 %2450
      %v2452 = vmax.f32 %v2015, %v2016
      %v2453 = vmax.f32 %v2452, %v2017
      %v2454 = vmax.f32 %v2453, %v2018
      %2455 = vmax.xlane.f32.xlu0 %v2454
      %v2456 = vpop.xlane.xlu0 %2455
      %v2457 = vmax.f32 %v2019, %v2020
      %v2458 = vmax.f32 %v2457, %v2021
      %v2459 = vmax.f32 %v2458, %v2022
      %2460 = vmax.xlane.f32.xlu0 %v2459
      %v2461 = vpop.xlane.xlu0 %2460
      %v2462 = vmax.f32 %v2023, %v2024
      %v2463 = vmax.f32 %v2462, %v2025
      %v2464 = vmax.f32 %v2463, %v2026
      %2465 = vmax.xlane.f32.xlu0 %v2464
      %v2466 = vpop.xlane.xlu0 %2465
      %v2467 = vmax.f32 %v2027, %v2028
      %v2468 = vmax.f32 %v2467, %v2029
      %v2469 = vmax.f32 %v2468, %v2030
      %2470 = vmax.xlane.f32.xlu0 %v2469
      %v2471 = vpop.xlane.xlu0 %2470
      %v2472 = vmax.f32 %v2031, %v2032
      %v2473 = vmax.f32 %v2472, %v2033
      %v2474 = vmax.f32 %v2473, %v2034
      %2475 = vmax.xlane.f32.xlu0 %v2474
      %v2476 = vpop.xlane.xlu0 %2475
      %v2477 = vmax.f32 %v2035, %v2036
      %v2478 = vmax.f32 %v2477, %v2037
      %v2479 = vmax.f32 %v2478, %v2038
      %2480 = vmax.xlane.f32.xlu0 %v2479
      %v2481 = vpop.xlane.xlu0 %2480
      %v2482 = vmax.f32 %v2039, %v2040
      %v2483 = vmax.f32 %v2482, %v2041
      %v2484 = vmax.f32 %v2483, %v2042
      %2485 = vmax.xlane.f32.xlu0 %v2484
      %v2486 = vpop.xlane.xlu0 %2485
      %v2487 = vmax.f32 %v2043, %v2044
      %v2488 = vmax.f32 %v2487, %v2045
      %v2489 = vmax.f32 %v2488, %v2046
      %2490 = vmax.xlane.f32.xlu0 %v2489
      %v2491 = vpop.xlane.xlu0 %2490
      %v2492 = vmax.f32 %v2047, %v2048
      %v2493 = vmax.f32 %v2492, %v2049
      %v2494 = vmax.f32 %v2493, %v2050
      %2495 = vmax.xlane.f32.xlu0 %v2494
      %v2496 = vpop.xlane.xlu0 %2495
      %v2497 = vmax.f32 %v2051, %v2052
      %v2498 = vmax.f32 %v2497, %v2053
      %v2499 = vmax.f32 %v2498, %v2054
      %2500 = vmax.xlane.f32.xlu0 %v2499
      %v2501 = vpop.xlane.xlu0 %2500
      %v2502 = vmax.f32 %v2055, %v2056
      %v2503 = vmax.f32 %v2502, %v2057
      %v2504 = vmax.f32 %v2503, %v2058
      %2505 = vmax.xlane.f32.xlu0 %v2504
      %v2506 = vpop.xlane.xlu0 %2505
      %v2507 = vmax.f32 %v2059, %v2191
      %v2508 = vmax.f32 %v2060, %v2196
      %v2509 = vmax.f32 %v2061, %v2201
      %v2510 = vmax.f32 %v2062, %v2206
      %v2511 = vmax.f32 %v2063, %v2211
      %v2512 = vmax.f32 %v2064, %v2216
      %v2513 = vmax.f32 %v2065, %v2221
      %v2514 = vmax.f32 %v2066, %v2226
      %v2515 = vmax.f32 %v2067, %v2231
      %v2516 = vmax.f32 %v2068, %v2236
      %v2517 = vmax.f32 %v2069, %v2241
      %v2518 = vmax.f32 %v2070, %v2246
      %v2519 = vmax.f32 %v2071, %v2251
      %v2520 = vmax.f32 %v2072, %v2256
      %v2521 = vmax.f32 %v2073, %v2261
      %v2522 = vmax.f32 %v2074, %v2266
      %v2523 = vmax.f32 %v2075, %v2271
      %v2524 = vmax.f32 %v2076, %v2276
      %v2525 = vmax.f32 %v2077, %v2281
      %v2526 = vmax.f32 %v2078, %v2286
      %v2527 = vmax.f32 %v2079, %v2291
      %v2528 = vmax.f32 %v2080, %v2296
      %v2529 = vmax.f32 %v2081, %v2301
      %v2530 = vmax.f32 %v2082, %v2306
      %v2531 = vmax.f32 %v2083, %v2311
      %v2532 = vmax.f32 %v2084, %v2316
      %v2533 = vmax.f32 %v2085, %v2321
      %v2534 = vmax.f32 %v2086, %v2326
      %v2535 = vmax.f32 %v2087, %v2331
      %v2536 = vmax.f32 %v2088, %v2336
      %v2537 = vmax.f32 %v2089, %v2341
      %v2538 = vmax.f32 %v2090, %v2346
      %v2539 = vmax.f32 %v2091, %v2351
      %v2540 = vmax.f32 %v2092, %v2356
      %v2541 = vmax.f32 %v2093, %v2361
      %v2542 = vmax.f32 %v2094, %v2366
      %v2543 = vmax.f32 %v2095, %v2371
      %v2544 = vmax.f32 %v2096, %v2376
      %v2545 = vmax.f32 %v2097, %v2381
      %v2546 = vmax.f32 %v2098, %v2386
      %v2547 = vmax.f32 %v2099, %v2391
      %v2548 = vmax.f32 %v2100, %v2396
      %v2549 = vmax.f32 %v2101, %v2401
      %v2550 = vmax.f32 %v2102, %v2406
      %v2551 = vmax.f32 %v2103, %v2411
      %v2552 = vmax.f32 %v2104, %v2416
      %v2553 = vmax.f32 %v2105, %v2421
      %v2554 = vmax.f32 %v2106, %v2426
      %v2555 = vmax.f32 %v2107, %v2431
      %v2556 = vmax.f32 %v2108, %v2436
      %v2557 = vmax.f32 %v2109, %v2441
      %v2558 = vmax.f32 %v2110, %v2446
      %v2559 = vmax.f32 %v2111, %v2451
      %v2560 = vmax.f32 %v2112, %v2456
      %v2561 = vmax.f32 %v2113, %v2461
      %v2562 = vmax.f32 %v2114, %v2466
      %v2563 = vmax.f32 %v2115, %v2471
      %v2564 = vmax.f32 %v2116, %v2476
      %v2565 = vmax.f32 %v2117, %v2481
      %v2566 = vmax.f32 %v2118, %v2486
      %v2567 = vmax.f32 %v2119, %v2491
      %v2568 = vmax.f32 %v2120, %v2496
      %v2569 = vmax.f32 %v2121, %v2501
      %v2570 = vmax.f32 %v2122, %v2506
      %v2571 = vsub.f32 %v2059, %v2507
      %v2572 = vsub.f32 %v2060, %v2508
      %v2573 = vsub.f32 %v2061, %v2509
      %v2574 = vsub.f32 %v2062, %v2510
      %v2575 = vsub.f32 %v2063, %v2511
      %v2576 = vsub.f32 %v2064, %v2512
      %v2577 = vsub.f32 %v2065, %v2513
      %v2578 = vsub.f32 %v2066, %v2514
      %v2579 = vsub.f32 %v2067, %v2515
      %v2580 = vsub.f32 %v2068, %v2516
      %v2581 = vsub.f32 %v2069, %v2517
      %v2582 = vsub.f32 %v2070, %v2518
      %v2583 = vsub.f32 %v2071, %v2519
      %v2584 = vsub.f32 %v2072, %v2520
      %v2585 = vsub.f32 %v2073, %v2521
      %v2586 = vsub.f32 %v2074, %v2522
      %v2587 = vsub.f32 %v2075, %v2523
      %v2588 = vsub.f32 %v2076, %v2524
      %v2589 = vsub.f32 %v2077, %v2525
      %v2590 = vsub.f32 %v2078, %v2526
      %v2591 = vsub.f32 %v2079, %v2527
      %v2592 = vsub.f32 %v2080, %v2528
      %v2593 = vsub.f32 %v2081, %v2529
      %v2594 = vsub.f32 %v2082, %v2530
      %v2595 = vsub.f32 %v2083, %v2531
      %v2596 = vsub.f32 %v2084, %v2532
      %v2597 = vsub.f32 %v2085, %v2533
      %v2598 = vsub.f32 %v2086, %v2534
      %v2599 = vsub.f32 %v2087, %v2535
      %v2600 = vsub.f32 %v2088, %v2536
      %v2601 = vsub.f32 %v2089, %v2537
      %v2602 = vsub.f32 %v2090, %v2538
      %v2603 = vsub.f32 %v2091, %v2539
      %v2604 = vsub.f32 %v2092, %v2540
      %v2605 = vsub.f32 %v2093, %v2541
      %v2606 = vsub.f32 %v2094, %v2542
      %v2607 = vsub.f32 %v2095, %v2543
      %v2608 = vsub.f32 %v2096, %v2544
      %v2609 = vsub.f32 %v2097, %v2545
      %v2610 = vsub.f32 %v2098, %v2546
      %v2611 = vsub.f32 %v2099, %v2547
      %v2612 = vsub.f32 %v2100, %v2548
      %v2613 = vsub.f32 %v2101, %v2549
      %v2614 = vsub.f32 %v2102, %v2550
      %v2615 = vsub.f32 %v2103, %v2551
      %v2616 = vsub.f32 %v2104, %v2552
      %v2617 = vsub.f32 %v2105, %v2553
      %v2618 = vsub.f32 %v2106, %v2554
      %v2619 = vsub.f32 %v2107, %v2555
      %v2620 = vsub.f32 %v2108, %v2556
      %v2621 = vsub.f32 %v2109, %v2557
      %v2622 = vsub.f32 %v2110, %v2558
      %v2623 = vsub.f32 %v2111, %v2559
      %v2624 = vsub.f32 %v2112, %v2560
      %v2625 = vsub.f32 %v2113, %v2561
      %v2626 = vsub.f32 %v2114, %v2562
      %v2627 = vsub.f32 %v2115, %v2563
      %v2628 = vsub.f32 %v2116, %v2564
      %v2629 = vsub.f32 %v2117, %v2565
      %v2630 = vsub.f32 %v2118, %v2566
      %v2631 = vsub.f32 %v2119, %v2567
      %v2632 = vsub.f32 %v2120, %v2568
      %v2633 = vsub.f32 %v2121, %v2569
      %v2634 = vsub.f32 %v2122, %v2570
      %v2635 = vmul.f32 %v2571, 1.442695
      %v2636 = vpow.pop %v2635
      %v2637 = vmul.f32 %v2572, 1.442695
      %v2638 = vpow.pop %v2637
      %v2639 = vmul.f32 %v2573, 1.442695
      %v2640 = vpow.pop %v2639
      %v2641 = vmul.f32 %v2574, 1.442695
      %v2642 = vpow.pop %v2641
      %v2643 = vmul.f32 %v2575, 1.442695
      %v2644 = vpow.pop %v2643
      %v2645 = vmul.f32 %v2576, 1.442695
      %v2646 = vpow.pop %v2645
      %v2647 = vmul.f32 %v2577, 1.442695
      %v2648 = vpow.pop %v2647
      %v2649 = vmul.f32 %v2578, 1.442695
      %v2650 = vpow.pop %v2649
      %v2651 = vmul.f32 %v2579, 1.442695
      %v2652 = vpow.pop %v2651
      %v2653 = vmul.f32 %v2580, 1.442695
      %v2654 = vpow.pop %v2653
      %v2655 = vmul.f32 %v2581, 1.442695
      %v2656 = vpow.pop %v2655
      %v2657 = vmul.f32 %v2582, 1.442695
      %v2658 = vpow.pop %v2657
      %v2659 = vmul.f32 %v2583, 1.442695
      %v2660 = vpow.pop %v2659
      %v2661 = vmul.f32 %v2584, 1.442695
      %v2662 = vpow.pop %v2661
      %v2663 = vmul.f32 %v2585, 1.442695
      %v2664 = vpow.pop %v2663
      %v2665 = vmul.f32 %v2586, 1.442695
      %v2666 = vpow.pop %v2665
      %v2667 = vmul.f32 %v2587, 1.442695
      %v2668 = vpow.pop %v2667
      %v2669 = vmul.f32 %v2588, 1.442695
      %v2670 = vpow.pop %v2669
      %v2671 = vmul.f32 %v2589, 1.442695
      %v2672 = vpow.pop %v2671
      %v2673 = vmul.f32 %v2590, 1.442695
      %v2674 = vpow.pop %v2673
      %v2675 = vmul.f32 %v2591, 1.442695
      %v2676 = vpow.pop %v2675
      %v2677 = vmul.f32 %v2592, 1.442695
      %v2678 = vpow.pop %v2677
      %v2679 = vmul.f32 %v2593, 1.442695
      %v2680 = vpow.pop %v2679
      %v2681 = vmul.f32 %v2594, 1.442695
      %v2682 = vpow.pop %v2681
      %v2683 = vmul.f32 %v2595, 1.442695
      %v2684 = vpow.pop %v2683
      %v2685 = vmul.f32 %v2596, 1.442695
      %v2686 = vpow.pop %v2685
      %v2687 = vmul.f32 %v2597, 1.442695
      %v2688 = vpow.pop %v2687
      %v2689 = vmul.f32 %v2598, 1.442695
      %v2690 = vpow.pop %v2689
      %v2691 = vmul.f32 %v2599, 1.442695
      %v2692 = vpow.pop %v2691
      %v2693 = vmul.f32 %v2600, 1.442695
      %v2694 = vpow.pop %v2693
      %v2695 = vmul.f32 %v2601, 1.442695
      %v2696 = vpow.pop %v2695
      %v2697 = vmul.f32 %v2602, 1.442695
      %v2698 = vpow.pop %v2697
      %v2699 = vmul.f32 %v2603, 1.442695
      %v2700 = vpow.pop %v2699
      %v2701 = vmul.f32 %v2604, 1.442695
      %v2702 = vpow.pop %v2701
      %v2703 = vmul.f32 %v2605, 1.442695
      %v2704 = vpow.pop %v2703
      %v2705 = vmul.f32 %v2606, 1.442695
      %v2706 = vpow.pop %v2705
      %v2707 = vmul.f32 %v2607, 1.442695
      %v2708 = vpow.pop %v2707
      %v2709 = vmul.f32 %v2608, 1.442695
      %v2710 = vpow.pop %v2709
      %v2711 = vmul.f32 %v2609, 1.442695
      %v2712 = vpow.pop %v2711
      %v2713 = vmul.f32 %v2610, 1.442695
      %v2714 = vpow.pop %v2713
      %v2715 = vmul.f32 %v2611, 1.442695
      %v2716 = vpow.pop %v2715
      %v2717 = vmul.f32 %v2612, 1.442695
      %v2718 = vpow.pop %v2717
      %v2719 = vmul.f32 %v2613, 1.442695
      %v2720 = vpow.pop %v2719
      %v2721 = vmul.f32 %v2614, 1.442695
      %v2722 = vpow.pop %v2721
      %v2723 = vmul.f32 %v2615, 1.442695
      %v2724 = vpow.pop %v2723
      %v2725 = vmul.f32 %v2616, 1.442695
      %v2726 = vpow.pop %v2725
      %v2727 = vmul.f32 %v2617, 1.442695
      %v2728 = vpow.pop %v2727
      %v2729 = vmul.f32 %v2618, 1.442695
      %v2730 = vpow.pop %v2729
      %v2731 = vmul.f32 %v2619, 1.442695
      %v2732 = vpow.pop %v2731
      %v2733 = vmul.f32 %v2620, 1.442695
      %v2734 = vpow.pop %v2733
      %v2735 = vmul.f32 %v2621, 1.442695
      %v2736 = vpow.pop %v2735
      %v2737 = vmul.f32 %v2622, 1.442695
      %v2738 = vpow.pop %v2737
      %v2739 = vmul.f32 %v2623, 1.442695
      %v2740 = vpow.pop %v2739
      %v2741 = vmul.f32 %v2624, 1.442695
      %v2742 = vpow.pop %v2741
      %v2743 = vmul.f32 %v2625, 1.442695
      %v2744 = vpow.pop %v2743
      %v2745 = vmul.f32 %v2626, 1.442695
      %v2746 = vpow.pop %v2745
      %v2747 = vmul.f32 %v2627, 1.442695
      %v2748 = vpow.pop %v2747
      %v2749 = vmul.f32 %v2628, 1.442695
      %v2750 = vpow.pop %v2749
      %v2751 = vmul.f32 %v2629, 1.442695
      %v2752 = vpow.pop %v2751
      %v2753 = vmul.f32 %v2630, 1.442695
      %v2754 = vpow.pop %v2753
      %v2755 = vmul.f32 %v2631, 1.442695
      %v2756 = vpow.pop %v2755
      %v2757 = vmul.f32 %v2632, 1.442695
      %v2758 = vpow.pop %v2757
      %v2759 = vmul.f32 %v2633, 1.442695
      %v2760 = vpow.pop %v2759
      %v2761 = vmul.f32 %v2634, 1.442695
      %v2762 = vpow.pop %v2761
      %v2763 = vsub.f32 %v1803, %v2507
      %v2764 = vsub.f32 %v1804, %v2507
      %v2765 = vsub.f32 %v1805, %v2507
      %v2766 = vsub.f32 %v1806, %v2507
      %v2767 = vsub.f32 %v1807, %v2508
      %v2768 = vsub.f32 %v1808, %v2508
      %v2769 = vsub.f32 %v1809, %v2508
      %v2770 = vsub.f32 %v1810, %v2508
      %v2771 = vsub.f32 %v1811, %v2509
      %v2772 = vsub.f32 %v1812, %v2509
      %v2773 = vsub.f32 %v1813, %v2509
      %v2774 = vsub.f32 %v1814, %v2509
      %v2775 = vsub.f32 %v1815, %v2510
      %v2776 = vsub.f32 %v1816, %v2510
      %v2777 = vsub.f32 %v1817, %v2510
      %v2778 = vsub.f32 %v1818, %v2510
      %v2779 = vsub.f32 %v1819, %v2511
      %v2780 = vsub.f32 %v1820, %v2511
      %v2781 = vsub.f32 %v1821, %v2511
      %v2782 = vsub.f32 %v1822, %v2511
      %v2783 = vsub.f32 %v1823, %v2512
      %v2784 = vsub.f32 %v1824, %v2512
      %v2785 = vsub.f32 %v1825, %v2512
      %v2786 = vsub.f32 %v1826, %v2512
      %v2787 = vsub.f32 %v1827, %v2513
      %v2788 = vsub.f32 %v1828, %v2513
      %v2789 = vsub.f32 %v1829, %v2513
      %v2790 = vsub.f32 %v1830, %v2513
      %v2791 = vsub.f32 %v1831, %v2514
      %v2792 = vsub.f32 %v1832, %v2514
      %v2793 = vsub.f32 %v1833, %v2514
      %v2794 = vsub.f32 %v1834, %v2514
      %v2795 = vsub.f32 %v1835, %v2515
      %v2796 = vsub.f32 %v1836, %v2515
      %v2797 = vsub.f32 %v1837, %v2515
      %v2798 = vsub.f32 %v1838, %v2515
      %v2799 = vsub.f32 %v1839, %v2516
      %v2800 = vsub.f32 %v1840, %v2516
      %v2801 = vsub.f32 %v1841, %v2516
      %v2802 = vsub.f32 %v1842, %v2516
      %v2803 = vsub.f32 %v1843, %v2517
      %v2804 = vsub.f32 %v1844, %v2517
      %v2805 = vsub.f32 %v1845, %v2517
      %v2806 = vsub.f32 %v1846, %v2517
      %v2807 = vsub.f32 %v1847, %v2518
      %v2808 = vsub.f32 %v1848, %v2518
      %v2809 = vsub.f32 %v1849, %v2518
      %v2810 = vsub.f32 %v1850, %v2518
      %v2811 = vsub.f32 %v1851, %v2519
      %v2812 = vsub.f32 %v1852, %v2519
      %v2813 = vsub.f32 %v1853, %v2519
      %v2814 = vsub.f32 %v1854, %v2519
      %v2815 = vsub.f32 %v1855, %v2520
      %v2816 = vsub.f32 %v1856, %v2520
      %v2817 = vsub.f32 %v1857, %v2520
      %v2818 = vsub.f32 %v1858, %v2520
      %v2819 = vsub.f32 %v1859, %v2521
      %v2820 = vsub.f32 %v1860, %v2521
      %v2821 = vsub.f32 %v1861, %v2521
      %v2822 = vsub.f32 %v1862, %v2521
      %v2823 = vsub.f32 %v1863, %v2522
      %v2824 = vsub.f32 %v1864, %v2522
      %v2825 = vsub.f32 %v1865, %v2522
      %v2826 = vsub.f32 %v1866, %v2522
      %v2827 = vsub.f32 %v1867, %v2523
      %v2828 = vsub.f32 %v1868, %v2523
      %v2829 = vsub.f32 %v1869, %v2523
      %v2830 = vsub.f32 %v1870, %v2523
      %v2831 = vsub.f32 %v1871, %v2524
      %v2832 = vsub.f32 %v1872, %v2524
      %v2833 = vsub.f32 %v1873, %v2524
      %v2834 = vsub.f32 %v1874, %v2524
      %v2835 = vsub.f32 %v1875, %v2525
      %v2836 = vsub.f32 %v1876, %v2525
      %v2837 = vsub.f32 %v1877, %v2525
      %v2838 = vsub.f32 %v1878, %v2525
      %v2839 = vsub.f32 %v1879, %v2526
      %v2840 = vsub.f32 %v1880, %v2526
      %v2841 = vsub.f32 %v1881, %v2526
      %v2842 = vsub.f32 %v1882, %v2526
      %v2843 = vsub.f32 %v1883, %v2527
      %v2844 = vsub.f32 %v1884, %v2527
      %v2845 = vsub.f32 %v1885, %v2527
      %v2846 = vsub.f32 %v1886, %v2527
      %v2847 = vsub.f32 %v1887, %v2528
      %v2848 = vsub.f32 %v1888, %v2528
      %v2849 = vsub.f32 %v1889, %v2528
      %v2850 = vsub.f32 %v1890, %v2528
      %v2851 = vsub.f32 %v1891, %v2529
      %v2852 = vsub.f32 %v1892, %v2529
      %v2853 = vsub.f32 %v1893, %v2529
      %v2854 = vsub.f32 %v1894, %v2529
      %v2855 = vsub.f32 %v1895, %v2530
      %v2856 = vsub.f32 %v1896, %v2530
      %v2857 = vsub.f32 %v1897, %v2530
      %v2858 = vsub.f32 %v1898, %v2530
      %v2859 = vsub.f32 %v1899, %v2531
      %v2860 = vsub.f32 %v1900, %v2531
      %v2861 = vsub.f32 %v1901, %v2531
      %v2862 = vsub.f32 %v1902, %v2531
      %v2863 = vsub.f32 %v1903, %v2532
      %v2864 = vsub.f32 %v1904, %v2532
      %v2865 = vsub.f32 %v1905, %v2532
      %v2866 = vsub.f32 %v1906, %v2532
      %v2867 = vsub.f32 %v1907, %v2533
      %v2868 = vsub.f32 %v1908, %v2533
      %v2869 = vsub.f32 %v1909, %v2533
      %v2870 = vsub.f32 %v1910, %v2533
      %v2871 = vsub.f32 %v1911, %v2534
      %v2872 = vsub.f32 %v1912, %v2534
      %v2873 = vsub.f32 %v1913, %v2534
      %v2874 = vsub.f32 %v1914, %v2534
      %v2875 = vsub.f32 %v1915, %v2535
      %v2876 = vsub.f32 %v1916, %v2535
      %v2877 = vsub.f32 %v1917, %v2535
      %v2878 = vsub.f32 %v1918, %v2535
      %v2879 = vsub.f32 %v1919, %v2536
      %v2880 = vsub.f32 %v1920, %v2536
      %v2881 = vsub.f32 %v1921, %v2536
      %v2882 = vsub.f32 %v1922, %v2536
      %v2883 = vsub.f32 %v1923, %v2537
      %v2884 = vsub.f32 %v1924, %v2537
      %v2885 = vsub.f32 %v1925, %v2537
      %v2886 = vsub.f32 %v1926, %v2537
      %v2887 = vsub.f32 %v1927, %v2538
      %v2888 = vsub.f32 %v1928, %v2538
      %v2889 = vsub.f32 %v1929, %v2538
      %v2890 = vsub.f32 %v1930, %v2538
      %v2891 = vsub.f32 %v1931, %v2539
      %v2892 = vsub.f32 %v1932, %v2539
      %v2893 = vsub.f32 %v1933, %v2539
      %v2894 = vsub.f32 %v1934, %v2539
      %v2895 = vsub.f32 %v1935, %v2540
      %v2896 = vsub.f32 %v1936, %v2540
      %v2897 = vsub.f32 %v1937, %v2540
      %v2898 = vsub.f32 %v1938, %v2540
      %v2899 = vsub.f32 %v1939, %v2541
      %v2900 = vsub.f32 %v1940, %v2541
      %v2901 = vsub.f32 %v1941, %v2541
      %v2902 = vsub.f32 %v1942, %v2541
      %v2903 = vsub.f32 %v1943, %v2542
      %v2904 = vsub.f32 %v1944, %v2542
      %v2905 = vsub.f32 %v1945, %v2542
      %v2906 = vsub.f32 %v1946, %v2542
      %v2907 = vsub.f32 %v1947, %v2543
      %v2908 = vsub.f32 %v1948, %v2543
      %v2909 = vsub.f32 %v1949, %v2543
      %v2910 = vsub.f32 %v1950, %v2543
      %v2911 = vsub.f32 %v1951, %v2544
      %v2912 = vsub.f32 %v1952, %v2544
      %v2913 = vsub.f32 %v1953, %v2544
      %v2914 = vsub.f32 %v1954, %v2544
      %v2915 = vsub.f32 %v1955, %v2545
      %v2916 = vsub.f32 %v1956, %v2545
      %v2917 = vsub.f32 %v1957, %v2545
      %v2918 = vsub.f32 %v1958, %v2545
      %v2919 = vsub.f32 %v1959, %v2546
      %v2920 = vsub.f32 %v1960, %v2546
      %v2921 = vsub.f32 %v1961, %v2546
      %v2922 = vsub.f32 %v1962, %v2546
      %v2923 = vsub.f32 %v1963, %v2547
      %v2924 = vsub.f32 %v1964, %v2547
      %v2925 = vsub.f32 %v1965, %v2547
      %v2926 = vsub.f32 %v1966, %v2547
      %v2927 = vsub.f32 %v1967, %v2548
      %v2928 = vsub.f32 %v1968, %v2548
      %v2929 = vsub.f32 %v1969, %v2548
      %v2930 = vsub.f32 %v1970, %v2548
      %v2931 = vsub.f32 %v1971, %v2549
      %v2932 = vsub.f32 %v1972, %v2549
      %v2933 = vsub.f32 %v1973, %v2549
      %v2934 = vsub.f32 %v1974, %v2549
      %v2935 = vsub.f32 %v1975, %v2550
      %v2936 = vsub.f32 %v1976, %v2550
      %v2937 = vsub.f32 %v1977, %v2550
      %v2938 = vsub.f32 %v1978, %v2550
      %v2939 = vsub.f32 %v1979, %v2551
      %v2940 = vsub.f32 %v1980, %v2551
      %v2941 = vsub.f32 %v1981, %v2551
      %v2942 = vsub.f32 %v1982, %v2551
      %v2943 = vsub.f32 %v1983, %v2552
      %v2944 = vsub.f32 %v1984, %v2552
      %v2945 = vsub.f32 %v1985, %v2552
      %v2946 = vsub.f32 %v1986, %v2552
      %v2947 = vsub.f32 %v1987, %v2553
      %v2948 = vsub.f32 %v1988, %v2553
      %v2949 = vsub.f32 %v1989, %v2553
      %v2950 = vsub.f32 %v1990, %v2553
      %v2951 = vsub.f32 %v1991, %v2554
      %v2952 = vsub.f32 %v1992, %v2554
      %v2953 = vsub.f32 %v1993, %v2554
      %v2954 = vsub.f32 %v1994, %v2554
      %v2955 = vsub.f32 %v1995, %v2555
      %v2956 = vsub.f32 %v1996, %v2555
      %v2957 = vsub.f32 %v1997, %v2555
      %v2958 = vsub.f32 %v1998, %v2555
      %v2959 = vsub.f32 %v1999, %v2556
      %v2960 = vsub.f32 %v2000, %v2556
      %v2961 = vsub.f32 %v2001, %v2556
      %v2962 = vsub.f32 %v2002, %v2556
      %v2963 = vsub.f32 %v2003, %v2557
      %v2964 = vsub.f32 %v2004, %v2557
      %v2965 = vsub.f32 %v2005, %v2557
      %v2966 = vsub.f32 %v2006, %v2557
      %v2967 = vsub.f32 %v2007, %v2558
      %v2968 = vsub.f32 %v2008, %v2558
      %v2969 = vsub.f32 %v2009, %v2558
      %v2970 = vsub.f32 %v2010, %v2558
      %v2971 = vsub.f32 %v2011, %v2559
      %v2972 = vsub.f32 %v2012, %v2559
      %v2973 = vsub.f32 %v2013, %v2559
      %v2974 = vsub.f32 %v2014, %v2559
      %v2975 = vsub.f32 %v2015, %v2560
      %v2976 = vsub.f32 %v2016, %v2560
      %v2977 = vsub.f32 %v2017, %v2560
      %v2978 = vsub.f32 %v2018, %v2560
      %v2979 = vsub.f32 %v2019, %v2561
      %v2980 = vsub.f32 %v2020, %v2561
      %v2981 = vsub.f32 %v2021, %v2561
      %v2982 = vsub.f32 %v2022, %v2561
      %v2983 = vsub.f32 %v2023, %v2562
      %v2984 = vsub.f32 %v2024, %v2562
      %v2985 = vsub.f32 %v2025, %v2562
      %v2986 = vsub.f32 %v2026, %v2562
      %v2987 = vsub.f32 %v2027, %v2563
      %v2988 = vsub.f32 %v2028, %v2563
      %v2989 = vsub.f32 %v2029, %v2563
      %v2990 = vsub.f32 %v2030, %v2563
      %v2991 = vsub.f32 %v2031, %v2564
      %v2992 = vsub.f32 %v2032, %v2564
      %v2993 = vsub.f32 %v2033, %v2564
      %v2994 = vsub.f32 %v2034, %v2564
      %v2995 = vsub.f32 %v2035, %v2565
      %v2996 = vsub.f32 %v2036, %v2565
      %v2997 = vsub.f32 %v2037, %v2565
      %v2998 = vsub.f32 %v2038, %v2565
      %v2999 = vsub.f32 %v2039, %v2566
      %v3000 = vsub.f32 %v2040, %v2566
      %v3001 = vsub.f32 %v2041, %v2566
      %v3002 = vsub.f32 %v2042, %v2566
      %v3003 = vsub.f32 %v2043, %v2567
      %v3004 = vsub.f32 %v2044, %v2567
      %v3005 = vsub.f32 %v2045, %v2567
      %v3006 = vsub.f32 %v2046, %v2567
      %v3007 = vsub.f32 %v2047, %v2568
      %v3008 = vsub.f32 %v2048, %v2568
      %v3009 = vsub.f32 %v2049, %v2568
      %v3010 = vsub.f32 %v2050, %v2568
      %v3011 = vsub.f32 %v2051, %v2569
      %v3012 = vsub.f32 %v2052, %v2569
      %v3013 = vsub.f32 %v2053, %v2569
      %v3014 = vsub.f32 %v2054, %v2569
      %v3015 = vsub.f32 %v2055, %v2570
      %v3016 = vsub.f32 %v2056, %v2570
      %v3017 = vsub.f32 %v2057, %v2570
      %v3018 = vsub.f32 %v2058, %v2570
      %v3019 = vmul.f32 %v2763, 1.442695
      %v3020 = vpow.pop %v3019
      %v3021 = vmul.f32 %v2764, 1.442695
      %v3022 = vpow.pop %v3021
      %v3023 = vmul.f32 %v2765, 1.442695
      %v3024 = vpow.pop %v3023
      %v3025 = vmul.f32 %v2766, 1.442695
      %v3026 = vpow.pop %v3025
      %v3027 = vmul.f32 %v2767, 1.442695
      %v3028 = vpow.pop %v3027
      %v3029 = vmul.f32 %v2768, 1.442695
      %v3030 = vpow.pop %v3029
      %v3031 = vmul.f32 %v2769, 1.442695
      %v3032 = vpow.pop %v3031
      %v3033 = vmul.f32 %v2770, 1.442695
      %v3034 = vpow.pop %v3033
      %v3035 = vmul.f32 %v2771, 1.442695
      %v3036 = vpow.pop %v3035
      %v3037 = vmul.f32 %v2772, 1.442695
      %v3038 = vpow.pop %v3037
      %v3039 = vmul.f32 %v2773, 1.442695
      %v3040 = vpow.pop %v3039
      %v3041 = vmul.f32 %v2774, 1.442695
      %v3042 = vpow.pop %v3041
      %v3043 = vmul.f32 %v2775, 1.442695
      %v3044 = vpow.pop %v3043
      %v3045 = vmul.f32 %v2776, 1.442695
      %v3046 = vpow.pop %v3045
      %v3047 = vmul.f32 %v2777, 1.442695
      %v3048 = vpow.pop %v3047
      %v3049 = vmul.f32 %v2778, 1.442695
      %v3050 = vpow.pop %v3049
      %v3051 = vmul.f32 %v2779, 1.442695
      %v3052 = vpow.pop %v3051
      %v3053 = vmul.f32 %v2780, 1.442695
      %v3054 = vpow.pop %v3053
      %v3055 = vmul.f32 %v2781, 1.442695
      %v3056 = vpow.pop %v3055
      %v3057 = vmul.f32 %v2782, 1.442695
      %v3058 = vpow.pop %v3057
      %v3059 = vmul.f32 %v2783, 1.442695
      %v3060 = vpow.pop %v3059
      %v3061 = vmul.f32 %v2784, 1.442695
      %v3062 = vpow.pop %v3061
      %v3063 = vmul.f32 %v2785, 1.442695
      %v3064 = vpow.pop %v3063
      %v3065 = vmul.f32 %v2786, 1.442695
      %v3066 = vpow.pop %v3065
      %v3067 = vmul.f32 %v2787, 1.442695
      %v3068 = vpow.pop %v3067
      %v3069 = vmul.f32 %v2788, 1.442695
      %v3070 = vpow.pop %v3069
      %v3071 = vmul.f32 %v2789, 1.442695
      %v3072 = vpow.pop %v3071
      %v3073 = vmul.f32 %v2790, 1.442695
      %v3074 = vpow.pop %v3073
      %v3075 = vmul.f32 %v2791, 1.442695
      %v3076 = vpow.pop %v3075
      %v3077 = vmul.f32 %v2792, 1.442695
      %v3078 = vpow.pop %v3077
      %v3079 = vmul.f32 %v2793, 1.442695
      %v3080 = vpow.pop %v3079
      %v3081 = vmul.f32 %v2794, 1.442695
      %v3082 = vpow.pop %v3081
      %v3083 = vmul.f32 %v2795, 1.442695
      %v3084 = vpow.pop %v3083
      %v3085 = vmul.f32 %v2796, 1.442695
      %v3086 = vpow.pop %v3085
      %v3087 = vmul.f32 %v2797, 1.442695
      %v3088 = vpow.pop %v3087
      %v3089 = vmul.f32 %v2798, 1.442695
      %v3090 = vpow.pop %v3089
      %v3091 = vmul.f32 %v2799, 1.442695
      %v3092 = vpow.pop %v3091
      %v3093 = vmul.f32 %v2800, 1.442695
      %v3094 = vpow.pop %v3093
      %v3095 = vmul.f32 %v2801, 1.442695
      %v3096 = vpow.pop %v3095
      %v3097 = vmul.f32 %v2802, 1.442695
      %v3098 = vpow.pop %v3097
      %v3099 = vmul.f32 %v2803, 1.442695
      %v3100 = vpow.pop %v3099
      %v3101 = vmul.f32 %v2804, 1.442695
      %v3102 = vpow.pop %v3101
      %v3103 = vmul.f32 %v2805, 1.442695
      %v3104 = vpow.pop %v3103
      %v3105 = vmul.f32 %v2806, 1.442695
      %v3106 = vpow.pop %v3105
      %v3107 = vmul.f32 %v2807, 1.442695
      %v3108 = vpow.pop %v3107
      %v3109 = vmul.f32 %v2808, 1.442695
      %v3110 = vpow.pop %v3109
      %v3111 = vmul.f32 %v2809, 1.442695
      %v3112 = vpow.pop %v3111
      %v3113 = vmul.f32 %v2810, 1.442695
      %v3114 = vpow.pop %v3113
      %v3115 = vmul.f32 %v2811, 1.442695
      %v3116 = vpow.pop %v3115
      %v3117 = vmul.f32 %v2812, 1.442695
      %v3118 = vpow.pop %v3117
      %v3119 = vmul.f32 %v2813, 1.442695
      %v3120 = vpow.pop %v3119
      %v3121 = vmul.f32 %v2814, 1.442695
      %v3122 = vpow.pop %v3121
      %v3123 = vmul.f32 %v2815, 1.442695
      %v3124 = vpow.pop %v3123
      %v3125 = vmul.f32 %v2816, 1.442695
      %v3126 = vpow.pop %v3125
      %v3127 = vmul.f32 %v2817, 1.442695
      %v3128 = vpow.pop %v3127
      %v3129 = vmul.f32 %v2818, 1.442695
      %v3130 = vpow.pop %v3129
      %v3131 = vmul.f32 %v2819, 1.442695
      %v3132 = vpow.pop %v3131
      %v3133 = vmul.f32 %v2820, 1.442695
      %v3134 = vpow.pop %v3133
      %v3135 = vmul.f32 %v2821, 1.442695
      %v3136 = vpow.pop %v3135
      %v3137 = vmul.f32 %v2822, 1.442695
      %v3138 = vpow.pop %v3137
      %v3139 = vmul.f32 %v2823, 1.442695
      %v3140 = vpow.pop %v3139
      %v3141 = vmul.f32 %v2824, 1.442695
      %v3142 = vpow.pop %v3141
      %v3143 = vmul.f32 %v2825, 1.442695
      %v3144 = vpow.pop %v3143
      %v3145 = vmul.f32 %v2826, 1.442695
      %v3146 = vpow.pop %v3145
      %v3147 = vmul.f32 %v2827, 1.442695
      %v3148 = vpow.pop %v3147
      %v3149 = vmul.f32 %v2828, 1.442695
      %v3150 = vpow.pop %v3149
      %v3151 = vmul.f32 %v2829, 1.442695
      %v3152 = vpow.pop %v3151
      %v3153 = vmul.f32 %v2830, 1.442695
      %v3154 = vpow.pop %v3153
      %v3155 = vmul.f32 %v2831, 1.442695
      %v3156 = vpow.pop %v3155
      %v3157 = vmul.f32 %v2832, 1.442695
      %v3158 = vpow.pop %v3157
      %v3159 = vmul.f32 %v2833, 1.442695
      %v3160 = vpow.pop %v3159
      %v3161 = vmul.f32 %v2834, 1.442695
      %v3162 = vpow.pop %v3161
      %v3163 = vmul.f32 %v2835, 1.442695
      %v3164 = vpow.pop %v3163
      %v3165 = vmul.f32 %v2836, 1.442695
      %v3166 = vpow.pop %v3165
      %v3167 = vmul.f32 %v2837, 1.442695
      %v3168 = vpow.pop %v3167
      %v3169 = vmul.f32 %v2838, 1.442695
      %v3170 = vpow.pop %v3169
      %v3171 = vmul.f32 %v2839, 1.442695
      %v3172 = vpow.pop %v3171
      %v3173 = vmul.f32 %v2840, 1.442695
      %v3174 = vpow.pop %v3173
      %v3175 = vmul.f32 %v2841, 1.442695
      %v3176 = vpow.pop %v3175
      %v3177 = vmul.f32 %v2842, 1.442695
      %v3178 = vpow.pop %v3177
      %v3179 = vmul.f32 %v2843, 1.442695
      %v3180 = vpow.pop %v3179
      %v3181 = vmul.f32 %v2844, 1.442695
      %v3182 = vpow.pop %v3181
      %v3183 = vmul.f32 %v2845, 1.442695
      %v3184 = vpow.pop %v3183
      %v3185 = vmul.f32 %v2846, 1.442695
      %v3186 = vpow.pop %v3185
      %v3187 = vmul.f32 %v2847, 1.442695
      %v3188 = vpow.pop %v3187
      %v3189 = vmul.f32 %v2848, 1.442695
      %v3190 = vpow.pop %v3189
      %v3191 = vmul.f32 %v2849, 1.442695
      %v3192 = vpow.pop %v3191
      %v3193 = vmul.f32 %v2850, 1.442695
      %v3194 = vpow.pop %v3193
      %v3195 = vmul.f32 %v2851, 1.442695
      %v3196 = vpow.pop %v3195
      %v3197 = vmul.f32 %v2852, 1.442695
      %v3198 = vpow.pop %v3197
      %v3199 = vmul.f32 %v2853, 1.442695
      %v3200 = vpow.pop %v3199
      %v3201 = vmul.f32 %v2854, 1.442695
      %v3202 = vpow.pop %v3201
      %v3203 = vmul.f32 %v2855, 1.442695
      %v3204 = vpow.pop %v3203
      %v3205 = vmul.f32 %v2856, 1.442695
      %v3206 = vpow.pop %v3205
      %v3207 = vmul.f32 %v2857, 1.442695
      %v3208 = vpow.pop %v3207
      %v3209 = vmul.f32 %v2858, 1.442695
      %v3210 = vpow.pop %v3209
      %v3211 = vmul.f32 %v2859, 1.442695
      %v3212 = vpow.pop %v3211
      %v3213 = vmul.f32 %v2860, 1.442695
      %v3214 = vpow.pop %v3213
      %v3215 = vmul.f32 %v2861, 1.442695
      %v3216 = vpow.pop %v3215
      %v3217 = vmul.f32 %v2862, 1.442695
      %v3218 = vpow.pop %v3217
      %v3219 = vmul.f32 %v2863, 1.442695
      %v3220 = vpow.pop %v3219
      %v3221 = vmul.f32 %v2864, 1.442695
      %v3222 = vpow.pop %v3221
      %v3223 = vmul.f32 %v2865, 1.442695
      %v3224 = vpow.pop %v3223
      %v3225 = vmul.f32 %v2866, 1.442695
      %v3226 = vpow.pop %v3225
      %v3227 = vmul.f32 %v2867, 1.442695
      %v3228 = vpow.pop %v3227
      %v3229 = vmul.f32 %v2868, 1.442695
      %v3230 = vpow.pop %v3229
      %v3231 = vmul.f32 %v2869, 1.442695
      %v3232 = vpow.pop %v3231
      %v3233 = vmul.f32 %v2870, 1.442695
      %v3234 = vpow.pop %v3233
      %v3235 = vmul.f32 %v2871, 1.442695
      %v3236 = vpow.pop %v3235
      %v3237 = vmul.f32 %v2872, 1.442695
      %v3238 = vpow.pop %v3237
      %v3239 = vmul.f32 %v2873, 1.442695
      %v3240 = vpow.pop %v3239
      %v3241 = vmul.f32 %v2874, 1.442695
      %v3242 = vpow.pop %v3241
      %v3243 = vmul.f32 %v2875, 1.442695
      %v3244 = vpow.pop %v3243
      %v3245 = vmul.f32 %v2876, 1.442695
      %v3246 = vpow.pop %v3245
      %v3247 = vmul.f32 %v2877, 1.442695
      %v3248 = vpow.pop %v3247
      %v3249 = vmul.f32 %v2878, 1.442695
      %v3250 = vpow.pop %v3249
      %v3251 = vmul.f32 %v2879, 1.442695
      %v3252 = vpow.pop %v3251
      %v3253 = vmul.f32 %v2880, 1.442695
      %v3254 = vpow.pop %v3253
      %v3255 = vmul.f32 %v2881, 1.442695
      %v3256 = vpow.pop %v3255
      %v3257 = vmul.f32 %v2882, 1.442695
      %v3258 = vpow.pop %v3257
      %v3259 = vmul.f32 %v2883, 1.442695
      %v3260 = vpow.pop %v3259
      %v3261 = vmul.f32 %v2884, 1.442695
      %v3262 = vpow.pop %v3261
      %v3263 = vmul.f32 %v2885, 1.442695
      %v3264 = vpow.pop %v3263
      %v3265 = vmul.f32 %v2886, 1.442695
      %v3266 = vpow.pop %v3265
      %v3267 = vmul.f32 %v2887, 1.442695
      %v3268 = vpow.pop %v3267
      %v3269 = vmul.f32 %v2888, 1.442695
      %v3270 = vpow.pop %v3269
      %v3271 = vmul.f32 %v2889, 1.442695
      %v3272 = vpow.pop %v3271
      %v3273 = vmul.f32 %v2890, 1.442695
      %v3274 = vpow.pop %v3273
      %v3275 = vmul.f32 %v2891, 1.442695
      %v3276 = vpow.pop %v3275
      %v3277 = vmul.f32 %v2892, 1.442695
      %v3278 = vpow.pop %v3277
      %v3279 = vmul.f32 %v2893, 1.442695
      %v3280 = vpow.pop %v3279
      %v3281 = vmul.f32 %v2894, 1.442695
      %v3282 = vpow.pop %v3281
      %v3283 = vmul.f32 %v2895, 1.442695
      %v3284 = vpow.pop %v3283
      %v3285 = vmul.f32 %v2896, 1.442695
      %v3286 = vpow.pop %v3285
      %v3287 = vmul.f32 %v2897, 1.442695
      %v3288 = vpow.pop %v3287
      %v3289 = vmul.f32 %v2898, 1.442695
      %v3290 = vpow.pop %v3289
      %v3291 = vmul.f32 %v2899, 1.442695
      %v3292 = vpow.pop %v3291
      %v3293 = vmul.f32 %v2900, 1.442695
      %v3294 = vpow.pop %v3293
      %v3295 = vmul.f32 %v2901, 1.442695
      %v3296 = vpow.pop %v3295
      %v3297 = vmul.f32 %v2902, 1.442695
      %v3298 = vpow.pop %v3297
      %v3299 = vmul.f32 %v2903, 1.442695
      %v3300 = vpow.pop %v3299
      %v3301 = vmul.f32 %v2904, 1.442695
      %v3302 = vpow.pop %v3301
      %v3303 = vmul.f32 %v2905, 1.442695
      %v3304 = vpow.pop %v3303
      %v3305 = vmul.f32 %v2906, 1.442695
      %v3306 = vpow.pop %v3305
      %v3307 = vmul.f32 %v2907, 1.442695
      %v3308 = vpow.pop %v3307
      %v3309 = vmul.f32 %v2908, 1.442695
      %v3310 = vpow.pop %v3309
      %v3311 = vmul.f32 %v2909, 1.442695
      %v3312 = vpow.pop %v3311
      %v3313 = vmul.f32 %v2910, 1.442695
      %v3314 = vpow.pop %v3313
      %v3315 = vmul.f32 %v2911, 1.442695
      %v3316 = vpow.pop %v3315
      %v3317 = vmul.f32 %v2912, 1.442695
      %v3318 = vpow.pop %v3317
      %v3319 = vmul.f32 %v2913, 1.442695
      %v3320 = vpow.pop %v3319
      %v3321 = vmul.f32 %v2914, 1.442695
      %v3322 = vpow.pop %v3321
      %v3323 = vmul.f32 %v2915, 1.442695
      %v3324 = vpow.pop %v3323
      %v3325 = vmul.f32 %v2916, 1.442695
      %v3326 = vpow.pop %v3325
      %v3327 = vmul.f32 %v2917, 1.442695
      %v3328 = vpow.pop %v3327
      %v3329 = vmul.f32 %v2918, 1.442695
      %v3330 = vpow.pop %v3329
      %v3331 = vmul.f32 %v2919, 1.442695
      %v3332 = vpow.pop %v3331
      %v3333 = vmul.f32 %v2920, 1.442695
      %v3334 = vpow.pop %v3333
      %v3335 = vmul.f32 %v2921, 1.442695
      %v3336 = vpow.pop %v3335
      %v3337 = vmul.f32 %v2922, 1.442695
      %v3338 = vpow.pop %v3337
      %v3339 = vmul.f32 %v2923, 1.442695
      %v3340 = vpow.pop %v3339
      %v3341 = vmul.f32 %v2924, 1.442695
      %v3342 = vpow.pop %v3341
      %v3343 = vmul.f32 %v2925, 1.442695
      %v3344 = vpow.pop %v3343
      %v3345 = vmul.f32 %v2926, 1.442695
      %v3346 = vpow.pop %v3345
      %v3347 = vmul.f32 %v2927, 1.442695
      %v3348 = vpow.pop %v3347
      %v3349 = vmul.f32 %v2928, 1.442695
      %v3350 = vpow.pop %v3349
      %v3351 = vmul.f32 %v2929, 1.442695
      %v3352 = vpow.pop %v3351
      %v3353 = vmul.f32 %v2930, 1.442695
      %v3354 = vpow.pop %v3353
      %v3355 = vmul.f32 %v2931, 1.442695
      %v3356 = vpow.pop %v3355
      %v3357 = vmul.f32 %v2932, 1.442695
      %v3358 = vpow.pop %v3357
      %v3359 = vmul.f32 %v2933, 1.442695
      %v3360 = vpow.pop %v3359
      %v3361 = vmul.f32 %v2934, 1.442695
      %v3362 = vpow.pop %v3361
      %v3363 = vmul.f32 %v2935, 1.442695
      %v3364 = vpow.pop %v3363
      %v3365 = vmul.f32 %v2936, 1.442695
      %v3366 = vpow.pop %v3365
      %v3367 = vmul.f32 %v2937, 1.442695
      %v3368 = vpow.pop %v3367
      %v3369 = vmul.f32 %v2938, 1.442695
      %v3370 = vpow.pop %v3369
      %v3371 = vmul.f32 %v2939, 1.442695
      %v3372 = vpow.pop %v3371
      %v3373 = vmul.f32 %v2940, 1.442695
      %v3374 = vpow.pop %v3373
      %v3375 = vmul.f32 %v2941, 1.442695
      %v3376 = vpow.pop %v3375
      %v3377 = vmul.f32 %v2942, 1.442695
      %v3378 = vpow.pop %v3377
      %v3379 = vmul.f32 %v2943, 1.442695
      %v3380 = vpow.pop %v3379
      %v3381 = vmul.f32 %v2944, 1.442695
      %v3382 = vpow.pop %v3381
      %v3383 = vmul.f32 %v2945, 1.442695
      %v3384 = vpow.pop %v3383
      %v3385 = vmul.f32 %v2946, 1.442695
      %v3386 = vpow.pop %v3385
      %v3387 = vmul.f32 %v2947, 1.442695
      %v3388 = vpow.pop %v3387
      %v3389 = vmul.f32 %v2948, 1.442695
      %v3390 = vpow.pop %v3389
      %v3391 = vmul.f32 %v2949, 1.442695
      %v3392 = vpow.pop %v3391
      %v3393 = vmul.f32 %v2950, 1.442695
      %v3394 = vpow.pop %v3393
      %v3395 = vmul.f32 %v2951, 1.442695
      %v3396 = vpow.pop %v3395
      %v3397 = vmul.f32 %v2952, 1.442695
      %v3398 = vpow.pop %v3397
      %v3399 = vmul.f32 %v2953, 1.442695
      %v3400 = vpow.pop %v3399
      %v3401 = vmul.f32 %v2954, 1.442695
      %v3402 = vpow.pop %v3401
      %v3403 = vmul.f32 %v2955, 1.442695
      %v3404 = vpow.pop %v3403
      %v3405 = vmul.f32 %v2956, 1.442695
      %v3406 = vpow.pop %v3405
      %v3407 = vmul.f32 %v2957, 1.442695
      %v3408 = vpow.pop %v3407
      %v3409 = vmul.f32 %v2958, 1.442695
      %v3410 = vpow.pop %v3409
      %v3411 = vmul.f32 %v2959, 1.442695
      %v3412 = vpow.pop %v3411
      %v3413 = vmul.f32 %v2960, 1.442695
      %v3414 = vpow.pop %v3413
      %v3415 = vmul.f32 %v2961, 1.442695
      %v3416 = vpow.pop %v3415
      %v3417 = vmul.f32 %v2962, 1.442695
      %v3418 = vpow.pop %v3417
      %v3419 = vmul.f32 %v2963, 1.442695
      %v3420 = vpow.pop %v3419
      %v3421 = vmul.f32 %v2964, 1.442695
      %v3422 = vpow.pop %v3421
      %v3423 = vmul.f32 %v2965, 1.442695
      %v3424 = vpow.pop %v3423
      %v3425 = vmul.f32 %v2966, 1.442695
      %v3426 = vpow.pop %v3425
      %v3427 = vmul.f32 %v2967, 1.442695
      %v3428 = vpow.pop %v3427
      %v3429 = vmul.f32 %v2968, 1.442695
      %v3430 = vpow.pop %v3429
      %v3431 = vmul.f32 %v2969, 1.442695
      %v3432 = vpow.pop %v3431
      %v3433 = vmul.f32 %v2970, 1.442695
      %v3434 = vpow.pop %v3433
      %v3435 = vmul.f32 %v2971, 1.442695
      %v3436 = vpow.pop %v3435
      %v3437 = vmul.f32 %v2972, 1.442695
      %v3438 = vpow.pop %v3437
      %v3439 = vmul.f32 %v2973, 1.442695
      %v3440 = vpow.pop %v3439
      %v3441 = vmul.f32 %v2974, 1.442695
      %v3442 = vpow.pop %v3441
      %v3443 = vmul.f32 %v2975, 1.442695
      %v3444 = vpow.pop %v3443
      %v3445 = vmul.f32 %v2976, 1.442695
      %v3446 = vpow.pop %v3445
      %v3447 = vmul.f32 %v2977, 1.442695
      %v3448 = vpow.pop %v3447
      %v3449 = vmul.f32 %v2978, 1.442695
      %v3450 = vpow.pop %v3449
      %v3451 = vmul.f32 %v2979, 1.442695
      %v3452 = vpow.pop %v3451
      %v3453 = vmul.f32 %v2980, 1.442695
      %v3454 = vpow.pop %v3453
      %v3455 = vmul.f32 %v2981, 1.442695
      %v3456 = vpow.pop %v3455
      %v3457 = vmul.f32 %v2982, 1.442695
      %v3458 = vpow.pop %v3457
      %v3459 = vmul.f32 %v2983, 1.442695
      %v3460 = vpow.pop %v3459
      %v3461 = vmul.f32 %v2984, 1.442695
      %v3462 = vpow.pop %v3461
      %v3463 = vmul.f32 %v2985, 1.442695
      %v3464 = vpow.pop %v3463
      %v3465 = vmul.f32 %v2986, 1.442695
      %v3466 = vpow.pop %v3465
      %v3467 = vmul.f32 %v2987, 1.442695
      %v3468 = vpow.pop %v3467
      %v3469 = vmul.f32 %v2988, 1.442695
      %v3470 = vpow.pop %v3469
      %v3471 = vmul.f32 %v2989, 1.442695
      %v3472 = vpow.pop %v3471
      %v3473 = vmul.f32 %v2990, 1.442695
      %v3474 = vpow.pop %v3473
      %v3475 = vmul.f32 %v2991, 1.442695
      %v3476 = vpow.pop %v3475
      %v3477 = vmul.f32 %v2992, 1.442695
      %v3478 = vpow.pop %v3477
      %v3479 = vmul.f32 %v2993, 1.442695
      %v3480 = vpow.pop %v3479
      %v3481 = vmul.f32 %v2994, 1.442695
      %v3482 = vpow.pop %v3481
      %v3483 = vmul.f32 %v2995, 1.442695
      %v3484 = vpow.pop %v3483
      %v3485 = vmul.f32 %v2996, 1.442695
      %v3486 = vpow.pop %v3485
      %v3487 = vmul.f32 %v2997, 1.442695
      %v3488 = vpow.pop %v3487
      %v3489 = vmul.f32 %v2998, 1.442695
      %v3490 = vpow.pop %v3489
      %v3491 = vmul.f32 %v2999, 1.442695
      %v3492 = vpow.pop %v3491
      %v3493 = vmul.f32 %v3000, 1.442695
      %v3494 = vpow.pop %v3493
      %v3495 = vmul.f32 %v3001, 1.442695
      %v3496 = vpow.pop %v3495
      %v3497 = vmul.f32 %v3002, 1.442695
      %v3498 = vpow.pop %v3497
      %v3499 = vmul.f32 %v3003, 1.442695
      %v3500 = vpow.pop %v3499
      %v3501 = vmul.f32 %v3004, 1.442695
      %v3502 = vpow.pop %v3501
      %v3503 = vmul.f32 %v3005, 1.442695
      %v3504 = vpow.pop %v3503
      %v3505 = vmul.f32 %v3006, 1.442695
      %v3506 = vpow.pop %v3505
      %v3507 = vmul.f32 %v3007, 1.442695
      %v3508 = vpow.pop %v3507
      %v3509 = vmul.f32 %v3008, 1.442695
      %v3510 = vpow.pop %v3509
      %v3511 = vmul.f32 %v3009, 1.442695
      %v3512 = vpow.pop %v3511
      %v3513 = vmul.f32 %v3010, 1.442695
      %v3514 = vpow.pop %v3513
      %v3515 = vmul.f32 %v3011, 1.442695
      %v3516 = vpow.pop %v3515
      %v3517 = vmul.f32 %v3012, 1.442695
      %v3518 = vpow.pop %v3517
      %v3519 = vmul.f32 %v3013, 1.442695
      %v3520 = vpow.pop %v3519
      %v3521 = vmul.f32 %v3014, 1.442695
      %v3522 = vpow.pop %v3521
      %v3523 = vmul.f32 %v3015, 1.442695
      %v3524 = vpow.pop %v3523
      %v3525 = vmul.f32 %v3016, 1.442695
      %v3526 = vpow.pop %v3525
      %v3527 = vmul.f32 %v3017, 1.442695
      %v3528 = vpow.pop %v3527
      %v3529 = vmul.f32 %v3018, 1.442695
      %v3530 = vpow.pop %v3529
      %v3531 = vadd.f32 %v3020, %v3022
      %v3532 = vadd.f32 %v3531, %v3024
      %v3533 = vadd.f32 %v3532, %v3026
      %3534 = vadd.xlane.f32.xlu0 %v3533
      %v3535 = vpop.xlane.xlu0 %3534
      %v3536 = vadd.f32 %v3028, %v3030
      %v3537 = vadd.f32 %v3536, %v3032
      %v3538 = vadd.f32 %v3537, %v3034
      %3539 = vadd.xlane.f32.xlu0 %v3538
      %v3540 = vpop.xlane.xlu0 %3539
      %v3541 = vadd.f32 %v3036, %v3038
      %v3542 = vadd.f32 %v3541, %v3040
      %v3543 = vadd.f32 %v3542, %v3042
      %3544 = vadd.xlane.f32.xlu0 %v3543
      %v3545 = vpop.xlane.xlu0 %3544
      %v3546 = vadd.f32 %v3044, %v3046
      %v3547 = vadd.f32 %v3546, %v3048
      %v3548 = vadd.f32 %v3547, %v3050
      %3549 = vadd.xlane.f32.xlu0 %v3548
      %v3550 = vpop.xlane.xlu0 %3549
      %v3551 = vadd.f32 %v3052, %v3054
      %v3552 = vadd.f32 %v3551, %v3056
      %v3553 = vadd.f32 %v3552, %v3058
      %3554 = vadd.xlane.f32.xlu0 %v3553
      %v3555 = vpop.xlane.xlu0 %3554
      %v3556 = vadd.f32 %v3060, %v3062
      %v3557 = vadd.f32 %v3556, %v3064
      %v3558 = vadd.f32 %v3557, %v3066
      %3559 = vadd.xlane.f32.xlu0 %v3558
      %v3560 = vpop.xlane.xlu0 %3559
      %v3561 = vadd.f32 %v3068, %v3070
      %v3562 = vadd.f32 %v3561, %v3072
      %v3563 = vadd.f32 %v3562, %v3074
      %3564 = vadd.xlane.f32.xlu0 %v3563
      %v3565 = vpop.xlane.xlu0 %3564
      %v3566 = vadd.f32 %v3076, %v3078
      %v3567 = vadd.f32 %v3566, %v3080
      %v3568 = vadd.f32 %v3567, %v3082
      %3569 = vadd.xlane.f32.xlu0 %v3568
      %v3570 = vpop.xlane.xlu0 %3569
      %v3571 = vadd.f32 %v3084, %v3086
      %v3572 = vadd.f32 %v3571, %v3088
      %v3573 = vadd.f32 %v3572, %v3090
      %3574 = vadd.xlane.f32.xlu0 %v3573
      %v3575 = vpop.xlane.xlu0 %3574
      %v3576 = vadd.f32 %v3092, %v3094
      %v3577 = vadd.f32 %v3576, %v3096
      %v3578 = vadd.f32 %v3577, %v3098
      %3579 = vadd.xlane.f32.xlu0 %v3578
      %v3580 = vpop.xlane.xlu0 %3579
      %v3581 = vadd.f32 %v3100, %v3102
      %v3582 = vadd.f32 %v3581, %v3104
      %v3583 = vadd.f32 %v3582, %v3106
      %3584 = vadd.xlane.f32.xlu0 %v3583
      %v3585 = vpop.xlane.xlu0 %3584
      %v3586 = vadd.f32 %v3108, %v3110
      %v3587 = vadd.f32 %v3586, %v3112
      %v3588 = vadd.f32 %v3587, %v3114
      %3589 = vadd.xlane.f32.xlu0 %v3588
      %v3590 = vpop.xlane.xlu0 %3589
      %v3591 = vadd.f32 %v3116, %v3118
      %v3592 = vadd.f32 %v3591, %v3120
      %v3593 = vadd.f32 %v3592, %v3122
      %3594 = vadd.xlane.f32.xlu0 %v3593
      %v3595 = vpop.xlane.xlu0 %3594
      %v3596 = vadd.f32 %v3124, %v3126
      %v3597 = vadd.f32 %v3596, %v3128
      %v3598 = vadd.f32 %v3597, %v3130
      %3599 = vadd.xlane.f32.xlu0 %v3598
      %v3600 = vpop.xlane.xlu0 %3599
      %v3601 = vadd.f32 %v3132, %v3134
      %v3602 = vadd.f32 %v3601, %v3136
      %v3603 = vadd.f32 %v3602, %v3138
      %3604 = vadd.xlane.f32.xlu0 %v3603
      %v3605 = vpop.xlane.xlu0 %3604
      %v3606 = vadd.f32 %v3140, %v3142
      %v3607 = vadd.f32 %v3606, %v3144
      %v3608 = vadd.f32 %v3607, %v3146
      %3609 = vadd.xlane.f32.xlu0 %v3608
      %v3610 = vpop.xlane.xlu0 %3609
      %v3611 = vadd.f32 %v3148, %v3150
      %v3612 = vadd.f32 %v3611, %v3152
      %v3613 = vadd.f32 %v3612, %v3154
      %3614 = vadd.xlane.f32.xlu0 %v3613
      %v3615 = vpop.xlane.xlu0 %3614
      %v3616 = vadd.f32 %v3156, %v3158
      %v3617 = vadd.f32 %v3616, %v3160
      %v3618 = vadd.f32 %v3617, %v3162
      %3619 = vadd.xlane.f32.xlu0 %v3618
      %v3620 = vpop.xlane.xlu0 %3619
      %v3621 = vadd.f32 %v3164, %v3166
      %v3622 = vadd.f32 %v3621, %v3168
      %v3623 = vadd.f32 %v3622, %v3170
      %3624 = vadd.xlane.f32.xlu0 %v3623
      %v3625 = vpop.xlane.xlu0 %3624
      %v3626 = vadd.f32 %v3172, %v3174
      %v3627 = vadd.f32 %v3626, %v3176
      %v3628 = vadd.f32 %v3627, %v3178
      %3629 = vadd.xlane.f32.xlu0 %v3628
      %v3630 = vpop.xlane.xlu0 %3629
      %v3631 = vadd.f32 %v3180, %v3182
      %v3632 = vadd.f32 %v3631, %v3184
      %v3633 = vadd.f32 %v3632, %v3186
      %3634 = vadd.xlane.f32.xlu0 %v3633
      %v3635 = vpop.xlane.xlu0 %3634
      %v3636 = vadd.f32 %v3188, %v3190
      %v3637 = vadd.f32 %v3636, %v3192
      %v3638 = vadd.f32 %v3637, %v3194
      %3639 = vadd.xlane.f32.xlu0 %v3638
      %v3640 = vpop.xlane.xlu0 %3639
      %v3641 = vadd.f32 %v3196, %v3198
      %v3642 = vadd.f32 %v3641, %v3200
      %v3643 = vadd.f32 %v3642, %v3202
      %3644 = vadd.xlane.f32.xlu0 %v3643
      %v3645 = vpop.xlane.xlu0 %3644
      %v3646 = vadd.f32 %v3204, %v3206
      %v3647 = vadd.f32 %v3646, %v3208
      %v3648 = vadd.f32 %v3647, %v3210
      %3649 = vadd.xlane.f32.xlu0 %v3648
      %v3650 = vpop.xlane.xlu0 %3649
      %v3651 = vadd.f32 %v3212, %v3214
      %v3652 = vadd.f32 %v3651, %v3216
      %v3653 = vadd.f32 %v3652, %v3218
      %3654 = vadd.xlane.f32.xlu0 %v3653
      %v3655 = vpop.xlane.xlu0 %3654
      %v3656 = vadd.f32 %v3220, %v3222
      %v3657 = vadd.f32 %v3656, %v3224
      %v3658 = vadd.f32 %v3657, %v3226
      %3659 = vadd.xlane.f32.xlu0 %v3658
      %v3660 = vpop.xlane.xlu0 %3659
      %v3661 = vadd.f32 %v3228, %v3230
      %v3662 = vadd.f32 %v3661, %v3232
      %v3663 = vadd.f32 %v3662, %v3234
      %3664 = vadd.xlane.f32.xlu0 %v3663
      %v3665 = vpop.xlane.xlu0 %3664
      %v3666 = vadd.f32 %v3236, %v3238
      %v3667 = vadd.f32 %v3666, %v3240
      %v3668 = vadd.f32 %v3667, %v3242
      %3669 = vadd.xlane.f32.xlu0 %v3668
      %v3670 = vpop.xlane.xlu0 %3669
      %v3671 = vadd.f32 %v3244, %v3246
      %v3672 = vadd.f32 %v3671, %v3248
      %v3673 = vadd.f32 %v3672, %v3250
      %3674 = vadd.xlane.f32.xlu0 %v3673
      %v3675 = vpop.xlane.xlu0 %3674
      %v3676 = vadd.f32 %v3252, %v3254
      %v3677 = vadd.f32 %v3676, %v3256
      %v3678 = vadd.f32 %v3677, %v3258
      %3679 = vadd.xlane.f32.xlu0 %v3678
      %v3680 = vpop.xlane.xlu0 %3679
      %v3681 = vadd.f32 %v3260, %v3262
      %v3682 = vadd.f32 %v3681, %v3264
      %v3683 = vadd.f32 %v3682, %v3266
      %3684 = vadd.xlane.f32.xlu0 %v3683
      %v3685 = vpop.xlane.xlu0 %3684
      %v3686 = vadd.f32 %v3268, %v3270
      %v3687 = vadd.f32 %v3686, %v3272
      %v3688 = vadd.f32 %v3687, %v3274
      %3689 = vadd.xlane.f32.xlu0 %v3688
      %v3690 = vpop.xlane.xlu0 %3689
      %v3691 = vadd.f32 %v3276, %v3278
      %v3692 = vadd.f32 %v3691, %v3280
      %v3693 = vadd.f32 %v3692, %v3282
      %3694 = vadd.xlane.f32.xlu0 %v3693
      %v3695 = vpop.xlane.xlu0 %3694
      %v3696 = vadd.f32 %v3284, %v3286
      %v3697 = vadd.f32 %v3696, %v3288
      %v3698 = vadd.f32 %v3697, %v3290
      %3699 = vadd.xlane.f32.xlu0 %v3698
      %v3700 = vpop.xlane.xlu0 %3699
      %v3701 = vadd.f32 %v3292, %v3294
      %v3702 = vadd.f32 %v3701, %v3296
      %v3703 = vadd.f32 %v3702, %v3298
      %3704 = vadd.xlane.f32.xlu0 %v3703
      %v3705 = vpop.xlane.xlu0 %3704
      %v3706 = vadd.f32 %v3300, %v3302
      %v3707 = vadd.f32 %v3706, %v3304
      %v3708 = vadd.f32 %v3707, %v3306
      %3709 = vadd.xlane.f32.xlu0 %v3708
      %v3710 = vpop.xlane.xlu0 %3709
      %v3711 = vadd.f32 %v3308, %v3310
      %v3712 = vadd.f32 %v3711, %v3312
      %v3713 = vadd.f32 %v3712, %v3314
      %3714 = vadd.xlane.f32.xlu0 %v3713
      %v3715 = vpop.xlane.xlu0 %3714
      %v3716 = vadd.f32 %v3316, %v3318
      %v3717 = vadd.f32 %v3716, %v3320
      %v3718 = vadd.f32 %v3717, %v3322
      %3719 = vadd.xlane.f32.xlu0 %v3718
      %v3720 = vpop.xlane.xlu0 %3719
      %v3721 = vadd.f32 %v3324, %v3326
      %v3722 = vadd.f32 %v3721, %v3328
      %v3723 = vadd.f32 %v3722, %v3330
      %3724 = vadd.xlane.f32.xlu0 %v3723
      %v3725 = vpop.xlane.xlu0 %3724
      %v3726 = vadd.f32 %v3332, %v3334
      %v3727 = vadd.f32 %v3726, %v3336
      %v3728 = vadd.f32 %v3727, %v3338
      %3729 = vadd.xlane.f32.xlu0 %v3728
      %v3730 = vpop.xlane.xlu0 %3729
      %v3731 = vadd.f32 %v3340, %v3342
      %v3732 = vadd.f32 %v3731, %v3344
      %v3733 = vadd.f32 %v3732, %v3346
      %3734 = vadd.xlane.f32.xlu0 %v3733
      %v3735 = vpop.xlane.xlu0 %3734
      %v3736 = vadd.f32 %v3348, %v3350
      %v3737 = vadd.f32 %v3736, %v3352
      %v3738 = vadd.f32 %v3737, %v3354
      %3739 = vadd.xlane.f32.xlu0 %v3738
      %v3740 = vpop.xlane.xlu0 %3739
      %v3741 = vadd.f32 %v3356, %v3358
      %v3742 = vadd.f32 %v3741, %v3360
      %v3743 = vadd.f32 %v3742, %v3362
      %3744 = vadd.xlane.f32.xlu0 %v3743
      %v3745 = vpop.xlane.xlu0 %3744
      %v3746 = vadd.f32 %v3364, %v3366
      %v3747 = vadd.f32 %v3746, %v3368
      %v3748 = vadd.f32 %v3747, %v3370
      %3749 = vadd.xlane.f32.xlu0 %v3748
      %v3750 = vpop.xlane.xlu0 %3749
      %v3751 = vadd.f32 %v3372, %v3374
      %v3752 = vadd.f32 %v3751, %v3376
      %v3753 = vadd.f32 %v3752, %v3378
      %3754 = vadd.xlane.f32.xlu0 %v3753
      %v3755 = vpop.xlane.xlu0 %3754
      %v3756 = vadd.f32 %v3380, %v3382
      %v3757 = vadd.f32 %v3756, %v3384
      %v3758 = vadd.f32 %v3757, %v3386
      %3759 = vadd.xlane.f32.xlu0 %v3758
      %v3760 = vpop.xlane.xlu0 %3759
      %v3761 = vadd.f32 %v3388, %v3390
      %v3762 = vadd.f32 %v3761, %v3392
      %v3763 = vadd.f32 %v3762, %v3394
      %3764 = vadd.xlane.f32.xlu0 %v3763
      %v3765 = vpop.xlane.xlu0 %3764
      %v3766 = vadd.f32 %v3396, %v3398
      %v3767 = vadd.f32 %v3766, %v3400
      %v3768 = vadd.f32 %v3767, %v3402
      %3769 = vadd.xlane.f32.xlu0 %v3768
      %v3770 = vpop.xlane.xlu0 %3769
      %v3771 = vadd.f32 %v3404, %v3406
      %v3772 = vadd.f32 %v3771, %v3408
      %v3773 = vadd.f32 %v3772, %v3410
      %3774 = vadd.xlane.f32.xlu0 %v3773
      %v3775 = vpop.xlane.xlu0 %3774
      %v3776 = vadd.f32 %v3412, %v3414
      %v3777 = vadd.f32 %v3776, %v3416
      %v3778 = vadd.f32 %v3777, %v3418
      %3779 = vadd.xlane.f32.xlu0 %v3778
      %v3780 = vpop.xlane.xlu0 %3779
      %v3781 = vadd.f32 %v3420, %v3422
      %v3782 = vadd.f32 %v3781, %v3424
      %v3783 = vadd.f32 %v3782, %v3426
      %3784 = vadd.xlane.f32.xlu0 %v3783
      %v3785 = vpop.xlane.xlu0 %3784
      %v3786 = vadd.f32 %v3428, %v3430
      %v3787 = vadd.f32 %v3786, %v3432
      %v3788 = vadd.f32 %v3787, %v3434
      %3789 = vadd.xlane.f32.xlu0 %v3788
      %v3790 = vpop.xlane.xlu0 %3789
      %v3791 = vadd.f32 %v3436, %v3438
      %v3792 = vadd.f32 %v3791, %v3440
      %v3793 = vadd.f32 %v3792, %v3442
      %3794 = vadd.xlane.f32.xlu0 %v3793
      %v3795 = vpop.xlane.xlu0 %3794
      %v3796 = vadd.f32 %v3444, %v3446
      %v3797 = vadd.f32 %v3796, %v3448
      %v3798 = vadd.f32 %v3797, %v3450
      %3799 = vadd.xlane.f32.xlu0 %v3798
      %v3800 = vpop.xlane.xlu0 %3799
      %v3801 = vadd.f32 %v3452, %v3454
      %v3802 = vadd.f32 %v3801, %v3456
      %v3803 = vadd.f32 %v3802, %v3458
      %3804 = vadd.xlane.f32.xlu0 %v3803
      %v3805 = vpop.xlane.xlu0 %3804
      %v3806 = vadd.f32 %v3460, %v3462
      %v3807 = vadd.f32 %v3806, %v3464
      %v3808 = vadd.f32 %v3807, %v3466
      %3809 = vadd.xlane.f32.xlu0 %v3808
      %v3810 = vpop.xlane.xlu0 %3809
      %v3811 = vadd.f32 %v3468, %v3470
      %v3812 = vadd.f32 %v3811, %v3472
      %v3813 = vadd.f32 %v3812, %v3474
      %3814 = vadd.xlane.f32.xlu0 %v3813
      %v3815 = vpop.xlane.xlu0 %3814
      %v3816 = vadd.f32 %v3476, %v3478
      %v3817 = vadd.f32 %v3816, %v3480
      %v3818 = vadd.f32 %v3817, %v3482
      %3819 = vadd.xlane.f32.xlu0 %v3818
      %v3820 = vpop.xlane.xlu0 %3819
      %v3821 = vadd.f32 %v3484, %v3486
      %v3822 = vadd.f32 %v3821, %v3488
      %v3823 = vadd.f32 %v3822, %v3490
      %3824 = vadd.xlane.f32.xlu0 %v3823
      %v3825 = vpop.xlane.xlu0 %3824
      %v3826 = vadd.f32 %v3492, %v3494
      %v3827 = vadd.f32 %v3826, %v3496
      %v3828 = vadd.f32 %v3827, %v3498
      %3829 = vadd.xlane.f32.xlu0 %v3828
      %v3830 = vpop.xlane.xlu0 %3829
      %v3831 = vadd.f32 %v3500, %v3502
      %v3832 = vadd.f32 %v3831, %v3504
      %v3833 = vadd.f32 %v3832, %v3506
      %3834 = vadd.xlane.f32.xlu0 %v3833
      %v3835 = vpop.xlane.xlu0 %3834
      %v3836 = vadd.f32 %v3508, %v3510
      %v3837 = vadd.f32 %v3836, %v3512
      %v3838 = vadd.f32 %v3837, %v3514
      %3839 = vadd.xlane.f32.xlu0 %v3838
      %v3840 = vpop.xlane.xlu0 %3839
      %v3841 = vadd.f32 %v3516, %v3518
      %v3842 = vadd.f32 %v3841, %v3520
      %v3843 = vadd.f32 %v3842, %v3522
      %3844 = vadd.xlane.f32.xlu0 %v3843
      %v3845 = vpop.xlane.xlu0 %3844
      %v3846 = vadd.f32 %v3524, %v3526
      %v3847 = vadd.f32 %v3846, %v3528
      %v3848 = vadd.f32 %v3847, %v3530
      %3849 = vadd.xlane.f32.xlu0 %v3848
      %v3850 = vpop.xlane.xlu0 %3849
      %v3851 = vmul.f32 %v2636, %v2123
      %v3852 = vmul.f32 %v2638, %v2124
      %v3853 = vmul.f32 %v2640, %v2125
      %v3854 = vmul.f32 %v2642, %v2126
      %v3855 = vmul.f32 %v2644, %v2127
      %v3856 = vmul.f32 %v2646, %v2128
      %v3857 = vmul.f32 %v2648, %v2129
      %v3858 = vmul.f32 %v2650, %v2130
      %v3859 = vmul.f32 %v2652, %v2131
      %v3860 = vmul.f32 %v2654, %v2132
      %v3861 = vmul.f32 %v2656, %v2133
      %v3862 = vmul.f32 %v2658, %v2134
      %v3863 = vmul.f32 %v2660, %v2135
      %v3864 = vmul.f32 %v2662, %v2136
      %v3865 = vmul.f32 %v2664, %v2137
      %v3866 = vmul.f32 %v2666, %v2138
      %v3867 = vmul.f32 %v2668, %v2139
      %v3868 = vmul.f32 %v2670, %v2140
      %v3869 = vmul.f32 %v2672, %v2141
      %v3870 = vmul.f32 %v2674, %v2142
      %v3871 = vmul.f32 %v2676, %v2143
      %v3872 = vmul.f32 %v2678, %v2144
      %v3873 = vmul.f32 %v2680, %v2145
      %v3874 = vmul.f32 %v2682, %v2146
      %v3875 = vmul.f32 %v2684, %v2147
      %v3876 = vmul.f32 %v2686, %v2148
      %v3877 = vmul.f32 %v2688, %v2149
      %v3878 = vmul.f32 %v2690, %v2150
      %v3879 = vmul.f32 %v2692, %v2151
      %v3880 = vmul.f32 %v2694, %v2152
      %v3881 = vmul.f32 %v2696, %v2153
      %v3882 = vmul.f32 %v2698, %v2154
      %v3883 = vmul.f32 %v2700, %v2155
      %v3884 = vmul.f32 %v2702, %v2156
      %v3885 = vmul.f32 %v2704, %v2157
      %v3886 = vmul.f32 %v2706, %v2158
      %v3887 = vmul.f32 %v2708, %v2159
      %v3888 = vmul.f32 %v2710, %v2160
      %v3889 = vmul.f32 %v2712, %v2161
      %v3890 = vmul.f32 %v2714, %v2162
      %v3891 = vmul.f32 %v2716, %v2163
      %v3892 = vmul.f32 %v2718, %v2164
      %v3893 = vmul.f32 %v2720, %v2165
      %v3894 = vmul.f32 %v2722, %v2166
      %v3895 = vmul.f32 %v2724, %v2167
      %v3896 = vmul.f32 %v2726, %v2168
      %v3897 = vmul.f32 %v2728, %v2169
      %v3898 = vmul.f32 %v2730, %v2170
      %v3899 = vmul.f32 %v2732, %v2171
      %v3900 = vmul.f32 %v2734, %v2172
      %v3901 = vmul.f32 %v2736, %v2173
      %v3902 = vmul.f32 %v2738, %v2174
      %v3903 = vmul.f32 %v2740, %v2175
      %v3904 = vmul.f32 %v2742, %v2176
      %v3905 = vmul.f32 %v2744, %v2177
      %v3906 = vmul.f32 %v2746, %v2178
      %v3907 = vmul.f32 %v2748, %v2179
      %v3908 = vmul.f32 %v2750, %v2180
      %v3909 = vmul.f32 %v2752, %v2181
      %v3910 = vmul.f32 %v2754, %v2182
      %v3911 = vmul.f32 %v2756, %v2183
      %v3912 = vmul.f32 %v2758, %v2184
      %v3913 = vmul.f32 %v2760, %v2185
      %v3914 = vmul.f32 %v2762, %v2186
      %v3915 = vadd.f32 %v3851, %v3535
      %v3916 = vadd.f32 %v3852, %v3540
      %v3917 = vadd.f32 %v3853, %v3545
      %v3918 = vadd.f32 %v3854, %v3550
      %v3919 = vadd.f32 %v3855, %v3555
      %v3920 = vadd.f32 %v3856, %v3560
      %v3921 = vadd.f32 %v3857, %v3565
      %v3922 = vadd.f32 %v3858, %v3570
      %v3923 = vadd.f32 %v3859, %v3575
      %v3924 = vadd.f32 %v3860, %v3580
      %v3925 = vadd.f32 %v3861, %v3585
      %v3926 = vadd.f32 %v3862, %v3590
      %v3927 = vadd.f32 %v3863, %v3595
      %v3928 = vadd.f32 %v3864, %v3600
      %v3929 = vadd.f32 %v3865, %v3605
      %v3930 = vadd.f32 %v3866, %v3610
      %v3931 = vadd.f32 %v3867, %v3615
      %v3932 = vadd.f32 %v3868, %v3620
      %v3933 = vadd.f32 %v3869, %v3625
      %v3934 = vadd.f32 %v3870, %v3630
      %v3935 = vadd.f32 %v3871, %v3635
      %v3936 = vadd.f32 %v3872, %v3640
      %v3937 = vadd.f32 %v3873, %v3645
      %v3938 = vadd.f32 %v3874, %v3650
      %v3939 = vadd.f32 %v3875, %v3655
      %v3940 = vadd.f32 %v3876, %v3660
      %v3941 = vadd.f32 %v3877, %v3665
      %v3942 = vadd.f32 %v3878, %v3670
      %v3943 = vadd.f32 %v3879, %v3675
      %v3944 = vadd.f32 %v3880, %v3680
      %v3945 = vadd.f32 %v3881, %v3685
      %v3946 = vadd.f32 %v3882, %v3690
      %v3947 = vadd.f32 %v3883, %v3695
      %v3948 = vadd.f32 %v3884, %v3700
      %v3949 = vadd.f32 %v3885, %v3705
      %v3950 = vadd.f32 %v3886, %v3710
      %v3951 = vadd.f32 %v3887, %v3715
      %v3952 = vadd.f32 %v3888, %v3720
      %v3953 = vadd.f32 %v3889, %v3725
      %v3954 = vadd.f32 %v3890, %v3730
      %v3955 = vadd.f32 %v3891, %v3735
      %v3956 = vadd.f32 %v3892, %v3740
      %v3957 = vadd.f32 %v3893, %v3745
      %v3958 = vadd.f32 %v3894, %v3750
      %v3959 = vadd.f32 %v3895, %v3755
      %v3960 = vadd.f32 %v3896, %v3760
      %v3961 = vadd.f32 %v3897, %v3765
      %v3962 = vadd.f32 %v3898, %v3770
      %v3963 = vadd.f32 %v3899, %v3775
      %v3964 = vadd.f32 %v3900, %v3780
      %v3965 = vadd.f32 %v3901, %v3785
      %v3966 = vadd.f32 %v3902, %v3790
      %v3967 = vadd.f32 %v3903, %v3795
      %v3968 = vadd.f32 %v3904, %v3800
      %v3969 = vadd.f32 %v3905, %v3805
      %v3970 = vadd.f32 %v3906, %v3810
      %v3971 = vadd.f32 %v3907, %v3815
      %v3972 = vadd.f32 %v3908, %v3820
      %v3973 = vadd.f32 %v3909, %v3825
      %v3974 = vadd.f32 %v3910, %v3830
      %v3975 = vadd.f32 %v3911, %v3835
      %v3976 = vadd.f32 %v3912, %v3840
      %v3977 = vadd.f32 %v3913, %v3845
      %v3978 = vadd.f32 %v3914, %v3850
      %3979 = vst [vmem:[#allocation3] sm:$0xff] %v3915
      %3980 = vst [vmem:[#allocation3 + $0x8] sm:$0xff] %v3916
      %3981 = vst [vmem:[#allocation3 + $0x10] sm:$0xff] %v3917
      %3982 = vst [vmem:[#allocation3 + $0x18] sm:$0xff] %v3918
      %3983 = vst [vmem:[#allocation3 + $0x20] sm:$0xff] %v3919
      %3984 = vst [vmem:[#allocation3 + $0x28] sm:$0xff] %v3920
      %3985 = vst [vmem:[#allocation3 + $0x30] sm:$0xff] %v3921
      %3986 = vst [vmem:[#allocation3 + $0x38] sm:$0xff] %v3922
      %3987 = vst [vmem:[#allocation3 + $0x40] sm:$0xff] %v3923
      %3988 = vst [vmem:[#allocation3 + $0x48] sm:$0xff] %v3924
      %3989 = vst [vmem:[#allocation3 + $0x50] sm:$0xff] %v3925
      %3990 = vst [vmem:[#allocation3 + $0x58] sm:$0xff] %v3926
      %3991 = vst [vmem:[#allocation3 + $0x60] sm:$0xff] %v3927
      %3992 = vst [vmem:[#allocation3 + $0x68] sm:$0xff] %v3928
      %3993 = vst [vmem:[#allocation3 + $0x70] sm:$0xff] %v3929
      %3994 = vst [vmem:[#allocation3 + $0x78] sm:$0xff] %v3930
      %3995 = vst [vmem:[#allocation3 + $0x80] sm:$0xff] %v3931
      %3996 = vst [vmem:[#allocation3 + $0x88] sm:$0xff] %v3932
      %3997 = vst [vmem:[#allocation3 + $0x90] sm:$0xff] %v3933
      %3998 = vst [vmem:[#allocation3 + $0x98] sm:$0xff] %v3934
      %3999 = vst [vmem:[#allocation3 + $0xa0] sm:$0xff] %v3935
      %4000 = vst [vmem:[#allocation3 + $0xa8] sm:$0xff] %v3936
      %4001 = vst [vmem:[#allocation3 + $0xb0] sm:$0xff] %v3937
      %4002 = vst [vmem:[#allocation3 + $0xb8] sm:$0xff] %v3938
      %4003 = vst [vmem:[#allocation3 + $0xc0] sm:$0xff] %v3939
      %4004 = vst [vmem:[#allocation3 + $0xc8] sm:$0xff] %v3940
      %4005 = vst [vmem:[#allocation3 + $0xd0] sm:$0xff] %v3941
      %4006 = vst [vmem:[#allocation3 + $0xd8] sm:$0xff] %v3942
      %4007 = vst [vmem:[#allocation3 + $0xe0] sm:$0xff] %v3943
      %4008 = vst [vmem:[#allocation3 + $0xe8] sm:$0xff] %v3944
      %4009 = vst [vmem:[#allocation3 + $0xf0] sm:$0xff] %v3945
      %4010 = vst [vmem:[#allocation3 + $0xf8] sm:$0xff] %v3946
      %4011 = vst [vmem:[#allocation3 + $0x100] sm:$0xff] %v3947
      %4012 = vst [vmem:[#allocation3 + $0x108] sm:$0xff] %v3948
      %4013 = vst [vmem:[#allocation3 + $0x110] sm:$0xff] %v3949
      %4014 = vst [vmem:[#allocation3 + $0x118] sm:$0xff] %v3950
      %4015 = vst [vmem:[#allocation3 + $0x120] sm:$0xff] %v3951
      %4016 = vst [vmem:[#allocation3 + $0x128] sm:$0xff] %v3952
      %4017 = vst [vmem:[#allocation3 + $0x130] sm:$0xff] %v3953
      %4018 = vst [vmem:[#allocation3 + $0x138] sm:$0xff] %v3954
      %4019 = vst [vmem:[#allocation3 + $0x140] sm:$0xff] %v3955
      %4020 = vst [vmem:[#allocation3 + $0x148] sm:$0xff] %v3956
      %4021 = vst [vmem:[#allocation3 + $0x150] sm:$0xff] %v3957
      %4022 = vst [vmem:[#allocation3 + $0x158] sm:$0xff] %v3958
      %4023 = vst [vmem:[#allocation3 + $0x160] sm:$0xff] %v3959
      %4024 = vst [vmem:[#allocation3 + $0x168] sm:$0xff] %v3960
      %4025 = vst [vmem:[#allocation3 + $0x170] sm:$0xff] %v3961
      %4026 = vst [vmem:[#allocation3 + $0x178] sm:$0xff] %v3962
      %4027 = vst [vmem:[#allocation3 + $0x180] sm:$0xff] %v3963
      %4028 = vst [vmem:[#allocation3 + $0x188] sm:$0xff] %v3964
      %4029 = vst [vmem:[#allocation3 + $0x190] sm:$0xff] %v3965
      %4030 = vst [vmem:[#allocation3 + $0x198] sm:$0xff] %v3966
      %4031 = vst [vmem:[#allocation3 + $0x1a0] sm:$0xff] %v3967
      %4032 = vst [vmem:[#allocation3 + $0x1a8] sm:$0xff] %v3968
      %4033 = vst [vmem:[#allocation3 + $0x1b0] sm:$0xff] %v3969
      %4034 = vst [vmem:[#allocation3 + $0x1b8] sm:$0xff] %v3970
      %4035 = vst [vmem:[#allocation3 + $0x1c0] sm:$0xff] %v3971
      %4036 = vst [vmem:[#allocation3 + $0x1c8] sm:$0xff] %v3972
      %4037 = vst [vmem:[#allocation3 + $0x1d0] sm:$0xff] %v3973
      %4038 = vst [vmem:[#allocation3 + $0x1d8] sm:$0xff] %v3974
      %4039 = vst [vmem:[#allocation3 + $0x1e0] sm:$0xff] %v3975
      %4040 = vst [vmem:[#allocation3 + $0x1e8] sm:$0xff] %v3976
      %4041 = vst [vmem:[#allocation3 + $0x1f0] sm:$0xff] %v3977
      %4042 = vst [vmem:[#allocation3 + $0x1f8] sm:$0xff] %v3978
      %4043 = vst [vmem:[#allocation2] sm:$0xff] %v2507
      %4044 = vst [vmem:[#allocation2 + $0x8] sm:$0xff] %v2508
      %4045 = vst [vmem:[#allocation2 + $0x10] sm:$0xff] %v2509
      %4046 = vst [vmem:[#allocation2 + $0x18] sm:$0xff] %v2510
      %4047 = vst [vmem:[#allocation2 + $0x20] sm:$0xff] %v2511
      %4048 = vst [vmem:[#allocation2 + $0x28] sm:$0xff] %v2512
      %4049 = vst [vmem:[#allocation2 + $0x30] sm:$0xff] %v2513
      %4050 = vst [vmem:[#allocation2 + $0x38] sm:$0xff] %v2514
      %4051 = vst [vmem:[#allocation2 + $0x40] sm:$0xff] %v2515
      %4052 = vst [vmem:[#allocation2 + $0x48] sm:$0xff] %v2516
      %4053 = vst [vmem:[#allocation2 + $0x50] sm:$0xff] %v2517
      %4054 = vst [vmem:[#allocation2 + $0x58] sm:$0xff] %v2518
      %4055 = vst [vmem:[#allocation2 + $0x60] sm:$0xff] %v2519
      %4056 = vst [vmem:[#allocation2 + $0x68] sm:$0xff] %v2520
      %4057 = vst [vmem:[#allocation2 + $0x70] sm:$0xff] %v2521
      %4058 = vst [vmem:[#allocation2 + $0x78] sm:$0xff] %v2522
      %4059 = vst [vmem:[#allocation2 + $0x80] sm:$0xff] %v2523
      %4060 = vst [vmem:[#allocation2 + $0x88] sm:$0xff] %v2524
      %4061 = vst [vmem:[#allocation2 + $0x90] sm:$0xff] %v2525
      %4062 = vst [vmem:[#allocation2 + $0x98] sm:$0xff] %v2526
      %4063 = vst [vmem:[#allocation2 + $0xa0] sm:$0xff] %v2527
      %4064 = vst [vmem:[#allocation2 + $0xa8] sm:$0xff] %v2528
      %4065 = vst [vmem:[#allocation2 + $0xb0] sm:$0xff] %v2529
      %4066 = vst [vmem:[#allocation2 + $0xb8] sm:$0xff] %v2530
      %4067 = vst [vmem:[#allocation2 + $0xc0] sm:$0xff] %v2531
      %4068 = vst [vmem:[#allocation2 + $0xc8] sm:$0xff] %v2532
      %4069 = vst [vmem:[#allocation2 + $0xd0] sm:$0xff] %v2533
      %4070 = vst [vmem:[#allocation2 + $0xd8] sm:$0xff] %v2534
      %4071 = vst [vmem:[#allocation2 + $0xe0] sm:$0xff] %v2535
      %4072 = vst [vmem:[#allocation2 + $0xe8] sm:$0xff] %v2536
      %4073 = vst [vmem:[#allocation2 + $0xf0] sm:$0xff] %v2537
      %4074 = vst [vmem:[#allocation2 + $0xf8] sm:$0xff] %v2538
      %4075 = vst [vmem:[#allocation2 + $0x100] sm:$0xff] %v2539
      %4076 = vst [vmem:[#allocation2 + $0x108] sm:$0xff] %v2540
      %4077 = vst [vmem:[#allocation2 + $0x110] sm:$0xff] %v2541
      %4078 = vst [vmem:[#allocation2 + $0x118] sm:$0xff] %v2542
      %4079 = vst [vmem:[#allocation2 + $0x120] sm:$0xff] %v2543
      %4080 = vst [vmem:[#allocation2 + $0x128] sm:$0xff] %v2544
      %4081 = vst [vmem:[#allocation2 + $0x130] sm:$0xff] %v2545
      %4082 = vst [vmem:[#allocation2 + $0x138] sm:$0xff] %v2546
      %4083 = vst [vmem:[#allocation2 + $0x140] sm:$0xff] %v2547
      %4084 = vst [vmem:[#allocation2 + $0x148] sm:$0xff] %v2548
      %4085 = vst [vmem:[#allocation2 + $0x150] sm:$0xff] %v2549
      %4086 = vst [vmem:[#allocation2 + $0x158] sm:$0xff] %v2550
      %4087 = vst [vmem:[#allocation2 + $0x160] sm:$0xff] %v2551
      %4088 = vst [vmem:[#allocation2 + $0x168] sm:$0xff] %v2552
      %4089 = vst [vmem:[#allocation2 + $0x170] sm:$0xff] %v2553
      %4090 = vst [vmem:[#allocation2 + $0x178] sm:$0xff] %v2554
      %4091 = vst [vmem:[#allocation2 + $0x180] sm:$0xff] %v2555
      %4092 = vst [vmem:[#allocation2 + $0x188] sm:$0xff] %v2556
      %4093 = vst [vmem:[#allocation2 + $0x190] sm:$0xff] %v2557
      %4094 = vst [vmem:[#allocation2 + $0x198] sm:$0xff] %v2558
      %4095 = vst [vmem:[#allocation2 + $0x1a0] sm:$0xff] %v2559
      %4096 = vst [vmem:[#allocation2 + $0x1a8] sm:$0xff] %v2560
      %4097 = vst [vmem:[#allocation2 + $0x1b0] sm:$0xff] %v2561
      %4098 = vst [vmem:[#allocation2 + $0x1b8] sm:$0xff] %v2562
      %4099 = vst [vmem:[#allocation2 + $0x1c0] sm:$0xff] %v2563
      %4100 = vst [vmem:[#allocation2 + $0x1c8] sm:$0xff] %v2564
      %4101 = vst [vmem:[#allocation2 + $0x1d0] sm:$0xff] %v2565
      %4102 = vst [vmem:[#allocation2 + $0x1d8] sm:$0xff] %v2566
      %4103 = vst [vmem:[#allocation2 + $0x1e0] sm:$0xff] %v2567
      %4104 = vst [vmem:[#allocation2 + $0x1e8] sm:$0xff] %v2568
      %4105 = vst [vmem:[#allocation2 + $0x1f0] sm:$0xff] %v2569
      %4106 = vst [vmem:[#allocation2 + $0x1f8] sm:$0xff] %v2570
      %v4107 = vpack.c.bf16 %v3028, %v3020
      %v4108 = vpack.c.bf16 %v3030, %v3022
      %v4109 = vpack.c.bf16 %v3032, %v3024
      %v4110 = vpack.c.bf16 %v3034, %v3026
      %v4111 = vpack.c.bf16 %v3044, %v3036
      %v4112 = vpack.c.bf16 %v3046, %v3038
      %v4113 = vpack.c.bf16 %v3048, %v3040
      %v4114 = vpack.c.bf16 %v3050, %v3042
      %v4115 = vpack.c.bf16 %v3060, %v3052
      %v4116 = vpack.c.bf16 %v3062, %v3054
      %v4117 = vpack.c.bf16 %v3064, %v3056
      %v4118 = vpack.c.bf16 %v3066, %v3058
      %v4119 = vpack.c.bf16 %v3076, %v3068
      %v4120 = vpack.c.bf16 %v3078, %v3070
      %v4121 = vpack.c.bf16 %v3080, %v3072
      %v4122 = vpack.c.bf16 %v3082, %v3074
      %v4123 = vpack.c.bf16 %v3092, %v3084
      %v4124 = vpack.c.bf16 %v3094, %v3086
      %v4125 = vpack.c.bf16 %v3096, %v3088
      %v4126 = vpack.c.bf16 %v3098, %v3090
      %v4127 = vpack.c.bf16 %v3108, %v3100
      %v4128 = vpack.c.bf16 %v3110, %v3102
      %v4129 = vpack.c.bf16 %v3112, %v3104
      %v4130 = vpack.c.bf16 %v3114, %v3106
      %v4131 = vpack.c.bf16 %v3124, %v3116
      %v4132 = vpack.c.bf16 %v3126, %v3118
      %v4133 = vpack.c.bf16 %v3128, %v3120
      %v4134 = vpack.c.bf16 %v3130, %v3122
      %v4135 = vpack.c.bf16 %v3140, %v3132
      %v4136 = vpack.c.bf16 %v3142, %v3134
      %v4137 = vpack.c.bf16 %v3144, %v3136
      %v4138 = vpack.c.bf16 %v3146, %v3138
      %v4139 = vpack.c.bf16 %v3156, %v3148
      %v4140 = vpack.c.bf16 %v3158, %v3150
      %v4141 = vpack.c.bf16 %v3160, %v3152
      %v4142 = vpack.c.bf16 %v3162, %v3154
      %v4143 = vpack.c.bf16 %v3172, %v3164
      %v4144 = vpack.c.bf16 %v3174, %v3166
      %v4145 = vpack.c.bf16 %v3176, %v3168
      %v4146 = vpack.c.bf16 %v3178, %v3170
      %v4147 = vpack.c.bf16 %v3188, %v3180
      %v4148 = vpack.c.bf16 %v3190, %v3182
      %v4149 = vpack.c.bf16 %v3192, %v3184
      %v4150 = vpack.c.bf16 %v3194, %v3186
      %v4151 = vpack.c.bf16 %v3204, %v3196
      %v4152 = vpack.c.bf16 %v3206, %v3198
      %v4153 = vpack.c.bf16 %v3208, %v3200
      %v4154 = vpack.c.bf16 %v3210, %v3202
      %v4155 = vpack.c.bf16 %v3220, %v3212
      %v4156 = vpack.c.bf16 %v3222, %v3214
      %v4157 = vpack.c.bf16 %v3224, %v3216
      %v4158 = vpack.c.bf16 %v3226, %v3218
      %v4159 = vpack.c.bf16 %v3236, %v3228
      %v4160 = vpack.c.bf16 %v3238, %v3230
      %v4161 = vpack.c.bf16 %v3240, %v3232
      %v4162 = vpack.c.bf16 %v3242, %v3234
      %v4163 = vpack.c.bf16 %v3252, %v3244
      %v4164 = vpack.c.bf16 %v3254, %v3246
      %v4165 = vpack.c.bf16 %v3256, %v3248
      %v4166 = vpack.c.bf16 %v3258, %v3250
      %v4167 = vpack.c.bf16 %v3268, %v3260
      %v4168 = vpack.c.bf16 %v3270, %v3262
      %v4169 = vpack.c.bf16 %v3272, %v3264
      %v4170 = vpack.c.bf16 %v3274, %v3266
      %v4171 = vpack.c.bf16 %v3284, %v3276
      %v4172 = vpack.c.bf16 %v3286, %v3278
      %v4173 = vpack.c.bf16 %v3288, %v3280
      %v4174 = vpack.c.bf16 %v3290, %v3282
      %v4175 = vpack.c.bf16 %v3300, %v3292
      %v4176 = vpack.c.bf16 %v3302, %v3294
      %v4177 = vpack.c.bf16 %v3304, %v3296
      %v4178 = vpack.c.bf16 %v3306, %v3298
      %v4179 = vpack.c.bf16 %v3316, %v3308
      %v4180 = vpack.c.bf16 %v3318, %v3310
      %v4181 = vpack.c.bf16 %v3320, %v3312
      %v4182 = vpack.c.bf16 %v3322, %v3314
      %v4183 = vpack.c.bf16 %v3332, %v3324
      %v4184 = vpack.c.bf16 %v3334, %v3326
      %v4185 = vpack.c.bf16 %v3336, %v3328
      %v4186 = vpack.c.bf16 %v3338, %v3330
      %v4187 = vpack.c.bf16 %v3348, %v3340
      %v4188 = vpack.c.bf16 %v3350, %v3342
      %v4189 = vpack.c.bf16 %v3352, %v3344
      %v4190 = vpack.c.bf16 %v3354, %v3346
      %v4191 = vpack.c.bf16 %v3364, %v3356
      %v4192 = vpack.c.bf16 %v3366, %v3358
      %v4193 = vpack.c.bf16 %v3368, %v3360
      %v4194 = vpack.c.bf16 %v3370, %v3362
      %v4195 = vpack.c.bf16 %v3380, %v3372
      %v4196 = vpack.c.bf16 %v3382, %v3374
      %v4197 = vpack.c.bf16 %v3384, %v3376
      %v4198 = vpack.c.bf16 %v3386, %v3378
      %v4199 = vpack.c.bf16 %v3396, %v3388
      %v4200 = vpack.c.bf16 %v3398, %v3390
      %v4201 = vpack.c.bf16 %v3400, %v3392
      %v4202 = vpack.c.bf16 %v3402, %v3394
      %v4203 = vpack.c.bf16 %v3412, %v3404
      %v4204 = vpack.c.bf16 %v3414, %v3406
      %v4205 = vpack.c.bf16 %v3416, %v3408
      %v4206 = vpack.c.bf16 %v3418, %v3410
      %v4207 = vpack.c.bf16 %v3428, %v3420
      %v4208 = vpack.c.bf16 %v3430, %v3422
      %v4209 = vpack.c.bf16 %v3432, %v3424
      %v4210 = vpack.c.bf16 %v3434, %v3426
      %v4211 = vpack.c.bf16 %v3444, %v3436
      %v4212 = vpack.c.bf16 %v3446, %v3438
      %v4213 = vpack.c.bf16 %v3448, %v3440
      %v4214 = vpack.c.bf16 %v3450, %v3442
      %v4215 = vpack.c.bf16 %v3460, %v3452
      %v4216 = vpack.c.bf16 %v3462, %v3454
      %v4217 = vpack.c.bf16 %v3464, %v3456
      %v4218 = vpack.c.bf16 %v3466, %v3458
      %v4219 = vpack.c.bf16 %v3476, %v3468
      %v4220 = vpack.c.bf16 %v3478, %v3470
      %v4221 = vpack.c.bf16 %v3480, %v3472
      %v4222 = vpack.c.bf16 %v3482, %v3474
      %v4223 = vpack.c.bf16 %v3492, %v3484
      %v4224 = vpack.c.bf16 %v3494, %v3486
      %v4225 = vpack.c.bf16 %v3496, %v3488
      %v4226 = vpack.c.bf16 %v3498, %v3490
      %v4227 = vpack.c.bf16 %v3508, %v3500
      %v4228 = vpack.c.bf16 %v3510, %v3502
      %v4229 = vpack.c.bf16 %v3512, %v3504
      %v4230 = vpack.c.bf16 %v3514, %v3506
      %v4231 = vpack.c.bf16 %v3524, %v3516
      %v4232 = vpack.c.bf16 %v3526, %v3518
      %v4233 = vpack.c.bf16 %v3528, %v3520
      %v4234 = vpack.c.bf16 %v3530, %v3522
      %v4235 = vld [vmem:[%s277] sm:$0xf]
      %v4236 = vld [vmem:[%s277 + $0x4] sm:$0xf]
      %v4237 = vld [vmem:[%s277 + $0x8] sm:$0xf]
      %v4238 = vld [vmem:[%s277 + $0xc] sm:$0xf]
      %v4239 = vld [vmem:[%s277 + $0x10] sm:$0xf]
      %v4240 = vld [vmem:[%s277 + $0x14] sm:$0xf]
      %v4241 = vld [vmem:[%s277 + $0x18] sm:$0xf]
      %v4242 = vld [vmem:[%s277 + $0x1c] sm:$0xf]
      %v4243 = vld [vmem:[%s277 + $0x20] sm:$0xf]
      %v4244 = vld [vmem:[%s277 + $0x24] sm:$0xf]
      %v4245 = vld [vmem:[%s277 + $0x28] sm:$0xf]
      %v4246 = vld [vmem:[%s277 + $0x2c] sm:$0xf]
      %v4247 = vld [vmem:[%s277 + $0x30] sm:$0xf]
      %v4248 = vld [vmem:[%s277 + $0x34] sm:$0xf]
      %v4249 = vld [vmem:[%s277 + $0x38] sm:$0xf]
      %v4250 = vld [vmem:[%s277 + $0x3c] sm:$0xf]
      %v4251 = vld [vmem:[%s277 + $0x40] sm:$0xf]
      %v4252 = vld [vmem:[%s277 + $0x44] sm:$0xf]
      %v4253 = vld [vmem:[%s277 + $0x48] sm:$0xf]
      %v4254 = vld [vmem:[%s277 + $0x4c] sm:$0xf]
      %v4255 = vld [vmem:[%s277 + $0x50] sm:$0xf]
      %v4256 = vld [vmem:[%s277 + $0x54] sm:$0xf]
      %v4257 = vld [vmem:[%s277 + $0x58] sm:$0xf]
      %v4258 = vld [vmem:[%s277 + $0x5c] sm:$0xf]
      %v4259 = vld [vmem:[%s277 + $0x60] sm:$0xf]
      %v4260 = vld [vmem:[%s277 + $0x64] sm:$0xf]
      %v4261 = vld [vmem:[%s277 + $0x68] sm:$0xf]
      %v4262 = vld [vmem:[%s277 + $0x6c] sm:$0xf]
      %v4263 = vld [vmem:[%s277 + $0x70] sm:$0xf]
      %v4264 = vld [vmem:[%s277 + $0x74] sm:$0xf]
      %v4265 = vld [vmem:[%s277 + $0x78] sm:$0xf]
      %v4266 = vld [vmem:[%s277 + $0x7c] sm:$0xf]
      %v4267 = vld [vmem:[%s277 + $0x80] sm:$0xf]
      %v4268 = vld [vmem:[%s277 + $0x84] sm:$0xf]
      %v4269 = vld [vmem:[%s277 + $0x88] sm:$0xf]
      %v4270 = vld [vmem:[%s277 + $0x8c] sm:$0xf]
      %v4271 = vld [vmem:[%s277 + $0x90] sm:$0xf]
      %v4272 = vld [vmem:[%s277 + $0x94] sm:$0xf]
      %v4273 = vld [vmem:[%s277 + $0x98] sm:$0xf]
      %v4274 = vld [vmem:[%s277 + $0x9c] sm:$0xf]
      %v4275 = vld [vmem:[%s277 + $0xa0] sm:$0xf]
      %v4276 = vld [vmem:[%s277 + $0xa4] sm:$0xf]
      %v4277 = vld [vmem:[%s277 + $0xa8] sm:$0xf]
      %v4278 = vld [vmem:[%s277 + $0xac] sm:$0xf]
      %v4279 = vld [vmem:[%s277 + $0xb0] sm:$0xf]
      %v4280 = vld [vmem:[%s277 + $0xb4] sm:$0xf]
      %v4281 = vld [vmem:[%s277 + $0xb8] sm:$0xf]
      %v4282 = vld [vmem:[%s277 + $0xbc] sm:$0xf]
      %v4283 = vld [vmem:[%s277 + $0xc0] sm:$0xf]
      %v4284 = vld [vmem:[%s277 + $0xc4] sm:$0xf]
      %v4285 = vld [vmem:[%s277 + $0xc8] sm:$0xf]
      %v4286 = vld [vmem:[%s277 + $0xcc] sm:$0xf]
      %v4287 = vld [vmem:[%s277 + $0xd0] sm:$0xf]
      %v4288 = vld [vmem:[%s277 + $0xd4] sm:$0xf]
      %v4289 = vld [vmem:[%s277 + $0xd8] sm:$0xf]
      %v4290 = vld [vmem:[%s277 + $0xdc] sm:$0xf]
      %v4291 = vld [vmem:[%s277 + $0xe0] sm:$0xf]
      %v4292 = vld [vmem:[%s277 + $0xe4] sm:$0xf]
      %v4293 = vld [vmem:[%s277 + $0xe8] sm:$0xf]
      %v4294 = vld [vmem:[%s277 + $0xec] sm:$0xf]
      %v4295 = vld [vmem:[%s277 + $0xf0] sm:$0xf]
      %v4296 = vld [vmem:[%s277 + $0xf4] sm:$0xf]
      %v4297 = vld [vmem:[%s277 + $0xf8] sm:$0xf]
      %v4298 = vld [vmem:[%s277 + $0xfc] sm:$0xf]
      %v4363 = vunpack.c.l.b16 %v4235
      %v4364 = vunpack.c.l.b16 %v4236
      %v4365 = vunpack.c.l.b16 %v4237
      %v4366 = vunpack.c.l.b16 %v4238
      %v4367 = vunpack.c.l.b16 %v4239
      %v4368 = vunpack.c.l.b16 %v4240
      %v4369 = vunpack.c.l.b16 %v4241
      %v4370 = vunpack.c.l.b16 %v4242
      %v4371 = vunpack.c.l.b16 %v4243
      %v4372 = vunpack.c.l.b16 %v4244
      %v4373 = vunpack.c.l.b16 %v4245
      %v4374 = vunpack.c.l.b16 %v4246
      %v4375 = vunpack.c.l.b16 %v4247
      %v4376 = vunpack.c.l.b16 %v4248
      %v4377 = vunpack.c.l.b16 %v4249
      %v4378 = vunpack.c.l.b16 %v4250
      %v4379 = vunpack.c.l.b16 %v4251
      %v4380 = vunpack.c.l.b16 %v4252
      %v4381 = vunpack.c.l.b16 %v4253
      %v4382 = vunpack.c.l.b16 %v4254
      %v4383 = vunpack.c.l.b16 %v4255
      %v4384 = vunpack.c.l.b16 %v4256
      %v4385 = vunpack.c.l.b16 %v4257
      %v4386 = vunpack.c.l.b16 %v4258
      %v4387 = vunpack.c.l.b16 %v4259
      %v4388 = vunpack.c.l.b16 %v4260
      %v4389 = vunpack.c.l.b16 %v4261
      %v4390 = vunpack.c.l.b16 %v4262
      %v4391 = vunpack.c.l.b16 %v4263
      %v4392 = vunpack.c.l.b16 %v4264
      %v4393 = vunpack.c.l.b16 %v4265
      %v4394 = vunpack.c.l.b16 %v4266
      %v4395 = vunpack.c.l.b16 %v4267
      %v4396 = vunpack.c.l.b16 %v4268
      %v4397 = vunpack.c.l.b16 %v4269
      %v4398 = vunpack.c.l.b16 %v4270
      %v4399 = vunpack.c.l.b16 %v4271
      %v4400 = vunpack.c.l.b16 %v4272
      %v4401 = vunpack.c.l.b16 %v4273
      %v4402 = vunpack.c.l.b16 %v4274
      %v4403 = vunpack.c.l.b16 %v4275
      %v4404 = vunpack.c.l.b16 %v4276
      %v4405 = vunpack.c.l.b16 %v4277
      %v4406 = vunpack.c.l.b16 %v4278
      %v4407 = vunpack.c.l.b16 %v4279
      %v4408 = vunpack.c.l.b16 %v4280
      %v4409 = vunpack.c.l.b16 %v4281
      %v4410 = vunpack.c.l.b16 %v4282
      %v4411 = vunpack.c.l.b16 %v4283
      %v4412 = vunpack.c.l.b16 %v4284
      %v4413 = vunpack.c.l.b16 %v4285
      %v4414 = vunpack.c.l.b16 %v4286
      %v4415 = vunpack.c.l.b16 %v4287
      %v4416 = vunpack.c.l.b16 %v4288
      %v4417 = vunpack.c.l.b16 %v4289
      %v4418 = vunpack.c.l.b16 %v4290
      %v4419 = vunpack.c.l.b16 %v4291
      %v4420 = vunpack.c.l.b16 %v4292
      %v4421 = vunpack.c.l.b16 %v4293
      %v4422 = vunpack.c.l.b16 %v4294
      %v4423 = vunpack.c.l.b16 %v4295
      %v4424 = vunpack.c.l.b16 %v4296
      %v4425 = vunpack.c.l.b16 %v4297
      %v4426 = vunpack.c.l.b16 %v4298
      %v4427 = vpack.c.b16 %v4364, %v4363
      %v4428 = vpack.c.b16 %v4366, %v4365
      %v4429 = vpack.c.b16 %v4368, %v4367
      %v4430 = vpack.c.b16 %v4370, %v4369
      %v4431 = vpack.c.b16 %v4372, %v4371
      %v4432 = vpack.c.b16 %v4374, %v4373
      %v4433 = vpack.c.b16 %v4376, %v4375
      %v4434 = vpack.c.b16 %v4378, %v4377
      %v4435 = vpack.c.b16 %v4380, %v4379
      %v4436 = vpack.c.b16 %v4382, %v4381
      %v4437 = vpack.c.b16 %v4384, %v4383
      %v4438 = vpack.c.b16 %v4386, %v4385
      %v4439 = vpack.c.b16 %v4388, %v4387
      %v4440 = vpack.c.b16 %v4390, %v4389
      %v4441 = vpack.c.b16 %v4392, %v4391
      %v4442 = vpack.c.b16 %v4394, %v4393
      %v4443 = vpack.c.b16 %v4396, %v4395
      %v4444 = vpack.c.b16 %v4398, %v4397
      %v4445 = vpack.c.b16 %v4400, %v4399
      %v4446 = vpack.c.b16 %v4402, %v4401
      %v4447 = vpack.c.b16 %v4404, %v4403
      %v4448 = vpack.c.b16 %v4406, %v4405
      %v4449 = vpack.c.b16 %v4408, %v4407
      %v4450 = vpack.c.b16 %v4410, %v4409
      %v4451 = vpack.c.b16 %v4412, %v4411
      %v4452 = vpack.c.b16 %v4414, %v4413
      %v4453 = vpack.c.b16 %v4416, %v4415
      %v4454 = vpack.c.b16 %v4418, %v4417
      %v4455 = vpack.c.b16 %v4420, %v4419
      %v4456 = vpack.c.b16 %v4422, %v4421
      %v4457 = vpack.c.b16 %v4424, %v4423
      %v4458 = vpack.c.b16 %v4426, %v4425
      %4491 = vmatpush.bf16.msra.mxu0 %v4434
      %4492 = vmatpush.bf16.msra.mxu0 %v4433
      %4493 = vmatpush.bf16.msra.mxu0 %v4432
      %4494 = vmatpush.bf16.msra.mxu0 %v4431
      %4495 = vmatpush.bf16.msra.mxu0 %v4430
      %4496 = vmatpush.bf16.msra.mxu0 %v4429
      %4497 = vmatpush.bf16.msra.mxu0 %v4428
      %4498 = vmatpush.bf16.msra.mxu0 %v4427
      %4499 = vmatmul.bf16.gmra.mxu0 %v4107
      %v4500 = vpop.f32.mrf.mxu0
      %v4501 = vadd.f32 0.0, %v4500
      %v4502 = vpop.f32.mrf.mxu0
      %v4503 = vadd.f32 0.0, %v4502
      %4504 = vmatmul.bf16.gmra.mxu0 %v4111
      %v4505 = vpop.f32.mrf.mxu0
      %v4506 = vadd.f32 0.0, %v4505
      %v4507 = vpop.f32.mrf.mxu0
      %v4508 = vadd.f32 0.0, %v4507
      %4509 = vmatmul.bf16.gmra.mxu0 %v4115
      %v4510 = vpop.f32.mrf.mxu0
      %v4511 = vadd.f32 0.0, %v4510
      %v4512 = vpop.f32.mrf.mxu0
      %v4513 = vadd.f32 0.0, %v4512
      %4514 = vmatmul.bf16.gmra.mxu0 %v4119
      %v4515 = vpop.f32.mrf.mxu0
      %v4516 = vadd.f32 0.0, %v4515
      %v4517 = vpop.f32.mrf.mxu0
      %v4518 = vadd.f32 0.0, %v4517
      %4519 = vmatmul.bf16.gmra.mxu0 %v4123
      %v4520 = vpop.f32.mrf.mxu0
      %v4521 = vadd.f32 0.0, %v4520
      %v4522 = vpop.f32.mrf.mxu0
      %v4523 = vadd.f32 0.0, %v4522
      %4524 = vmatmul.bf16.gmra.mxu0 %v4127
      %v4525 = vpop.f32.mrf.mxu0
      %v4526 = vadd.f32 0.0, %v4525
      %v4527 = vpop.f32.mrf.mxu0
      %v4528 = vadd.f32 0.0, %v4527
      %4529 = vmatmul.bf16.gmra.mxu0 %v4131
      %v4530 = vpop.f32.mrf.mxu0
      %v4531 = vadd.f32 0.0, %v4530
      %v4532 = vpop.f32.mrf.mxu0
      %v4533 = vadd.f32 0.0, %v4532
      %4534 = vmatmul.bf16.gmra.mxu0 %v4135
      %v4535 = vpop.f32.mrf.mxu0
      %v4536 = vadd.f32 0.0, %v4535
      %v4537 = vpop.f32.mrf.mxu0
      %v4538 = vadd.f32 0.0, %v4537
      %4539 = vmatmul.bf16.gmra.mxu0 %v4139
      %v4540 = vpop.f32.mrf.mxu0
      %v4541 = vadd.f32 0.0, %v4540
      %v4542 = vpop.f32.mrf.mxu0
      %v4543 = vadd.f32 0.0, %v4542
      %4544 = vmatmul.bf16.gmra.mxu0 %v4143
      %v4545 = vpop.f32.mrf.mxu0
      %v4546 = vadd.f32 0.0, %v4545
      %v4547 = vpop.f32.mrf.mxu0
      %v4548 = vadd.f32 0.0, %v4547
      %4549 = vmatmul.bf16.gmra.mxu0 %v4147
      %v4550 = vpop.f32.mrf.mxu0
      %v4551 = vadd.f32 0.0, %v4550
      %v4552 = vpop.f32.mrf.mxu0
      %v4553 = vadd.f32 0.0, %v4552
      %4554 = vmatmul.bf16.gmra.mxu0 %v4151
      %v4555 = vpop.f32.mrf.mxu0
      %v4556 = vadd.f32 0.0, %v4555
      %v4557 = vpop.f32.mrf.mxu0
      %v4558 = vadd.f32 0.0, %v4557
      %4559 = vmatmul.bf16.gmra.mxu0 %v4155
      %v4560 = vpop.f32.mrf.mxu0
      %v4561 = vadd.f32 0.0, %v4560
      %v4562 = vpop.f32.mrf.mxu0
      %v4563 = vadd.f32 0.0, %v4562
      %4564 = vmatmul.bf16.gmra.mxu0 %v4159
      %v4565 = vpop.f32.mrf.mxu0
      %v4566 = vadd.f32 0.0, %v4565
      %v4567 = vpop.f32.mrf.mxu0
      %v4568 = vadd.f32 0.0, %v4567
      %4569 = vmatmul.bf16.gmra.mxu0 %v4163
      %v4570 = vpop.f32.mrf.mxu0
      %v4571 = vadd.f32 0.0, %v4570
      %v4572 = vpop.f32.mrf.mxu0
      %v4573 = vadd.f32 0.0, %v4572
      %4574 = vmatmul.bf16.gmra.mxu0 %v4167
      %v4575 = vpop.f32.mrf.mxu0
      %v4576 = vadd.f32 0.0, %v4575
      %v4577 = vpop.f32.mrf.mxu0
      %v4578 = vadd.f32 0.0, %v4577
      %4579 = vmatmul.bf16.gmra.mxu0 %v4171
      %v4580 = vpop.f32.mrf.mxu0
      %v4581 = vadd.f32 0.0, %v4580
      %v4582 = vpop.f32.mrf.mxu0
      %v4583 = vadd.f32 0.0, %v4582
      %4584 = vmatmul.bf16.gmra.mxu0 %v4175
      %v4585 = vpop.f32.mrf.mxu0
      %v4586 = vadd.f32 0.0, %v4585
      %v4587 = vpop.f32.mrf.mxu0
      %v4588 = vadd.f32 0.0, %v4587
      %4589 = vmatmul.bf16.gmra.mxu0 %v4179
      %v4590 = vpop.f32.mrf.mxu0
      %v4591 = vadd.f32 0.0, %v4590
      %v4592 = vpop.f32.mrf.mxu0
      %v4593 = vadd.f32 0.0, %v4592
      %4594 = vmatmul.bf16.gmra.mxu0 %v4183
      %v4595 = vpop.f32.mrf.mxu0
      %v4596 = vadd.f32 0.0, %v4595
      %v4597 = vpop.f32.mrf.mxu0
      %v4598 = vadd.f32 0.0, %v4597
      %4599 = vmatmul.bf16.gmra.mxu0 %v4187
      %v4600 = vpop.f32.mrf.mxu0
      %v4601 = vadd.f32 0.0, %v4600
      %v4602 = vpop.f32.mrf.mxu0
      %v4603 = vadd.f32 0.0, %v4602
      %4604 = vmatmul.bf16.gmra.mxu0 %v4191
      %v4605 = vpop.f32.mrf.mxu0
      %v4606 = vadd.f32 0.0, %v4605
      %v4607 = vpop.f32.mrf.mxu0
      %v4608 = vadd.f32 0.0, %v4607
      %4609 = vmatmul.bf16.gmra.mxu0 %v4195
      %v4610 = vpop.f32.mrf.mxu0
      %v4611 = vadd.f32 0.0, %v4610
      %v4612 = vpop.f32.mrf.mxu0
      %v4613 = vadd.f32 0.0, %v4612
      %4614 = vmatmul.bf16.gmra.mxu0 %v4199
      %v4615 = vpop.f32.mrf.mxu0
      %v4616 = vadd.f32 0.0, %v4615
      %v4617 = vpop.f32.mrf.mxu0
      %v4618 = vadd.f32 0.0, %v4617
      %4619 = vmatmul.bf16.gmra.mxu0 %v4203
      %v4620 = vpop.f32.mrf.mxu0
      %v4621 = vadd.f32 0.0, %v4620
      %v4622 = vpop.f32.mrf.mxu0
      %v4623 = vadd.f32 0.0, %v4622
      %4624 = vmatmul.bf16.gmra.mxu0 %v4207
      %v4625 = vpop.f32.mrf.mxu0
      %v4626 = vadd.f32 0.0, %v4625
      %v4627 = vpop.f32.mrf.mxu0
      %v4628 = vadd.f32 0.0, %v4627
      %4629 = vmatmul.bf16.gmra.mxu0 %v4211
      %v4630 = vpop.f32.mrf.mxu0
      %v4631 = vadd.f32 0.0, %v4630
      %v4632 = vpop.f32.mrf.mxu0
      %v4633 = vadd.f32 0.0, %v4632
      %4634 = vmatmul.bf16.gmra.mxu0 %v4215
      %v4635 = vpop.f32.mrf.mxu0
      %v4636 = vadd.f32 0.0, %v4635
      %v4637 = vpop.f32.mrf.mxu0
      %v4638 = vadd.f32 0.0, %v4637
      %4639 = vmatmul.bf16.gmra.mxu0 %v4219
      %v4640 = vpop.f32.mrf.mxu0
      %v4641 = vadd.f32 0.0, %v4640
      %v4642 = vpop.f32.mrf.mxu0
      %v4643 = vadd.f32 0.0, %v4642
      %4644 = vmatmul.bf16.gmra.mxu0 %v4223
      %v4645 = vpop.f32.mrf.mxu0
      %v4646 = vadd.f32 0.0, %v4645
      %v4647 = vpop.f32.mrf.mxu0
      %v4648 = vadd.f32 0.0, %v4647
      %4649 = vmatmul.bf16.gmra.mxu0 %v4227
      %v4650 = vpop.f32.mrf.mxu0
      %v4651 = vadd.f32 0.0, %v4650
      %v4652 = vpop.f32.mrf.mxu0
      %v4653 = vadd.f32 0.0, %v4652
      %4654 = vmatmul.bf16.gmra.mxu0 %v4231
      %v4655 = vpop.f32.mrf.mxu0
      %v4656 = vadd.f32 0.0, %v4655
      %v4657 = vpop.f32.mrf.mxu0
      %v4658 = vadd.f32 0.0, %v4657
      %4659 = vdwg.mxu0
      %4660 = vmatpush.bf16.msra.mxu0 %v4442
      %4661 = vmatpush.bf16.msra.mxu0 %v4441
      %4662 = vmatpush.bf16.msra.mxu0 %v4440
      %4663 = vmatpush.bf16.msra.mxu0 %v4439
      %4664 = vmatpush.bf16.msra.mxu0 %v4438
      %4665 = vmatpush.bf16.msra.mxu0 %v4437
      %4666 = vmatpush.bf16.msra.mxu0 %v4436
      %4667 = vmatpush.bf16.msra.mxu0 %v4435
      %4668 = vmatmul.bf16.gmra.mxu0 %v4108
      %v4669 = vpop.f32.mrf.mxu0
      %v4670 = vadd.f32 %v4501, %v4669
      %v4671 = vpop.f32.mrf.mxu0
      %v4672 = vadd.f32 %v4503, %v4671
      %4673 = vmatmul.bf16.gmra.mxu0 %v4112
      %v4674 = vpop.f32.mrf.mxu0
      %v4675 = vadd.f32 %v4506, %v4674
      %v4676 = vpop.f32.mrf.mxu0
      %v4677 = vadd.f32 %v4508, %v4676
      %4678 = vmatmul.bf16.gmra.mxu0 %v4116
      %v4679 = vpop.f32.mrf.mxu0
      %v4680 = vadd.f32 %v4511, %v4679
      %v4681 = vpop.f32.mrf.mxu0
      %v4682 = vadd.f32 %v4513, %v4681
      %4683 = vmatmul.bf16.gmra.mxu0 %v4120
      %v4684 = vpop.f32.mrf.mxu0
      %v4685 = vadd.f32 %v4516, %v4684
      %v4686 = vpop.f32.mrf.mxu0
      %v4687 = vadd.f32 %v4518, %v4686
      %4688 = vmatmul.bf16.gmra.mxu0 %v4124
      %v4689 = vpop.f32.mrf.mxu0
      %v4690 = vadd.f32 %v4521, %v4689
      %v4691 = vpop.f32.mrf.mxu0
      %v4692 = vadd.f32 %v4523, %v4691
      %4693 = vmatmul.bf16.gmra.mxu0 %v4128
      %v4694 = vpop.f32.mrf.mxu0
      %v4695 = vadd.f32 %v4526, %v4694
      %v4696 = vpop.f32.mrf.mxu0
      %v4697 = vadd.f32 %v4528, %v4696
      %4698 = vmatmul.bf16.gmra.mxu0 %v4132
      %v4699 = vpop.f32.mrf.mxu0
      %v4700 = vadd.f32 %v4531, %v4699
      %v4701 = vpop.f32.mrf.mxu0
      %v4702 = vadd.f32 %v4533, %v4701
      %4703 = vmatmul.bf16.gmra.mxu0 %v4136
      %v4704 = vpop.f32.mrf.mxu0
      %v4705 = vadd.f32 %v4536, %v4704
      %v4706 = vpop.f32.mrf.mxu0
      %v4707 = vadd.f32 %v4538, %v4706
      %4708 = vmatmul.bf16.gmra.mxu0 %v4140
      %v4709 = vpop.f32.mrf.mxu0
      %v4710 = vadd.f32 %v4541, %v4709
      %v4711 = vpop.f32.mrf.mxu0
      %v4712 = vadd.f32 %v4543, %v4711
      %4713 = vmatmul.bf16.gmra.mxu0 %v4144
      %v4714 = vpop.f32.mrf.mxu0
      %v4715 = vadd.f32 %v4546, %v4714
      %v4716 = vpop.f32.mrf.mxu0
      %v4717 = vadd.f32 %v4548, %v4716
      %4718 = vmatmul.bf16.gmra.mxu0 %v4148
      %v4719 = vpop.f32.mrf.mxu0
      %v4720 = vadd.f32 %v4551, %v4719
      %v4721 = vpop.f32.mrf.mxu0
      %v4722 = vadd.f32 %v4553, %v4721
      %4723 = vmatmul.bf16.gmra.mxu0 %v4152
      %v4724 = vpop.f32.mrf.mxu0
      %v4725 = vadd.f32 %v4556, %v4724
      %v4726 = vpop.f32.mrf.mxu0
      %v4727 = vadd.f32 %v4558, %v4726
      %4728 = vmatmul.bf16.gmra.mxu0 %v4156
      %v4729 = vpop.f32.mrf.mxu0
      %v4730 = vadd.f32 %v4561, %v4729
      %v4731 = vpop.f32.mrf.mxu0
      %v4732 = vadd.f32 %v4563, %v4731
      %4733 = vmatmul.bf16.gmra.mxu0 %v4160
      %v4734 = vpop.f32.mrf.mxu0
      %v4735 = vadd.f32 %v4566, %v4734
      %v4736 = vpop.f32.mrf.mxu0
      %v4737 = vadd.f32 %v4568, %v4736
      %4738 = vmatmul.bf16.gmra.mxu0 %v4164
      %v4739 = vpop.f32.mrf.mxu0
      %v4740 = vadd.f32 %v4571, %v4739
      %v4741 = vpop.f32.mrf.mxu0
      %v4742 = vadd.f32 %v4573, %v4741
      %4743 = vmatmul.bf16.gmra.mxu0 %v4168
      %v4744 = vpop.f32.mrf.mxu0
      %v4745 = vadd.f32 %v4576, %v4744
      %v4746 = vpop.f32.mrf.mxu0
      %v4747 = vadd.f32 %v4578, %v4746
      %4748 = vmatmul.bf16.gmra.mxu0 %v4172
      %v4749 = vpop.f32.mrf.mxu0
      %v4750 = vadd.f32 %v4581, %v4749
      %v4751 = vpop.f32.mrf.mxu0
      %v4752 = vadd.f32 %v4583, %v4751
      %4753 = vmatmul.bf16.gmra.mxu0 %v4176
      %v4754 = vpop.f32.mrf.mxu0
      %v4755 = vadd.f32 %v4586, %v4754
      %v4756 = vpop.f32.mrf.mxu0
      %v4757 = vadd.f32 %v4588, %v4756
      %4758 = vmatmul.bf16.gmra.mxu0 %v4180
      %v4759 = vpop.f32.mrf.mxu0
      %v4760 = vadd.f32 %v4591, %v4759
      %v4761 = vpop.f32.mrf.mxu0
      %v4762 = vadd.f32 %v4593, %v4761
      %4763 = vmatmul.bf16.gmra.mxu0 %v4184
      %v4764 = vpop.f32.mrf.mxu0
      %v4765 = vadd.f32 %v4596, %v4764
      %v4766 = vpop.f32.mrf.mxu0
      %v4767 = vadd.f32 %v4598, %v4766
      %4768 = vmatmul.bf16.gmra.mxu0 %v4188
      %v4769 = vpop.f32.mrf.mxu0
      %v4770 = vadd.f32 %v4601, %v4769
      %v4771 = vpop.f32.mrf.mxu0
      %v4772 = vadd.f32 %v4603, %v4771
      %4773 = vmatmul.bf16.gmra.mxu0 %v4192
      %v4774 = vpop.f32.mrf.mxu0
      %v4775 = vadd.f32 %v4606, %v4774
      %v4776 = vpop.f32.mrf.mxu0
      %v4777 = vadd.f32 %v4608, %v4776
      %4778 = vmatmul.bf16.gmra.mxu0 %v4196
      %v4779 = vpop.f32.mrf.mxu0
      %v4780 = vadd.f32 %v4611, %v4779
      %v4781 = vpop.f32.mrf.mxu0
      %v4782 = vadd.f32 %v4613, %v4781
      %4783 = vmatmul.bf16.gmra.mxu0 %v4200
      %v4784 = vpop.f32.mrf.mxu0
      %v4785 = vadd.f32 %v4616, %v4784
      %v4786 = vpop.f32.mrf.mxu0
      %v4787 = vadd.f32 %v4618, %v4786
      %4788 = vmatmul.bf16.gmra.mxu0 %v4204
      %v4789 = vpop.f32.mrf.mxu0
      %v4790 = vadd.f32 %v4621, %v4789
      %v4791 = vpop.f32.mrf.mxu0
      %v4792 = vadd.f32 %v4623, %v4791
      %4793 = vmatmul.bf16.gmra.mxu0 %v4208
      %v4794 = vpop.f32.mrf.mxu0
      %v4795 = vadd.f32 %v4626, %v4794
      %v4796 = vpop.f32.mrf.mxu0
      %v4797 = vadd.f32 %v4628, %v4796
      %4798 = vmatmul.bf16.gmra.mxu0 %v4212
      %v4799 = vpop.f32.mrf.mxu0
      %v4800 = vadd.f32 %v4631, %v4799
      %v4801 = vpop.f32.mrf.mxu0
      %v4802 = vadd.f32 %v4633, %v4801
      %4803 = vmatmul.bf16.gmra.mxu0 %v4216
      %v4804 = vpop.f32.mrf.mxu0
      %v4805 = vadd.f32 %v4636, %v4804
      %v4806 = vpop.f32.mrf.mxu0
      %v4807 = vadd.f32 %v4638, %v4806
      %4808 = vmatmul.bf16.gmra.mxu0 %v4220
      %v4809 = vpop.f32.mrf.mxu0
      %v4810 = vadd.f32 %v4641, %v4809
      %v4811 = vpop.f32.mrf.mxu0
      %v4812 = vadd.f32 %v4643, %v4811
      %4813 = vmatmul.bf16.gmra.mxu0 %v4224
      %v4814 = vpop.f32.mrf.mxu0
      %v4815 = vadd.f32 %v4646, %v4814
      %v4816 = vpop.f32.mrf.mxu0
      %v4817 = vadd.f32 %v4648, %v4816
      %4818 = vmatmul.bf16.gmra.mxu0 %v4228
      %v4819 = vpop.f32.mrf.mxu0
      %v4820 = vadd.f32 %v4651, %v4819
      %v4821 = vpop.f32.mrf.mxu0
      %v4822 = vadd.f32 %v4653, %v4821
      %4823 = vmatmul.bf16.gmra.mxu0 %v4232
      %v4824 = vpop.f32.mrf.mxu0
      %v4825 = vadd.f32 %v4656, %v4824
      %v4826 = vpop.f32.mrf.mxu0
      %v4827 = vadd.f32 %v4658, %v4826
      %4828 = vdwg.mxu0
      %4829 = vmatpush.bf16.msra.mxu0 %v4450
      %4830 = vmatpush.bf16.msra.mxu0 %v4449
      %4831 = vmatpush.bf16.msra.mxu0 %v4448
      %4832 = vmatpush.bf16.msra.mxu0 %v4447
      %4833 = vmatpush.bf16.msra.mxu0 %v4446
      %4834 = vmatpush.bf16.msra.mxu0 %v4445
      %4835 = vmatpush.bf16.msra.mxu0 %v4444
      %4836 = vmatpush.bf16.msra.mxu0 %v4443
      %4837 = vmatmul.bf16.gmra.mxu0 %v4109
      %v4838 = vpop.f32.mrf.mxu0
      %v4839 = vadd.f32 %v4670, %v4838
      %v4840 = vpop.f32.mrf.mxu0
      %v4841 = vadd.f32 %v4672, %v4840
      %4842 = vmatmul.bf16.gmra.mxu0 %v4113
      %v4843 = vpop.f32.mrf.mxu0
      %v4844 = vadd.f32 %v4675, %v4843
      %v4845 = vpop.f32.mrf.mxu0
      %v4846 = vadd.f32 %v4677, %v4845
      %4847 = vmatmul.bf16.gmra.mxu0 %v4117
      %v4848 = vpop.f32.mrf.mxu0
      %v4849 = vadd.f32 %v4680, %v4848
      %v4850 = vpop.f32.mrf.mxu0
      %v4851 = vadd.f32 %v4682, %v4850
      %4852 = vmatmul.bf16.gmra.mxu0 %v4121
      %v4853 = vpop.f32.mrf.mxu0
      %v4854 = vadd.f32 %v4685, %v4853
      %v4855 = vpop.f32.mrf.mxu0
      %v4856 = vadd.f32 %v4687, %v4855
      %4857 = vmatmul.bf16.gmra.mxu0 %v4125
      %v4858 = vpop.f32.mrf.mxu0
      %v4859 = vadd.f32 %v4690, %v4858
      %v4860 = vpop.f32.mrf.mxu0
      %v4861 = vadd.f32 %v4692, %v4860
      %4862 = vmatmul.bf16.gmra.mxu0 %v4129
      %v4863 = vpop.f32.mrf.mxu0
      %v4864 = vadd.f32 %v4695, %v4863
      %v4865 = vpop.f32.mrf.mxu0
      %v4866 = vadd.f32 %v4697, %v4865
      %4867 = vmatmul.bf16.gmra.mxu0 %v4133
      %v4868 = vpop.f32.mrf.mxu0
      %v4869 = vadd.f32 %v4700, %v4868
      %v4870 = vpop.f32.mrf.mxu0
      %v4871 = vadd.f32 %v4702, %v4870
      %4872 = vmatmul.bf16.gmra.mxu0 %v4137
      %v4873 = vpop.f32.mrf.mxu0
      %v4874 = vadd.f32 %v4705, %v4873
      %v4875 = vpop.f32.mrf.mxu0
      %v4876 = vadd.f32 %v4707, %v4875
      %4877 = vmatmul.bf16.gmra.mxu0 %v4141
      %v4878 = vpop.f32.mrf.mxu0
      %v4879 = vadd.f32 %v4710, %v4878
      %v4880 = vpop.f32.mrf.mxu0
      %v4881 = vadd.f32 %v4712, %v4880
      %4882 = vmatmul.bf16.gmra.mxu0 %v4145
      %v4883 = vpop.f32.mrf.mxu0
      %v4884 = vadd.f32 %v4715, %v4883
      %v4885 = vpop.f32.mrf.mxu0
      %v4886 = vadd.f32 %v4717, %v4885
      %4887 = vmatmul.bf16.gmra.mxu0 %v4149
      %v4888 = vpop.f32.mrf.mxu0
      %v4889 = vadd.f32 %v4720, %v4888
      %v4890 = vpop.f32.mrf.mxu0
      %v4891 = vadd.f32 %v4722, %v4890
      %4892 = vmatmul.bf16.gmra.mxu0 %v4153
      %v4893 = vpop.f32.mrf.mxu0
      %v4894 = vadd.f32 %v4725, %v4893
      %v4895 = vpop.f32.mrf.mxu0
      %v4896 = vadd.f32 %v4727, %v4895
      %4897 = vmatmul.bf16.gmra.mxu0 %v4157
      %v4898 = vpop.f32.mrf.mxu0
      %v4899 = vadd.f32 %v4730, %v4898
      %v4900 = vpop.f32.mrf.mxu0
      %v4901 = vadd.f32 %v4732, %v4900
      %4902 = vmatmul.bf16.gmra.mxu0 %v4161
      %v4903 = vpop.f32.mrf.mxu0
      %v4904 = vadd.f32 %v4735, %v4903
      %v4905 = vpop.f32.mrf.mxu0
      %v4906 = vadd.f32 %v4737, %v4905
      %4907 = vmatmul.bf16.gmra.mxu0 %v4165
      %v4908 = vpop.f32.mrf.mxu0
      %v4909 = vadd.f32 %v4740, %v4908
      %v4910 = vpop.f32.mrf.mxu0
      %v4911 = vadd.f32 %v4742, %v4910
      %4912 = vmatmul.bf16.gmra.mxu0 %v4169
      %v4913 = vpop.f32.mrf.mxu0
      %v4914 = vadd.f32 %v4745, %v4913
      %v4915 = vpop.f32.mrf.mxu0
      %v4916 = vadd.f32 %v4747, %v4915
      %4917 = vmatmul.bf16.gmra.mxu0 %v4173
      %v4918 = vpop.f32.mrf.mxu0
      %v4919 = vadd.f32 %v4750, %v4918
      %v4920 = vpop.f32.mrf.mxu0
      %v4921 = vadd.f32 %v4752, %v4920
      %4922 = vmatmul.bf16.gmra.mxu0 %v4177
      %v4923 = vpop.f32.mrf.mxu0
      %v4924 = vadd.f32 %v4755, %v4923
      %v4925 = vpop.f32.mrf.mxu0
      %v4926 = vadd.f32 %v4757, %v4925
      %4927 = vmatmul.bf16.gmra.mxu0 %v4181
      %v4928 = vpop.f32.mrf.mxu0
      %v4929 = vadd.f32 %v4760, %v4928
      %v4930 = vpop.f32.mrf.mxu0
      %v4931 = vadd.f32 %v4762, %v4930
      %4932 = vmatmul.bf16.gmra.mxu0 %v4185
      %v4933 = vpop.f32.mrf.mxu0
      %v4934 = vadd.f32 %v4765, %v4933
      %v4935 = vpop.f32.mrf.mxu0
      %v4936 = vadd.f32 %v4767, %v4935
      %4937 = vmatmul.bf16.gmra.mxu0 %v4189
      %v4938 = vpop.f32.mrf.mxu0
      %v4939 = vadd.f32 %v4770, %v4938
      %v4940 = vpop.f32.mrf.mxu0
      %v4941 = vadd.f32 %v4772, %v4940
      %4942 = vmatmul.bf16.gmra.mxu0 %v4193
      %v4943 = vpop.f32.mrf.mxu0
      %v4944 = vadd.f32 %v4775, %v4943
      %v4945 = vpop.f32.mrf.mxu0
      %v4946 = vadd.f32 %v4777, %v4945
      %4947 = vmatmul.bf16.gmra.mxu0 %v4197
      %v4948 = vpop.f32.mrf.mxu0
      %v4949 = vadd.f32 %v4780, %v4948
      %v4950 = vpop.f32.mrf.mxu0
      %v4951 = vadd.f32 %v4782, %v4950
      %4952 = vmatmul.bf16.gmra.mxu0 %v4201
      %v4953 = vpop.f32.mrf.mxu0
      %v4954 = vadd.f32 %v4785, %v4953
      %v4955 = vpop.f32.mrf.mxu0
      %v4956 = vadd.f32 %v4787, %v4955
      %4957 = vmatmul.bf16.gmra.mxu0 %v4205
      %v4958 = vpop.f32.mrf.mxu0
      %v4959 = vadd.f32 %v4790, %v4958
      %v4960 = vpop.f32.mrf.mxu0
      %v4961 = vadd.f32 %v4792, %v4960
      %4962 = vmatmul.bf16.gmra.mxu0 %v4209
      %v4963 = vpop.f32.mrf.mxu0
      %v4964 = vadd.f32 %v4795, %v4963
      %v4965 = vpop.f32.mrf.mxu0
      %v4966 = vadd.f32 %v4797, %v4965
      %4967 = vmatmul.bf16.gmra.mxu0 %v4213
      %v4968 = vpop.f32.mrf.mxu0
      %v4969 = vadd.f32 %v4800, %v4968
      %v4970 = vpop.f32.mrf.mxu0
      %v4971 = vadd.f32 %v4802, %v4970
      %4972 = vmatmul.bf16.gmra.mxu0 %v4217
      %v4973 = vpop.f32.mrf.mxu0
      %v4974 = vadd.f32 %v4805, %v4973
      %v4975 = vpop.f32.mrf.mxu0
      %v4976 = vadd.f32 %v4807, %v4975
      %4977 = vmatmul.bf16.gmra.mxu0 %v4221
      %v4978 = vpop.f32.mrf.mxu0
      %v4979 = vadd.f32 %v4810, %v4978
      %v4980 = vpop.f32.mrf.mxu0
      %v4981 = vadd.f32 %v4812, %v4980
      %4982 = vmatmul.bf16.gmra.mxu0 %v4225
      %v4983 = vpop.f32.mrf.mxu0
      %v4984 = vadd.f32 %v4815, %v4983
      %v4985 = vpop.f32.mrf.mxu0
      %v4986 = vadd.f32 %v4817, %v4985
      %4987 = vmatmul.bf16.gmra.mxu0 %v4229
      %v4988 = vpop.f32.mrf.mxu0
      %v4989 = vadd.f32 %v4820, %v4988
      %v4990 = vpop.f32.mrf.mxu0
      %v4991 = vadd.f32 %v4822, %v4990
      %4992 = vmatmul.bf16.gmra.mxu0 %v4233
      %v4993 = vpop.f32.mrf.mxu0
      %v4994 = vadd.f32 %v4825, %v4993
      %v4995 = vpop.f32.mrf.mxu0
      %v4996 = vadd.f32 %v4827, %v4995
      %4997 = vdwg.mxu0
      %4998 = vmatpush.bf16.msra.mxu0 %v4458
      %4999 = vmatpush.bf16.msra.mxu0 %v4457
      %5000 = vmatpush.bf16.msra.mxu0 %v4456
      %5001 = vmatpush.bf16.msra.mxu0 %v4455
      %5002 = vmatpush.bf16.msra.mxu0 %v4454
      %5003 = vmatpush.bf16.msra.mxu0 %v4453
      %5004 = vmatpush.bf16.msra.mxu0 %v4452
      %5005 = vmatpush.bf16.msra.mxu0 %v4451
      %5006 = vmatmul.bf16.gmra.mxu0 %v4110
      %v5007 = vpop.f32.mrf.mxu0
      %v5008 = vadd.f32 %v4839, %v5007
      %v5009 = vpop.f32.mrf.mxu0
      %v5010 = vadd.f32 %v4841, %v5009
      %5011 = vmatmul.bf16.gmra.mxu0 %v4114
      %v5012 = vpop.f32.mrf.mxu0
      %v5013 = vadd.f32 %v4844, %v5012
      %v5014 = vpop.f32.mrf.mxu0
      %v5015 = vadd.f32 %v4846, %v5014
      %5016 = vmatmul.bf16.gmra.mxu0 %v4118
      %v5017 = vpop.f32.mrf.mxu0
      %v5018 = vadd.f32 %v4849, %v5017
      %v5019 = vpop.f32.mrf.mxu0
      %v5020 = vadd.f32 %v4851, %v5019
      %5021 = vmatmul.bf16.gmra.mxu0 %v4122
      %v5022 = vpop.f32.mrf.mxu0
      %v5023 = vadd.f32 %v4854, %v5022
      %v5024 = vpop.f32.mrf.mxu0
      %v5025 = vadd.f32 %v4856, %v5024
      %5026 = vmatmul.bf16.gmra.mxu0 %v4126
      %v5027 = vpop.f32.mrf.mxu0
      %v5028 = vadd.f32 %v4859, %v5027
      %v5029 = vpop.f32.mrf.mxu0
      %v5030 = vadd.f32 %v4861, %v5029
      %5031 = vmatmul.bf16.gmra.mxu0 %v4130
      %v5032 = vpop.f32.mrf.mxu0
      %v5033 = vadd.f32 %v4864, %v5032
      %v5034 = vpop.f32.mrf.mxu0
      %v5035 = vadd.f32 %v4866, %v5034
      %5036 = vmatmul.bf16.gmra.mxu0 %v4134
      %v5037 = vpop.f32.mrf.mxu0
      %v5038 = vadd.f32 %v4869, %v5037
      %v5039 = vpop.f32.mrf.mxu0
      %v5040 = vadd.f32 %v4871, %v5039
      %5041 = vmatmul.bf16.gmra.mxu0 %v4138
      %v5042 = vpop.f32.mrf.mxu0
      %v5043 = vadd.f32 %v4874, %v5042
      %v5044 = vpop.f32.mrf.mxu0
      %v5045 = vadd.f32 %v4876, %v5044
      %5046 = vmatmul.bf16.gmra.mxu0 %v4142
      %v5047 = vpop.f32.mrf.mxu0
      %v5048 = vadd.f32 %v4879, %v5047
      %v5049 = vpop.f32.mrf.mxu0
      %v5050 = vadd.f32 %v4881, %v5049
      %5051 = vmatmul.bf16.gmra.mxu0 %v4146
      %v5052 = vpop.f32.mrf.mxu0
      %v5053 = vadd.f32 %v4884, %v5052
      %v5054 = vpop.f32.mrf.mxu0
      %v5055 = vadd.f32 %v4886, %v5054
      %5056 = vmatmul.bf16.gmra.mxu0 %v4150
      %v5057 = vpop.f32.mrf.mxu0
      %v5058 = vadd.f32 %v4889, %v5057
      %v5059 = vpop.f32.mrf.mxu0
      %v5060 = vadd.f32 %v4891, %v5059
      %5061 = vmatmul.bf16.gmra.mxu0 %v4154
      %v5062 = vpop.f32.mrf.mxu0
      %v5063 = vadd.f32 %v4894, %v5062
      %v5064 = vpop.f32.mrf.mxu0
      %v5065 = vadd.f32 %v4896, %v5064
      %5066 = vmatmul.bf16.gmra.mxu0 %v4158
      %v5067 = vpop.f32.mrf.mxu0
      %v5068 = vadd.f32 %v4899, %v5067
      %v5069 = vpop.f32.mrf.mxu0
      %v5070 = vadd.f32 %v4901, %v5069
      %5071 = vmatmul.bf16.gmra.mxu0 %v4162
      %v5072 = vpop.f32.mrf.mxu0
      %v5073 = vadd.f32 %v4904, %v5072
      %v5074 = vpop.f32.mrf.mxu0
      %v5075 = vadd.f32 %v4906, %v5074
      %5076 = vmatmul.bf16.gmra.mxu0 %v4166
      %v5077 = vpop.f32.mrf.mxu0
      %v5078 = vadd.f32 %v4909, %v5077
      %v5079 = vpop.f32.mrf.mxu0
      %v5080 = vadd.f32 %v4911, %v5079
      %5081 = vmatmul.bf16.gmra.mxu0 %v4170
      %v5082 = vpop.f32.mrf.mxu0
      %v5083 = vadd.f32 %v4914, %v5082
      %v5084 = vpop.f32.mrf.mxu0
      %v5085 = vadd.f32 %v4916, %v5084
      %5086 = vmatmul.bf16.gmra.mxu0 %v4174
      %v5087 = vpop.f32.mrf.mxu0
      %v5088 = vadd.f32 %v4919, %v5087
      %v5089 = vpop.f32.mrf.mxu0
      %v5090 = vadd.f32 %v4921, %v5089
      %5091 = vmatmul.bf16.gmra.mxu0 %v4178
      %v5092 = vpop.f32.mrf.mxu0
      %v5093 = vadd.f32 %v4924, %v5092
      %v5094 = vpop.f32.mrf.mxu0
      %v5095 = vadd.f32 %v4926, %v5094
      %5096 = vmatmul.bf16.gmra.mxu0 %v4182
      %v5097 = vpop.f32.mrf.mxu0
      %v5098 = vadd.f32 %v4929, %v5097
      %v5099 = vpop.f32.mrf.mxu0
      %v5100 = vadd.f32 %v4931, %v5099
      %5101 = vmatmul.bf16.gmra.mxu0 %v4186
      %v5102 = vpop.f32.mrf.mxu0
      %v5103 = vadd.f32 %v4934, %v5102
      %v5104 = vpop.f32.mrf.mxu0
      %v5105 = vadd.f32 %v4936, %v5104
      %5106 = vmatmul.bf16.gmra.mxu0 %v4190
      %v5107 = vpop.f32.mrf.mxu0
      %v5108 = vadd.f32 %v4939, %v5107
      %v5109 = vpop.f32.mrf.mxu0
      %v5110 = vadd.f32 %v4941, %v5109
      %5111 = vmatmul.bf16.gmra.mxu0 %v4194
      %v5112 = vpop.f32.mrf.mxu0
      %v5113 = vadd.f32 %v4944, %v5112
      %v5114 = vpop.f32.mrf.mxu0
      %v5115 = vadd.f32 %v4946, %v5114
      %5116 = vmatmul.bf16.gmra.mxu0 %v4198
      %v5117 = vpop.f32.mrf.mxu0
      %v5118 = vadd.f32 %v4949, %v5117
      %v5119 = vpop.f32.mrf.mxu0
      %v5120 = vadd.f32 %v4951, %v5119
      %5121 = vmatmul.bf16.gmra.mxu0 %v4202
      %v5122 = vpop.f32.mrf.mxu0
      %v5123 = vadd.f32 %v4954, %v5122
      %v5124 = vpop.f32.mrf.mxu0
      %v5125 = vadd.f32 %v4956, %v5124
      %5126 = vmatmul.bf16.gmra.mxu0 %v4206
      %v5127 = vpop.f32.mrf.mxu0
      %v5128 = vadd.f32 %v4959, %v5127
      %v5129 = vpop.f32.mrf.mxu0
      %v5130 = vadd.f32 %v4961, %v5129
      %5131 = vmatmul.bf16.gmra.mxu0 %v4210
      %v5132 = vpop.f32.mrf.mxu0
      %v5133 = vadd.f32 %v4964, %v5132
      %v5134 = vpop.f32.mrf.mxu0
      %v5135 = vadd.f32 %v4966, %v5134
      %5136 = vmatmul.bf16.gmra.mxu0 %v4214
      %v5137 = vpop.f32.mrf.mxu0
      %v5138 = vadd.f32 %v4969, %v5137
      %v5139 = vpop.f32.mrf.mxu0
      %v5140 = vadd.f32 %v4971, %v5139
      %5141 = vmatmul.bf16.gmra.mxu0 %v4218
      %v5142 = vpop.f32.mrf.mxu0
      %v5143 = vadd.f32 %v4974, %v5142
      %v5144 = vpop.f32.mrf.mxu0
      %v5145 = vadd.f32 %v4976, %v5144
      %5146 = vmatmul.bf16.gmra.mxu0 %v4222
      %v5147 = vpop.f32.mrf.mxu0
      %v5148 = vadd.f32 %v4979, %v5147
      %v5149 = vpop.f32.mrf.mxu0
      %v5150 = vadd.f32 %v4981, %v5149
      %5151 = vmatmul.bf16.gmra.mxu0 %v4226
      %v5152 = vpop.f32.mrf.mxu0
      %v5153 = vadd.f32 %v4984, %v5152
      %v5154 = vpop.f32.mrf.mxu0
      %v5155 = vadd.f32 %v4986, %v5154
      %5156 = vmatmul.bf16.gmra.mxu0 %v4230
      %v5157 = vpop.f32.mrf.mxu0
      %v5158 = vadd.f32 %v4989, %v5157
      %v5159 = vpop.f32.mrf.mxu0
      %v5160 = vadd.f32 %v4991, %v5159
      %5161 = vmatmul.bf16.gmra.mxu0 %v4234
      %v5162 = vpop.f32.mrf.mxu0
      %v5163 = vadd.f32 %v4994, %v5162
      %v5164 = vpop.f32.mrf.mxu0
      %v5165 = vadd.f32 %v4996, %v5164
      %5166 = vdwg.mxu0
      %v5167 = vld [vmem:[#allocation4] sm:$0xff]
      %v5168 = vld [vmem:[#allocation4 + $0x8] sm:$0xff]
      %v5169 = vld [vmem:[#allocation4 + $0x10] sm:$0xff]
      %v5170 = vld [vmem:[#allocation4 + $0x18] sm:$0xff]
      %v5171 = vld [vmem:[#allocation4 + $0x20] sm:$0xff]
      %v5172 = vld [vmem:[#allocation4 + $0x28] sm:$0xff]
      %v5173 = vld [vmem:[#allocation4 + $0x30] sm:$0xff]
      %v5174 = vld [vmem:[#allocation4 + $0x38] sm:$0xff]
      %v5175 = vld [vmem:[#allocation4 + $0x40] sm:$0xff]
      %v5176 = vld [vmem:[#allocation4 + $0x48] sm:$0xff]
      %v5177 = vld [vmem:[#allocation4 + $0x50] sm:$0xff]
      %v5178 = vld [vmem:[#allocation4 + $0x58] sm:$0xff]
      %v5179 = vld [vmem:[#allocation4 + $0x60] sm:$0xff]
      %v5180 = vld [vmem:[#allocation4 + $0x68] sm:$0xff]
      %v5181 = vld [vmem:[#allocation4 + $0x70] sm:$0xff]
      %v5182 = vld [vmem:[#allocation4 + $0x78] sm:$0xff]
      %v5183 = vld [vmem:[#allocation4 + $0x80] sm:$0xff]
      %v5184 = vld [vmem:[#allocation4 + $0x88] sm:$0xff]
      %v5185 = vld [vmem:[#allocation4 + $0x90] sm:$0xff]
      %v5186 = vld [vmem:[#allocation4 + $0x98] sm:$0xff]
      %v5187 = vld [vmem:[#allocation4 + $0xa0] sm:$0xff]
      %v5188 = vld [vmem:[#allocation4 + $0xa8] sm:$0xff]
      %v5189 = vld [vmem:[#allocation4 + $0xb0] sm:$0xff]
      %v5190 = vld [vmem:[#allocation4 + $0xb8] sm:$0xff]
      %v5191 = vld [vmem:[#allocation4 + $0xc0] sm:$0xff]
      %v5192 = vld [vmem:[#allocation4 + $0xc8] sm:$0xff]
      %v5193 = vld [vmem:[#allocation4 + $0xd0] sm:$0xff]
      %v5194 = vld [vmem:[#allocation4 + $0xd8] sm:$0xff]
      %v5195 = vld [vmem:[#allocation4 + $0xe0] sm:$0xff]
      %v5196 = vld [vmem:[#allocation4 + $0xe8] sm:$0xff]
      %v5197 = vld [vmem:[#allocation4 + $0xf0] sm:$0xff]
      %v5198 = vld [vmem:[#allocation4 + $0xf8] sm:$0xff]
      %v5199 = vld [vmem:[#allocation4 + $0x100] sm:$0xff]
      %v5200 = vld [vmem:[#allocation4 + $0x108] sm:$0xff]
      %v5201 = vld [vmem:[#allocation4 + $0x110] sm:$0xff]
      %v5202 = vld [vmem:[#allocation4 + $0x118] sm:$0xff]
      %v5203 = vld [vmem:[#allocation4 + $0x120] sm:$0xff]
      %v5204 = vld [vmem:[#allocation4 + $0x128] sm:$0xff]
      %v5205 = vld [vmem:[#allocation4 + $0x130] sm:$0xff]
      %v5206 = vld [vmem:[#allocation4 + $0x138] sm:$0xff]
      %v5207 = vld [vmem:[#allocation4 + $0x140] sm:$0xff]
      %v5208 = vld [vmem:[#allocation4 + $0x148] sm:$0xff]
      %v5209 = vld [vmem:[#allocation4 + $0x150] sm:$0xff]
      %v5210 = vld [vmem:[#allocation4 + $0x158] sm:$0xff]
      %v5211 = vld [vmem:[#allocation4 + $0x160] sm:$0xff]
      %v5212 = vld [vmem:[#allocation4 + $0x168] sm:$0xff]
      %v5213 = vld [vmem:[#allocation4 + $0x170] sm:$0xff]
      %v5214 = vld [vmem:[#allocation4 + $0x178] sm:$0xff]
      %v5215 = vld [vmem:[#allocation4 + $0x180] sm:$0xff]
      %v5216 = vld [vmem:[#allocation4 + $0x188] sm:$0xff]
      %v5217 = vld [vmem:[#allocation4 + $0x190] sm:$0xff]
      %v5218 = vld [vmem:[#allocation4 + $0x198] sm:$0xff]
      %v5219 = vld [vmem:[#allocation4 + $0x1a0] sm:$0xff]
      %v5220 = vld [vmem:[#allocation4 + $0x1a8] sm:$0xff]
      %v5221 = vld [vmem:[#allocation4 + $0x1b0] sm:$0xff]
      %v5222 = vld [vmem:[#allocation4 + $0x1b8] sm:$0xff]
      %v5223 = vld [vmem:[#allocation4 + $0x1c0] sm:$0xff]
      %v5224 = vld [vmem:[#allocation4 + $0x1c8] sm:$0xff]
      %v5225 = vld [vmem:[#allocation4 + $0x1d0] sm:$0xff]
      %v5226 = vld [vmem:[#allocation4 + $0x1d8] sm:$0xff]
      %v5227 = vld [vmem:[#allocation4 + $0x1e0] sm:$0xff]
      %v5228 = vld [vmem:[#allocation4 + $0x1e8] sm:$0xff]
      %v5229 = vld [vmem:[#allocation4 + $0x1f0] sm:$0xff]
      %v5230 = vld [vmem:[#allocation4 + $0x1f8] sm:$0xff]
      %v5231 = vmul.f32 %v2636, %v5167
      %v5232 = vmul.f32 %v2638, %v5168
      %v5233 = vmul.f32 %v2640, %v5169
      %v5234 = vmul.f32 %v2642, %v5170
      %v5235 = vmul.f32 %v2644, %v5171
      %v5236 = vmul.f32 %v2646, %v5172
      %v5237 = vmul.f32 %v2648, %v5173
      %v5238 = vmul.f32 %v2650, %v5174
      %v5239 = vmul.f32 %v2652, %v5175
      %v5240 = vmul.f32 %v2654, %v5176
      %v5241 = vmul.f32 %v2656, %v5177
      %v5242 = vmul.f32 %v2658, %v5178
      %v5243 = vmul.f32 %v2660, %v5179
      %v5244 = vmul.f32 %v2662, %v5180
      %v5245 = vmul.f32 %v2664, %v5181
      %v5246 = vmul.f32 %v2666, %v5182
      %v5247 = vmul.f32 %v2668, %v5183
      %v5248 = vmul.f32 %v2670, %v5184
      %v5249 = vmul.f32 %v2672, %v5185
      %v5250 = vmul.f32 %v2674, %v5186
      %v5251 = vmul.f32 %v2676, %v5187
      %v5252 = vmul.f32 %v2678, %v5188
      %v5253 = vmul.f32 %v2680, %v5189
      %v5254 = vmul.f32 %v2682, %v5190
      %v5255 = vmul.f32 %v2684, %v5191
      %v5256 = vmul.f32 %v2686, %v5192
      %v5257 = vmul.f32 %v2688, %v5193
      %v5258 = vmul.f32 %v2690, %v5194
      %v5259 = vmul.f32 %v2692, %v5195
      %v5260 = vmul.f32 %v2694, %v5196
      %v5261 = vmul.f32 %v2696, %v5197
      %v5262 = vmul.f32 %v2698, %v5198
      %v5263 = vmul.f32 %v2700, %v5199
      %v5264 = vmul.f32 %v2702, %v5200
      %v5265 = vmul.f32 %v2704, %v5201
      %v5266 = vmul.f32 %v2706, %v5202
      %v5267 = vmul.f32 %v2708, %v5203
      %v5268 = vmul.f32 %v2710, %v5204
      %v5269 = vmul.f32 %v2712, %v5205
      %v5270 = vmul.f32 %v2714, %v5206
      %v5271 = vmul.f32 %v2716, %v5207
      %v5272 = vmul.f32 %v2718, %v5208
      %v5273 = vmul.f32 %v2720, %v5209
      %v5274 = vmul.f32 %v2722, %v5210
      %v5275 = vmul.f32 %v2724, %v5211
      %v5276 = vmul.f32 %v2726, %v5212
      %v5277 = vmul.f32 %v2728, %v5213
      %v5278 = vmul.f32 %v2730, %v5214
      %v5279 = vmul.f32 %v2732, %v5215
      %v5280 = vmul.f32 %v2734, %v5216
      %v5281 = vmul.f32 %v2736, %v5217
      %v5282 = vmul.f32 %v2738, %v5218
      %v5283 = vmul.f32 %v2740, %v5219
      %v5284 = vmul.f32 %v2742, %v5220
      %v5285 = vmul.f32 %v2744, %v5221
      %v5286 = vmul.f32 %v2746, %v5222
      %v5287 = vmul.f32 %v2748, %v5223
      %v5288 = vmul.f32 %v2750, %v5224
      %v5289 = vmul.f32 %v2752, %v5225
      %v5290 = vmul.f32 %v2754, %v5226
      %v5291 = vmul.f32 %v2756, %v5227
      %v5292 = vmul.f32 %v2758, %v5228
      %v5293 = vmul.f32 %v2760, %v5229
      %v5294 = vmul.f32 %v2762, %v5230
      %v5295 = vadd.f32 %v5231, %v5008
      %v5296 = vadd.f32 %v5232, %v5010
      %v5297 = vadd.f32 %v5233, %v5013
      %v5298 = vadd.f32 %v5234, %v5015
      %v5299 = vadd.f32 %v5235, %v5018
      %v5300 = vadd.f32 %v5236, %v5020
      %v5301 = vadd.f32 %v5237, %v5023
      %v5302 = vadd.f32 %v5238, %v5025
      %v5303 = vadd.f32 %v5239, %v5028
      %v5304 = vadd.f32 %v5240, %v5030
      %v5305 = vadd.f32 %v5241, %v5033
      %v5306 = vadd.f32 %v5242, %v5035
      %v5307 = vadd.f32 %v5243, %v5038
      %v5308 = vadd.f32 %v5244, %v5040
      %v5309 = vadd.f32 %v5245, %v5043
      %v5310 = vadd.f32 %v5246, %v5045
      %v5311 = vadd.f32 %v5247, %v5048
      %v5312 = vadd.f32 %v5248, %v5050
      %v5313 = vadd.f32 %v5249, %v5053
      %v5314 = vadd.f32 %v5250, %v5055
      %v5315 = vadd.f32 %v5251, %v5058
      %v5316 = vadd.f32 %v5252, %v5060
      %v5317 = vadd.f32 %v5253, %v5063
      %v5318 = vadd.f32 %v5254, %v5065
      %v5319 = vadd.f32 %v5255, %v5068
      %v5320 = vadd.f32 %v5256, %v5070
      %v5321 = vadd.f32 %v5257, %v5073
      %v5322 = vadd.f32 %v5258, %v5075
      %v5323 = vadd.f32 %v5259, %v5078
      %v5324 = vadd.f32 %v5260, %v5080
      %v5325 = vadd.f32 %v5261, %v5083
      %v5326 = vadd.f32 %v5262, %v5085
      %v5327 = vadd.f32 %v5263, %v5088
      %v5328 = vadd.f32 %v5264, %v5090
      %v5329 = vadd.f32 %v5265, %v5093
      %v5330 = vadd.f32 %v5266, %v5095
      %v5331 = vadd.f32 %v5267, %v5098
      %v5332 = vadd.f32 %v5268, %v5100
      %v5333 = vadd.f32 %v5269, %v5103
      %v5334 = vadd.f32 %v5270, %v5105
      %v5335 = vadd.f32 %v5271, %v5108
      %v5336 = vadd.f32 %v5272, %v5110
      %v5337 = vadd.f32 %v5273, %v5113
      %v5338 = vadd.f32 %v5274, %v5115
      %v5339 = vadd.f32 %v5275, %v5118
      %v5340 = vadd.f32 %v5276, %v5120
      %v5341 = vadd.f32 %v5277, %v5123
      %v5342 = vadd.f32 %v5278, %v5125
      %v5343 = vadd.f32 %v5279, %v5128
      %v5344 = vadd.f32 %v5280, %v5130
      %v5345 = vadd.f32 %v5281, %v5133
      %v5346 = vadd.f32 %v5282, %v5135
      %v5347 = vadd.f32 %v5283, %v5138
      %v5348 = vadd.f32 %v5284, %v5140
      %v5349 = vadd.f32 %v5285, %v5143
      %v5350 = vadd.f32 %v5286, %v5145
      %v5351 = vadd.f32 %v5287, %v5148
      %v5352 = vadd.f32 %v5288, %v5150
      %v5353 = vadd.f32 %v5289, %v5153
      %v5354 = vadd.f32 %v5290, %v5155
      %v5355 = vadd.f32 %v5291, %v5158
      %v5356 = vadd.f32 %v5292, %v5160
      %v5357 = vadd.f32 %v5293, %v5163
      %v5358 = vadd.f32 %v5294, %v5165
      %5359 = vst.msk [vmem:[#allocation4] sm:$0xff] %vm934, %v5295
      %5360 = vst.msk [vmem:[#allocation4 + $0x8] sm:$0xff] %vm934, %v5296
      %5361 = vst.msk [vmem:[#allocation4 + $0x10] sm:$0xff] %vm934, %v5297
      %5362 = vst.msk [vmem:[#allocation4 + $0x18] sm:$0xff] %vm934, %v5298
      %5363 = vst.msk [vmem:[#allocation4 + $0x20] sm:$0xff] %vm934, %v5299
      %5364 = vst.msk [vmem:[#allocation4 + $0x28] sm:$0xff] %vm934, %v5300
      %5365 = vst.msk [vmem:[#allocation4 + $0x30] sm:$0xff] %vm934, %v5301
      %5366 = vst.msk [vmem:[#allocation4 + $0x38] sm:$0xff] %vm934, %v5302
      %5367 = vst.msk [vmem:[#allocation4 + $0x40] sm:$0xff] %vm934, %v5303
      %5368 = vst.msk [vmem:[#allocation4 + $0x48] sm:$0xff] %vm934, %v5304
      %5369 = vst.msk [vmem:[#allocation4 + $0x50] sm:$0xff] %vm934, %v5305
      %5370 = vst.msk [vmem:[#allocation4 + $0x58] sm:$0xff] %vm934, %v5306
      %5371 = vst.msk [vmem:[#allocation4 + $0x60] sm:$0xff] %vm934, %v5307
      %5372 = vst.msk [vmem:[#allocation4 + $0x68] sm:$0xff] %vm934, %v5308
      %5373 = vst.msk [vmem:[#allocation4 + $0x70] sm:$0xff] %vm934, %v5309
      %5374 = vst.msk [vmem:[#allocation4 + $0x78] sm:$0xff] %vm934, %v5310
      %5375 = vst.msk [vmem:[#allocation4 + $0x80] sm:$0xff] %vm934, %v5311
      %5376 = vst.msk [vmem:[#allocation4 + $0x88] sm:$0xff] %vm934, %v5312
      %5377 = vst.msk [vmem:[#allocation4 + $0x90] sm:$0xff] %vm934, %v5313
      %5378 = vst.msk [vmem:[#allocation4 + $0x98] sm:$0xff] %vm934, %v5314
      %5379 = vst.msk [vmem:[#allocation4 + $0xa0] sm:$0xff] %vm934, %v5315
      %5380 = vst.msk [vmem:[#allocation4 + $0xa8] sm:$0xff] %vm934, %v5316
      %5381 = vst.msk [vmem:[#allocation4 + $0xb0] sm:$0xff] %vm934, %v5317
      %5382 = vst.msk [vmem:[#allocation4 + $0xb8] sm:$0xff] %vm934, %v5318
      %5383 = vst.msk [vmem:[#allocation4 + $0xc0] sm:$0xff] %vm934, %v5319
      %5384 = vst.msk [vmem:[#allocation4 + $0xc8] sm:$0xff] %vm934, %v5320
      %5385 = vst.msk [vmem:[#allocation4 + $0xd0] sm:$0xff] %vm934, %v5321
      %5386 = vst.msk [vmem:[#allocation4 + $0xd8] sm:$0xff] %vm934, %v5322
      %5387 = vst.msk [vmem:[#allocation4 + $0xe0] sm:$0xff] %vm934, %v5323
      %5388 = vst.msk [vmem:[#allocation4 + $0xe8] sm:$0xff] %vm934, %v5324
      %5389 = vst.msk [vmem:[#allocation4 + $0xf0] sm:$0xff] %vm934, %v5325
      %5390 = vst.msk [vmem:[#allocation4 + $0xf8] sm:$0xff] %vm934, %v5326
      %5391 = vst.msk [vmem:[#allocation4 + $0x100] sm:$0xff] %vm934, %v5327
      %5392 = vst.msk [vmem:[#allocation4 + $0x108] sm:$0xff] %vm934, %v5328
      %5393 = vst.msk [vmem:[#allocation4 + $0x110] sm:$0xff] %vm934, %v5329
      %5394 = vst.msk [vmem:[#allocation4 + $0x118] sm:$0xff] %vm934, %v5330
      %5395 = vst.msk [vmem:[#allocation4 + $0x120] sm:$0xff] %vm934, %v5331
      %5396 = vst.msk [vmem:[#allocation4 + $0x128] sm:$0xff] %vm934, %v5332
      %5397 = vst.msk [vmem:[#allocation4 + $0x130] sm:$0xff] %vm934, %v5333
      %5398 = vst.msk [vmem:[#allocation4 + $0x138] sm:$0xff] %vm934, %v5334
      %5399 = vst.msk [vmem:[#allocation4 + $0x140] sm:$0xff] %vm934, %v5335
      %5400 = vst.msk [vmem:[#allocation4 + $0x148] sm:$0xff] %vm934, %v5336
      %5401 = vst.msk [vmem:[#allocation4 + $0x150] sm:$0xff] %vm934, %v5337
      %5402 = vst.msk [vmem:[#allocation4 + $0x158] sm:$0xff] %vm934, %v5338
      %5403 = vst.msk [vmem:[#allocation4 + $0x160] sm:$0xff] %vm934, %v5339
      %5404 = vst.msk [vmem:[#allocation4 + $0x168] sm:$0xff] %vm934, %v5340
      %5405 = vst.msk [vmem:[#allocation4 + $0x170] sm:$0xff] %vm934, %v5341
      %5406 = vst.msk [vmem:[#allocation4 + $0x178] sm:$0xff] %vm934, %v5342
      %5407 = vst.msk [vmem:[#allocation4 + $0x180] sm:$0xff] %vm934, %v5343
      %5408 = vst.msk [vmem:[#allocation4 + $0x188] sm:$0xff] %vm934, %v5344
      %5409 = vst.msk [vmem:[#allocation4 + $0x190] sm:$0xff] %vm934, %v5345
      %5410 = vst.msk [vmem:[#allocation4 + $0x198] sm:$0xff] %vm934, %v5346
      %5411 = vst.msk [vmem:[#allocation4 + $0x1a0] sm:$0xff] %vm934, %v5347
      %5412 = vst.msk [vmem:[#allocation4 + $0x1a8] sm:$0xff] %vm934, %v5348
      %5413 = vst.msk [vmem:[#allocation4 + $0x1b0] sm:$0xff] %vm934, %v5349
      %5414 = vst.msk [vmem:[#allocation4 + $0x1b8] sm:$0xff] %vm934, %v5350
      %5415 = vst.msk [vmem:[#allocation4 + $0x1c0] sm:$0xff] %vm934, %v5351
      %5416 = vst.msk [vmem:[#allocation4 + $0x1c8] sm:$0xff] %vm934, %v5352
      %5417 = vst.msk [vmem:[#allocation4 + $0x1d0] sm:$0xff] %vm934, %v5353
      %5418 = vst.msk [vmem:[#allocation4 + $0x1d8] sm:$0xff] %vm934, %v5354
      %5419 = vst.msk [vmem:[#allocation4 + $0x1e0] sm:$0xff] %vm934, %v5355
      %5420 = vst.msk [vmem:[#allocation4 + $0x1e8] sm:$0xff] %vm934, %v5356
      %5421 = vst.msk [vmem:[#allocation4 + $0x1f0] sm:$0xff] %vm934, %v5357
      %5422 = vst.msk [vmem:[#allocation4 + $0x1f8] sm:$0xff] %vm934, %v5358
      // Predicated region
      $region37: #{tpu_custom_call.1} parent=31 // pred_check
        %p5423 = pneg %p289
      $region38: #{tpu_custom_call.1} parent=31 // pred_check_branch
        %5425 = sbr.rel (%p5423) target = $region40
      $region39: #{tpu_custom_call.1} parent=31 // pred_region
        %v5426 = vld [vmem:[#allocation3] sm:$0xff]
        %v5427 = vld [vmem:[#allocation3 + $0x8] sm:$0xff]
        %v5428 = vld [vmem:[#allocation3 + $0x10] sm:$0xff]
        %v5429 = vld [vmem:[#allocation3 + $0x18] sm:$0xff]
        %v5430 = vld [vmem:[#allocation3 + $0x20] sm:$0xff]
        %v5431 = vld [vmem:[#allocation3 + $0x28] sm:$0xff]
        %v5432 = vld [vmem:[#allocation3 + $0x30] sm:$0xff]
        %v5433 = vld [vmem:[#allocation3 + $0x38] sm:$0xff]
        %v5434 = vld [vmem:[#allocation3 + $0x40] sm:$0xff]
        %v5435 = vld [vmem:[#allocation3 + $0x48] sm:$0xff]
        %v5436 = vld [vmem:[#allocation3 + $0x50] sm:$0xff]
        %v5437 = vld [vmem:[#allocation3 + $0x58] sm:$0xff]
        %v5438 = vld [vmem:[#allocation3 + $0x60] sm:$0xff]
        %v5439 = vld [vmem:[#allocation3 + $0x68] sm:$0xff]
        %v5440 = vld [vmem:[#allocation3 + $0x70] sm:$0xff]
        %v5441 = vld [vmem:[#allocation3 + $0x78] sm:$0xff]
        %v5442 = vld [vmem:[#allocation3 + $0x80] sm:$0xff]
        %v5443 = vld [vmem:[#allocation3 + $0x88] sm:$0xff]
        %v5444 = vld [vmem:[#allocation3 + $0x90] sm:$0xff]
        %v5445 = vld [vmem:[#allocation3 + $0x98] sm:$0xff]
        %v5446 = vld [vmem:[#allocation3 + $0xa0] sm:$0xff]
        %v5447 = vld [vmem:[#allocation3 + $0xa8] sm:$0xff]
        %v5448 = vld [vmem:[#allocation3 + $0xb0] sm:$0xff]
        %v5449 = vld [vmem:[#allocation3 + $0xb8] sm:$0xff]
        %v5450 = vld [vmem:[#allocation3 + $0xc0] sm:$0xff]
        %v5451 = vld [vmem:[#allocation3 + $0xc8] sm:$0xff]
        %v5452 = vld [vmem:[#allocation3 + $0xd0] sm:$0xff]
        %v5453 = vld [vmem:[#allocation3 + $0xd8] sm:$0xff]
        %v5454 = vld [vmem:[#allocation3 + $0xe0] sm:$0xff]
        %v5455 = vld [vmem:[#allocation3 + $0xe8] sm:$0xff]
        %v5456 = vld [vmem:[#allocation3 + $0xf0] sm:$0xff]
        %v5457 = vld [vmem:[#allocation3 + $0xf8] sm:$0xff]
        %v5458 = vld [vmem:[#allocation3 + $0x100] sm:$0xff]
        %v5459 = vld [vmem:[#allocation3 + $0x108] sm:$0xff]
        %v5460 = vld [vmem:[#allocation3 + $0x110] sm:$0xff]
        %v5461 = vld [vmem:[#allocation3 + $0x118] sm:$0xff]
        %v5462 = vld [vmem:[#allocation3 + $0x120] sm:$0xff]
        %v5463 = vld [vmem:[#allocation3 + $0x128] sm:$0xff]
        %v5464 = vld [vmem:[#allocation3 + $0x130] sm:$0xff]
        %v5465 = vld [vmem:[#allocation3 + $0x138] sm:$0xff]
        %v5466 = vld [vmem:[#allocation3 + $0x140] sm:$0xff]
        %v5467 = vld [vmem:[#allocation3 + $0x148] sm:$0xff]
        %v5468 = vld [vmem:[#allocation3 + $0x150] sm:$0xff]
        %v5469 = vld [vmem:[#allocation3 + $0x158] sm:$0xff]
        %v5470 = vld [vmem:[#allocation3 + $0x160] sm:$0xff]
        %v5471 = vld [vmem:[#allocation3 + $0x168] sm:$0xff]
        %v5472 = vld [vmem:[#allocation3 + $0x170] sm:$0xff]
        %v5473 = vld [vmem:[#allocation3 + $0x178] sm:$0xff]
        %v5474 = vld [vmem:[#allocation3 + $0x180] sm:$0xff]
        %v5475 = vld [vmem:[#allocation3 + $0x188] sm:$0xff]
        %v5476 = vld [vmem:[#allocation3 + $0x190] sm:$0xff]
        %v5477 = vld [vmem:[#allocation3 + $0x198] sm:$0xff]
        %v5478 = vld [vmem:[#allocation3 + $0x1a0] sm:$0xff]
        %v5479 = vld [vmem:[#allocation3 + $0x1a8] sm:$0xff]
        %v5480 = vld [vmem:[#allocation3 + $0x1b0] sm:$0xff]
        %v5481 = vld [vmem:[#allocation3 + $0x1b8] sm:$0xff]
        %v5482 = vld [vmem:[#allocation3 + $0x1c0] sm:$0xff]
        %v5483 = vld [vmem:[#allocation3 + $0x1c8] sm:$0xff]
        %v5484 = vld [vmem:[#allocation3 + $0x1d0] sm:$0xff]
        %v5485 = vld [vmem:[#allocation3 + $0x1d8] sm:$0xff]
        %v5486 = vld [vmem:[#allocation3 + $0x1e0] sm:$0xff]
        %v5487 = vld [vmem:[#allocation3 + $0x1e8] sm:$0xff]
        %v5488 = vld [vmem:[#allocation3 + $0x1f0] sm:$0xff]
        %v5489 = vld [vmem:[#allocation3 + $0x1f8] sm:$0xff]
        %v5490 = vrcp.pop %v5426
        %v5491 = vrcp.pop %v5427
        %v5492 = vrcp.pop %v5428
        %v5493 = vrcp.pop %v5429
        %v5494 = vrcp.pop %v5430
        %v5495 = vrcp.pop %v5431
        %v5496 = vrcp.pop %v5432
        %v5497 = vrcp.pop %v5433
        %v5498 = vrcp.pop %v5434
        %v5499 = vrcp.pop %v5435
        %v5500 = vrcp.pop %v5436
        %v5501 = vrcp.pop %v5437
        %v5502 = vrcp.pop %v5438
        %v5503 = vrcp.pop %v5439
        %v5504 = vrcp.pop %v5440
        %v5505 = vrcp.pop %v5441
        %v5506 = vrcp.pop %v5442
        %v5507 = vrcp.pop %v5443
        %v5508 = vrcp.pop %v5444
        %v5509 = vrcp.pop %v5445
        %v5510 = vrcp.pop %v5446
        %v5511 = vrcp.pop %v5447
        %v5512 = vrcp.pop %v5448
        %v5513 = vrcp.pop %v5449
        %v5514 = vrcp.pop %v5450
        %v5515 = vrcp.pop %v5451
        %v5516 = vrcp.pop %v5452
        %v5517 = vrcp.pop %v5453
        %v5518 = vrcp.pop %v5454
        %v5519 = vrcp.pop %v5455
        %v5520 = vrcp.pop %v5456
        %v5521 = vrcp.pop %v5457
        %v5522 = vrcp.pop %v5458
        %v5523 = vrcp.pop %v5459
        %v5524 = vrcp.pop %v5460
        %v5525 = vrcp.pop %v5461
        %v5526 = vrcp.pop %v5462
        %v5527 = vrcp.pop %v5463
        %v5528 = vrcp.pop %v5464
        %v5529 = vrcp.pop %v5465
        %v5530 = vrcp.pop %v5466
        %v5531 = vrcp.pop %v5467
        %v5532 = vrcp.pop %v5468
        %v5533 = vrcp.pop %v5469
        %v5534 = vrcp.pop %v5470
        %v5535 = vrcp.pop %v5471
        %v5536 = vrcp.pop %v5472
        %v5537 = vrcp.pop %v5473
        %v5538 = vrcp.pop %v5474
        %v5539 = vrcp.pop %v5475
        %v5540 = vrcp.pop %v5476
        %v5541 = vrcp.pop %v5477
        %v5542 = vrcp.pop %v5478
        %v5543 = vrcp.pop %v5479
        %v5544 = vrcp.pop %v5480
        %v5545 = vrcp.pop %v5481
        %v5546 = vrcp.pop %v5482
        %v5547 = vrcp.pop %v5483
        %v5548 = vrcp.pop %v5484
        %v5549 = vrcp.pop %v5485
        %v5550 = vrcp.pop %v5486
        %v5551 = vrcp.pop %v5487
        %v5552 = vrcp.pop %v5488
        %v5553 = vrcp.pop %v5489
        %v5554 = vld [vmem:[#allocation4] sm:$0xff]
        %v5555 = vld [vmem:[#allocation4 + $0x8] sm:$0xff]
        %v5556 = vld [vmem:[#allocation4 + $0x10] sm:$0xff]
        %v5557 = vld [vmem:[#allocation4 + $0x18] sm:$0xff]
        %v5558 = vld [vmem:[#allocation4 + $0x20] sm:$0xff]
        %v5559 = vld [vmem:[#allocation4 + $0x28] sm:$0xff]
        %v5560 = vld [vmem:[#allocation4 + $0x30] sm:$0xff]
        %v5561 = vld [vmem:[#allocation4 + $0x38] sm:$0xff]
        %v5562 = vld [vmem:[#allocation4 + $0x40] sm:$0xff]
        %v5563 = vld [vmem:[#allocation4 + $0x48] sm:$0xff]
        %v5564 = vld [vmem:[#allocation4 + $0x50] sm:$0xff]
        %v5565 = vld [vmem:[#allocation4 + $0x58] sm:$0xff]
        %v5566 = vld [vmem:[#allocation4 + $0x60] sm:$0xff]
        %v5567 = vld [vmem:[#allocation4 + $0x68] sm:$0xff]
        %v5568 = vld [vmem:[#allocation4 + $0x70] sm:$0xff]
        %v5569 = vld [vmem:[#allocation4 + $0x78] sm:$0xff]
        %v5570 = vld [vmem:[#allocation4 + $0x80] sm:$0xff]
        %v5571 = vld [vmem:[#allocation4 + $0x88] sm:$0xff]
        %v5572 = vld [vmem:[#allocation4 + $0x90] sm:$0xff]
        %v5573 = vld [vmem:[#allocation4 + $0x98] sm:$0xff]
        %v5574 = vld [vmem:[#allocation4 + $0xa0] sm:$0xff]
        %v5575 = vld [vmem:[#allocation4 + $0xa8] sm:$0xff]
        %v5576 = vld [vmem:[#allocation4 + $0xb0] sm:$0xff]
        %v5577 = vld [vmem:[#allocation4 + $0xb8] sm:$0xff]
        %v5578 = vld [vmem:[#allocation4 + $0xc0] sm:$0xff]
        %v5579 = vld [vmem:[#allocation4 + $0xc8] sm:$0xff]
        %v5580 = vld [vmem:[#allocation4 + $0xd0] sm:$0xff]
        %v5581 = vld [vmem:[#allocation4 + $0xd8] sm:$0xff]
        %v5582 = vld [vmem:[#allocation4 + $0xe0] sm:$0xff]
        %v5583 = vld [vmem:[#allocation4 + $0xe8] sm:$0xff]
        %v5584 = vld [vmem:[#allocation4 + $0xf0] sm:$0xff]
        %v5585 = vld [vmem:[#allocation4 + $0xf8] sm:$0xff]
        %v5586 = vld [vmem:[#allocation4 + $0x100] sm:$0xff]
        %v5587 = vld [vmem:[#allocation4 + $0x108] sm:$0xff]
        %v5588 = vld [vmem:[#allocation4 + $0x110] sm:$0xff]
        %v5589 = vld [vmem:[#allocation4 + $0x118] sm:$0xff]
        %v5590 = vld [vmem:[#allocation4 + $0x120] sm:$0xff]
        %v5591 = vld [vmem:[#allocation4 + $0x128] sm:$0xff]
        %v5592 = vld [vmem:[#allocation4 + $0x130] sm:$0xff]
        %v5593 = vld [vmem:[#allocation4 + $0x138] sm:$0xff]
        %v5594 = vld [vmem:[#allocation4 + $0x140] sm:$0xff]
        %v5595 = vld [vmem:[#allocation4 + $0x148] sm:$0xff]
        %v5596 = vld [vmem:[#allocation4 + $0x150] sm:$0xff]
        %v5597 = vld [vmem:[#allocation4 + $0x158] sm:$0xff]
        %v5598 = vld [vmem:[#allocation4 + $0x160] sm:$0xff]
        %v5599 = vld [vmem:[#allocation4 + $0x168] sm:$0xff]
        %v5600 = vld [vmem:[#allocation4 + $0x170] sm:$0xff]
        %v5601 = vld [vmem:[#allocation4 + $0x178] sm:$0xff]
        %v5602 = vld [vmem:[#allocation4 + $0x180] sm:$0xff]
        %v5603 = vld [vmem:[#allocation4 + $0x188] sm:$0xff]
        %v5604 = vld [vmem:[#allocation4 + $0x190] sm:$0xff]
        %v5605 = vld [vmem:[#allocation4 + $0x198] sm:$0xff]
        %v5606 = vld [vmem:[#allocation4 + $0x1a0] sm:$0xff]
        %v5607 = vld [vmem:[#allocation4 + $0x1a8] sm:$0xff]
        %v5608 = vld [vmem:[#allocation4 + $0x1b0] sm:$0xff]
        %v5609 = vld [vmem:[#allocation4 + $0x1b8] sm:$0xff]
        %v5610 = vld [vmem:[#allocation4 + $0x1c0] sm:$0xff]
        %v5611 = vld [vmem:[#allocation4 + $0x1c8] sm:$0xff]
        %v5612 = vld [vmem:[#allocation4 + $0x1d0] sm:$0xff]
        %v5613 = vld [vmem:[#allocation4 + $0x1d8] sm:$0xff]
        %v5614 = vld [vmem:[#allocation4 + $0x1e0] sm:$0xff]
        %v5615 = vld [vmem:[#allocation4 + $0x1e8] sm:$0xff]
        %v5616 = vld [vmem:[#allocation4 + $0x1f0] sm:$0xff]
        %v5617 = vld [vmem:[#allocation4 + $0x1f8] sm:$0xff]
        %v5618 = vmul.f32 %v5554, %v5490
        %v5619 = vmul.f32 %v5555, %v5491
        %v5620 = vmul.f32 %v5556, %v5492
        %v5621 = vmul.f32 %v5557, %v5493
        %v5622 = vmul.f32 %v5558, %v5494
        %v5623 = vmul.f32 %v5559, %v5495
        %v5624 = vmul.f32 %v5560, %v5496
        %v5625 = vmul.f32 %v5561, %v5497
        %v5626 = vmul.f32 %v5562, %v5498
        %v5627 = vmul.f32 %v5563, %v5499
        %v5628 = vmul.f32 %v5564, %v5500
        %v5629 = vmul.f32 %v5565, %v5501
        %v5630 = vmul.f32 %v5566, %v5502
        %v5631 = vmul.f32 %v5567, %v5503
        %v5632 = vmul.f32 %v5568, %v5504
        %v5633 = vmul.f32 %v5569, %v5505
        %v5634 = vmul.f32 %v5570, %v5506
        %v5635 = vmul.f32 %v5571, %v5507
        %v5636 = vmul.f32 %v5572, %v5508
        %v5637 = vmul.f32 %v5573, %v5509
        %v5638 = vmul.f32 %v5574, %v5510
        %v5639 = vmul.f32 %v5575, %v5511
        %v5640 = vmul.f32 %v5576, %v5512
        %v5641 = vmul.f32 %v5577, %v5513
        %v5642 = vmul.f32 %v5578, %v5514
        %v5643 = vmul.f32 %v5579, %v5515
        %v5644 = vmul.f32 %v5580, %v5516
        %v5645 = vmul.f32 %v5581, %v5517
        %v5646 = vmul.f32 %v5582, %v5518
        %v5647 = vmul.f32 %v5583, %v5519
        %v5648 = vmul.f32 %v5584, %v5520
        %v5649 = vmul.f32 %v5585, %v5521
        %v5650 = vmul.f32 %v5586, %v5522
        %v5651 = vmul.f32 %v5587, %v5523
        %v5652 = vmul.f32 %v5588, %v5524
        %v5653 = vmul.f32 %v5589, %v5525
        %v5654 = vmul.f32 %v5590, %v5526
        %v5655 = vmul.f32 %v5591, %v5527
        %v5656 = vmul.f32 %v5592, %v5528
        %v5657 = vmul.f32 %v5593, %v5529
        %v5658 = vmul.f32 %v5594, %v5530
        %v5659 = vmul.f32 %v5595, %v5531
        %v5660 = vmul.f32 %v5596, %v5532
        %v5661 = vmul.f32 %v5597, %v5533
        %v5662 = vmul.f32 %v5598, %v5534
        %v5663 = vmul.f32 %v5599, %v5535
        %v5664 = vmul.f32 %v5600, %v5536
        %v5665 = vmul.f32 %v5601, %v5537
        %v5666 = vmul.f32 %v5602, %v5538
        %v5667 = vmul.f32 %v5603, %v5539
        %v5668 = vmul.f32 %v5604, %v5540
        %v5669 = vmul.f32 %v5605, %v5541
        %v5670 = vmul.f32 %v5606, %v5542
        %v5671 = vmul.f32 %v5607, %v5543
        %v5672 = vmul.f32 %v5608, %v5544
        %v5673 = vmul.f32 %v5609, %v5545
        %v5674 = vmul.f32 %v5610, %v5546
        %v5675 = vmul.f32 %v5611, %v5547
        %v5676 = vmul.f32 %v5612, %v5548
        %v5677 = vmul.f32 %v5613, %v5549
        %v5678 = vmul.f32 %v5614, %v5550
        %v5679 = vmul.f32 %v5615, %v5551
        %v5680 = vmul.f32 %v5616, %v5552
        %v5681 = vmul.f32 %v5617, %v5553
        %v5682 = vpack.c.bf16 %v5618, %v5618
        %v5683 = vpack.c.bf16 %v5619, %v5619
        %v5684 = vpack.c.bf16 %v5620, %v5620
        %v5685 = vpack.c.bf16 %v5621, %v5621
        %v5686 = vpack.c.bf16 %v5622, %v5622
        %v5687 = vpack.c.bf16 %v5623, %v5623
        %v5688 = vpack.c.bf16 %v5624, %v5624
        %v5689 = vpack.c.bf16 %v5625, %v5625
        %v5690 = vpack.c.bf16 %v5626, %v5626
        %v5691 = vpack.c.bf16 %v5627, %v5627
        %v5692 = vpack.c.bf16 %v5628, %v5628
        %v5693 = vpack.c.bf16 %v5629, %v5629
        %v5694 = vpack.c.bf16 %v5630, %v5630
        %v5695 = vpack.c.bf16 %v5631, %v5631
        %v5696 = vpack.c.bf16 %v5632, %v5632
        %v5697 = vpack.c.bf16 %v5633, %v5633
        %v5698 = vpack.c.bf16 %v5634, %v5634
        %v5699 = vpack.c.bf16 %v5635, %v5635
        %v5700 = vpack.c.bf16 %v5636, %v5636
        %v5701 = vpack.c.bf16 %v5637, %v5637
        %v5702 = vpack.c.bf16 %v5638, %v5638
        %v5703 = vpack.c.bf16 %v5639, %v5639
        %v5704 = vpack.c.bf16 %v5640, %v5640
        %v5705 = vpack.c.bf16 %v5641, %v5641
        %v5706 = vpack.c.bf16 %v5642, %v5642
        %v5707 = vpack.c.bf16 %v5643, %v5643
        %v5708 = vpack.c.bf16 %v5644, %v5644
        %v5709 = vpack.c.bf16 %v5645, %v5645
        %v5710 = vpack.c.bf16 %v5646, %v5646
        %v5711 = vpack.c.bf16 %v5647, %v5647
        %v5712 = vpack.c.bf16 %v5648, %v5648
        %v5713 = vpack.c.bf16 %v5649, %v5649
        %v5714 = vpack.c.bf16 %v5650, %v5650
        %v5715 = vpack.c.bf16 %v5651, %v5651
        %v5716 = vpack.c.bf16 %v5652, %v5652
        %v5717 = vpack.c.bf16 %v5653, %v5653
        %v5718 = vpack.c.bf16 %v5654, %v5654
        %v5719 = vpack.c.bf16 %v5655, %v5655
        %v5720 = vpack.c.bf16 %v5656, %v5656
        %v5721 = vpack.c.bf16 %v5657, %v5657
        %v5722 = vpack.c.bf16 %v5658, %v5658
        %v5723 = vpack.c.bf16 %v5659, %v5659
        %v5724 = vpack.c.bf16 %v5660, %v5660
        %v5725 = vpack.c.bf16 %v5661, %v5661
        %v5726 = vpack.c.bf16 %v5662, %v5662
        %v5727 = vpack.c.bf16 %v5663, %v5663
        %v5728 = vpack.c.bf16 %v5664, %v5664
        %v5729 = vpack.c.bf16 %v5665, %v5665
        %v5730 = vpack.c.bf16 %v5666, %v5666
        %v5731 = vpack.c.bf16 %v5667, %v5667
        %v5732 = vpack.c.bf16 %v5668, %v5668
        %v5733 = vpack.c.bf16 %v5669, %v5669
        %v5734 = vpack.c.bf16 %v5670, %v5670
        %v5735 = vpack.c.bf16 %v5671, %v5671
        %v5736 = vpack.c.bf16 %v5672, %v5672
        %v5737 = vpack.c.bf16 %v5673, %v5673
        %v5738 = vpack.c.bf16 %v5674, %v5674
        %v5739 = vpack.c.bf16 %v5675, %v5675
        %v5740 = vpack.c.bf16 %v5676, %v5676
        %v5741 = vpack.c.bf16 %v5677, %v5677
        %v5742 = vpack.c.bf16 %v5678, %v5678
        %v5743 = vpack.c.bf16 %v5679, %v5679
        %v5744 = vpack.c.bf16 %v5680, %v5680
        %v5745 = vpack.c.bf16 %v5681, %v5681
        %vm5746 = vcmask 519168
        %5747 = vst.msk [vmem:[%s287] sm:$0xf] %vm5746, %v5682
        %5748 = vst.msk [vmem:[%s287 + $0x4] sm:$0xf] %vm5746, %v5683
        %5749 = vst.msk [vmem:[%s287 + $0x8] sm:$0xf] %vm5746, %v5684
        %5750 = vst.msk [vmem:[%s287 + $0xc] sm:$0xf] %vm5746, %v5685
        %5751 = vst.msk [vmem:[%s287 + $0x10] sm:$0xf] %vm5746, %v5686
        %5752 = vst.msk [vmem:[%s287 + $0x14] sm:$0xf] %vm5746, %v5687
        %5753 = vst.msk [vmem:[%s287 + $0x18] sm:$0xf] %vm5746, %v5688
        %5754 = vst.msk [vmem:[%s287 + $0x1c] sm:$0xf] %vm5746, %v5689
        %5755 = vst.msk [vmem:[%s287 + $0x20] sm:$0xf] %vm5746, %v5690
        %5756 = vst.msk [vmem:[%s287 + $0x24] sm:$0xf] %vm5746, %v5691
        %5757 = vst.msk [vmem:[%s287 + $0x28] sm:$0xf] %vm5746, %v5692
        %5758 = vst.msk [vmem:[%s287 + $0x2c] sm:$0xf] %vm5746, %v5693
        %5759 = vst.msk [vmem:[%s287 + $0x30] sm:$0xf] %vm5746, %v5694
        %5760 = vst.msk [vmem:[%s287 + $0x34] sm:$0xf] %vm5746, %v5695
        %5761 = vst.msk [vmem:[%s287 + $0x38] sm:$0xf] %vm5746, %v5696
        %5762 = vst.msk [vmem:[%s287 + $0x3c] sm:$0xf] %vm5746, %v5697
        %5763 = vst.msk [vmem:[%s287 + $0x40] sm:$0xf] %vm5746, %v5698
        %5764 = vst.msk [vmem:[%s287 + $0x44] sm:$0xf] %vm5746, %v5699
        %5765 = vst.msk [vmem:[%s287 + $0x48] sm:$0xf] %vm5746, %v5700
        %5766 = vst.msk [vmem:[%s287 + $0x4c] sm:$0xf] %vm5746, %v5701
        %5767 = vst.msk [vmem:[%s287 + $0x50] sm:$0xf] %vm5746, %v5702
        %5768 = vst.msk [vmem:[%s287 + $0x54] sm:$0xf] %vm5746, %v5703
        %5769 = vst.msk [vmem:[%s287 + $0x58] sm:$0xf] %vm5746, %v5704
        %5770 = vst.msk [vmem:[%s287 + $0x5c] sm:$0xf] %vm5746, %v5705
        %5771 = vst.msk [vmem:[%s287 + $0x60] sm:$0xf] %vm5746, %v5706
        %5772 = vst.msk [vmem:[%s287 + $0x64] sm:$0xf] %vm5746, %v5707
        %5773 = vst.msk [vmem:[%s287 + $0x68] sm:$0xf] %vm5746, %v5708
        %5774 = vst.msk [vmem:[%s287 + $0x6c] sm:$0xf] %vm5746, %v5709
        %5775 = vst.msk [vmem:[%s287 + $0x70] sm:$0xf] %vm5746, %v5710
        %5776 = vst.msk [vmem:[%s287 + $0x74] sm:$0xf] %vm5746, %v5711
        %5777 = vst.msk [vmem:[%s287 + $0x78] sm:$0xf] %vm5746, %v5712
        %5778 = vst.msk [vmem:[%s287 + $0x7c] sm:$0xf] %vm5746, %v5713
        %5779 = vst.msk [vmem:[%s287 + $0x80] sm:$0xf] %vm5746, %v5714
        %5780 = vst.msk [vmem:[%s287 + $0x84] sm:$0xf] %vm5746, %v5715
        %5781 = vst.msk [vmem:[%s287 + $0x88] sm:$0xf] %vm5746, %v5716
        %5782 = vst.msk [vmem:[%s287 + $0x8c] sm:$0xf] %vm5746, %v5717
        %5783 = vst.msk [vmem:[%s287 + $0x90] sm:$0xf] %vm5746, %v5718
        %5784 = vst.msk [vmem:[%s287 + $0x94] sm:$0xf] %vm5746, %v5719
        %5785 = vst.msk [vmem:[%s287 + $0x98] sm:$0xf] %vm5746, %v5720
        %5786 = vst.msk [vmem:[%s287 + $0x9c] sm:$0xf] %vm5746, %v5721
        %5787 = vst.msk [vmem:[%s287 + $0xa0] sm:$0xf] %vm5746, %v5722
        %5788 = vst.msk [vmem:[%s287 + $0xa4] sm:$0xf] %vm5746, %v5723
        %5789 = vst.msk [vmem:[%s287 + $0xa8] sm:$0xf] %vm5746, %v5724
        %5790 = vst.msk [vmem:[%s287 + $0xac] sm:$0xf] %vm5746, %v5725
        %5791 = vst.msk [vmem:[%s287 + $0xb0] sm:$0xf] %vm5746, %v5726
        %5792 = vst.msk [vmem:[%s287 + $0xb4] sm:$0xf] %vm5746, %v5727
        %5793 = vst.msk [vmem:[%s287 + $0xb8] sm:$0xf] %vm5746, %v5728
        %5794 = vst.msk [vmem:[%s287 + $0xbc] sm:$0xf] %vm5746, %v5729
        %5795 = vst.msk [vmem:[%s287 + $0xc0] sm:$0xf] %vm5746, %v5730
        %5796 = vst.msk [vmem:[%s287 + $0xc4] sm:$0xf] %vm5746, %v5731
        %5797 = vst.msk [vmem:[%s287 + $0xc8] sm:$0xf] %vm5746, %v5732
        %5798 = vst.msk [vmem:[%s287 + $0xcc] sm:$0xf] %vm5746, %v5733
        %5799 = vst.msk [vmem:[%s287 + $0xd0] sm:$0xf] %vm5746, %v5734
        %5800 = vst.msk [vmem:[%s287 + $0xd4] sm:$0xf] %vm5746, %v5735
        %5801 = vst.msk [vmem:[%s287 + $0xd8] sm:$0xf] %vm5746, %v5736
        %5802 = vst.msk [vmem:[%s287 + $0xdc] sm:$0xf] %vm5746, %v5737
        %5803 = vst.msk [vmem:[%s287 + $0xe0] sm:$0xf] %vm5746, %v5738
        %5804 = vst.msk [vmem:[%s287 + $0xe4] sm:$0xf] %vm5746, %v5739
        %5805 = vst.msk [vmem:[%s287 + $0xe8] sm:$0xf] %vm5746, %v5740
        %5806 = vst.msk [vmem:[%s287 + $0xec] sm:$0xf] %vm5746, %v5741
        %5807 = vst.msk [vmem:[%s287 + $0xf0] sm:$0xf] %vm5746, %v5742
        %5808 = vst.msk [vmem:[%s287 + $0xf4] sm:$0xf] %vm5746, %v5743
        %5809 = vst.msk [vmem:[%s287 + $0xf8] sm:$0xf] %vm5746, %v5744
        %5810 = vst.msk [vmem:[%s287 + $0xfc] sm:$0xf] %vm5746, %v5745
      $region40: #{tpu_custom_call.1} parent=31 // pred_fallthru
        _
      %s5811 = smul.u32 64, %s20
      %p5812 = scmp.lt.s32.totalorder %s19, 3
      %s5813 = scalar_select %p5812, %s19, 3
      %p5814 = scmp.lt.s32.totalorder %s5811, 63
      %s5815 = scalar_select %p5814, %s5811, 63
      %s5816 = smul.addr %s5813, 64
      %s5817 = sadd.s32 %s5815, %s5816
      %s5818 = smul.addr %s5817, 4
      %s5819 = scalar_lea.vmem %s3, %s5818
      // Predicated region
      $region41: #{tpu_custom_call.1} parent=31 // pred_check
        %p5820 = pneg %p137
      $region42: #{tpu_custom_call.1} parent=31 // pred_check_branch
        %5822 = sbr.rel (%p5820) target = $region44
      $region43: #{tpu_custom_call.1} parent=31 // pred_region
        %s5823 = smul.u32 64, %s20
      $region44: #{tpu_custom_call.1} parent=31 // pred_fallthru
        _
    $region32: #{tpu_custom_call.1} parent=5 // pred_fallthru
      _
    %p5824 = scmp.le.s32.totalorder 2, %s9
    // Predicated region
    $region45: #{tpu_custom_call.1} parent=5 // pred_check
      %p5825 = pneg %p5824
    $region46: #{tpu_custom_call.1} parent=5 // pred_check_branch
      %5827 = sbr.rel (%p5825) target = $region48
    $region47: #{tpu_custom_call.1} parent=5 // pred_region
      %s5828 = ssub.s32 %s9, 2
      // Predicated region
      $region49: #{tpu_custom_call.1} parent=47 // pred_check
        %p5829 = pneg %p143
      $region50: #{tpu_custom_call.1} parent=47 // pred_check_branch
        %5831 = sbr.rel (%p5829) target = $region52
      $region51: #{tpu_custom_call.1} parent=47 // pred_region
        %s5832 = smul.u32 64, %s23
        %p5833 = scmp.lt.s32.totalorder %s22, 3
        %s5834 = scalar_select %p5833, %s22, 3
        %p5835 = scmp.lt.s32.totalorder %s5832, 63
        %s5836 = scalar_select %p5835, %s5832, 63
        %s5837 = smul.addr %s5834, 64
        %s5838 = sadd.s32 %s5836, %s5837
        %s5839 = smul.addr %s5838, 4
        %s5840 = scalar_lea.vmem %s3, %s5839
      $region52: #{tpu_custom_call.1} parent=47 // pred_fallthru
        _
    $region48: #{tpu_custom_call.1} parent=5 // pred_fallthru
      _
  $region6: #{tpu_custom_call.1} parent=0 // loop_footer
    %s13 = sadd.s32 1, %s9
  $region7: #{tpu_custom_call.1} parent=0 // loop_footer_branch
    %8 = sbr.rel target = $region3
  $region8: #{tpu_custom_call.1} parent=0 // loop_exit
    _

</llo_original>
